<compile_context>
chip_gen: v7x
topology: tpu7x:2x2x1
jax: 0.10.0
libtpu: 0.0.40
codegen_flags: <defaults>
</compile_context>

<pallas_src>
import functools
import math

import jax
import jax.numpy as jnp
import numpy as np
from jax.experimental import pallas as pl
from jax.experimental.pallas import tpu as pltpu

DROPOUT_P = 0.2
N_EMBD = 384          # matches the PyTorch module's n_embd
ROW_TILE = 512        # default row tile (sweep {256, 512, 1024} on real shapes)


def ffn_kernel(*refs, dropout_p, training):
    use_dropout = training and dropout_p > 0.0
    if use_dropout:
        x_ref, w1_ref, b1_ref, w2_ref, b2_ref, bits_ref, o_ref = refs
    else:
        x_ref, w1_ref, b1_ref, w2_ref, b2_ref, o_ref = refs

    # Linear 1 + ReLU: bf16 MXU matmul, f32 accumulate, f32 epilogue.
    h = jnp.dot(x_ref[...], w1_ref[...], preferred_element_type=jnp.float32)
    h = jnp.maximum(h + b1_ref[...], 0.0)

    # Linear 2: cast the hidden back to bf16 so the MXU runs at its bf16 peak.
    y = jnp.dot(h.astype(jnp.bfloat16), w2_ref[...],
                preferred_element_type=jnp.float32)
    y = y + b2_ref[...]

    if use_dropout:
        # Inverted dropout via integer threshold compare on raw uint32 bits.
        thresh = np.uint32(min(int(round(dropout_p * 4294967296.0)), 4294967295))
        keep = bits_ref[...] >= thresh
        y = jnp.where(keep, y * (1.0 / (1.0 - dropout_p)), 0.0)

    o_ref[...] = y.astype(o_ref.dtype)


def feed_forward(x, w1, b1, w2, b2, *, key=None, dropout_p=DROPOUT_P,
                 training=True, tm=ROW_TILE):
    """x: (..., D).  w1: (D, 4D), b1: (4D,), w2: (4D, D), b2: (D,)."""
    orig_shape = x.shape
    orig_dtype = x.dtype
    D = x.shape[-1]
    H = w1.shape[1]
    M = int(np.prod(orig_shape[:-1]))

    # Fixed row tile (sublane-aligned); pad M up to a whole number of tiles.
    TM = tm if M >= tm else ((M + 7) // 8) * 8
    num_blocks = pl.cdiv(M, TM)
    M_pad = num_blocks * TM

    x2 = x.reshape(M, D)
    if M_pad != M:
        x2 = jnp.pad(x2, ((0, M_pad - M), (0, 0)))

    # bf16 matmul operands (halves HBM traffic), f32 biases for the epilogue.
    x_bf = x2.astype(jnp.bfloat16)
    w1_bf = w1.astype(jnp.bfloat16)
    w2_bf = w2.astype(jnp.bfloat16)
    b1_2d = b1.reshape(1, H).astype(jnp.float32)
    b2_2d = b2.reshape(1, D).astype(jnp.float32)

    use_dropout = training and dropout_p > 0.0

    inputs = [x_bf, w1_bf, b1_2d, w2_bf, b2_2d]
    in_specs = [
        pl.BlockSpec((TM, D), lambda i: (i, 0)),   # x tile (pipelined)
        pl.BlockSpec((D, H), lambda i: (0, 0)),    # W1 (in, out), resident
        pl.BlockSpec((1, H), lambda i: (0, 0)),    # b1, resident
        pl.BlockSpec((H, D), lambda i: (0, 0)),    # W2 (in, out), resident
        pl.BlockSpec((1, D), lambda i: (0, 0)),    # b2, resident
    ]
    if use_dropout:
        if key is None:
            raise ValueError("key is required when training with dropout")
        # TODO(synk): on a real TPU run, pltpu.prng_random_bits inside the
        # kernel would avoid this extra M x D x 4B stream; host bits are used
        # here so the kernel also runs under the CPU interpreter.
        bits = jax.random.bits(key, (M_pad, D), dtype=jnp.uint32)
        inputs.append(bits)
        in_specs.append(pl.BlockSpec((TM, D), lambda i: (i, 0)))

    kernel = functools.partial(ffn_kernel, dropout_p=dropout_p, training=training)

    out = pl.pallas_call(
        kernel,
        out_shape=jax.ShapeDtypeStruct((M_pad, D), orig_dtype),
        grid=(num_blocks,),
        in_specs=in_specs,
        out_specs=pl.BlockSpec((TM, D), lambda i: (i, 0)),
        compiler_params=pltpu.CompilerParams(
            dimension_semantics=("parallel",)),   # row tiles are independent
    )(*inputs)

    if M_pad != M:
        out = out[:M]
    return out.reshape(orig_shape)


def init_feed_forward_params(key, n_embd):
    """Deterministic init mirroring nn.Linear's uniform(-1/sqrt(fan_in), ...)."""
    hidden = 4 * n_embd
    k1, k2, k3, k4 = jax.random.split(key, 4)
    b1_bound = 1.0 / math.sqrt(n_embd)
    b2_bound = 1.0 / math.sqrt(hidden)
    # PyTorch stores Linear weights as (out, in); transpose to (in, out).
    w1_pt = jax.random.uniform(k1, (hidden, n_embd), jnp.float32, -b1_bound, b1_bound)
    b1 = jax.random.uniform(k2, (hidden,), jnp.float32, -b1_bound, b1_bound)
    w2_pt = jax.random.uniform(k3, (n_embd, hidden), jnp.float32, -b2_bound, b2_bound)
    b2 = jax.random.uniform(k4, (n_embd,), jnp.float32, -b2_bound, b2_bound)
    return w1_pt.T, b1, w2_pt.T, b2


if __name__ == "__main__":
    key = jax.random.PRNGKey(0)
    k_param, k_x, k_drop = jax.random.split(key, 3)

    B, T, D = 2, 8, N_EMBD
    w1, b1, w2, b2 = init_feed_forward_params(k_param, D)
    x = jax.random.normal(k_x, (B, T, D), dtype=jnp.float32)

    # Training-mode run (dropout active).
    y = feed_forward(x, w1, b1, w2, b2, key=k_drop, training=True)
    y = jax.block_until_ready(y)
    assert y.shape == x.shape and y.dtype == x.dtype
    zero_frac = float(jnp.mean((y == 0.0).astype(jnp.float32)))
    assert 0.10 < zero_frac < 0.30, f"dropout zero fraction off: {zero_frac}"

    # Eval-mode check against a pure-JAX reference using the same bf16 matmul
    # operands + f32 accumulation.
    y_eval = jax.block_until_ready(
        feed_forward(x, w1, b1, w2, b2, training=False))
    xb = x.reshape(-1, D).astype(jnp.bfloat16)
    h_ref = jnp.maximum(
        jnp.dot(xb, w1.astype(jnp.bfloat16),
                preferred_element_type=jnp.float32) + b1, 0.0)
    ref = jnp.dot(h_ref.astype(jnp.bfloat16), w2.astype(jnp.bfloat16),
                  preferred_element_type=jnp.float32) + b2
    np.testing.assert_allclose(np.asarray(y_eval).reshape(-1, D),
                               np.asarray(ref), rtol=2e-2, atol=2e-2)

    print("KERNEL_OK")
</pallas_src>

<mosaic_0001>
module attributes {stable_mosaic.version = 11 : i64} {
  func.func @ffn_kernel(%arg0: i32, %arg1: memref<16x384xbf16, #tpu.memory_space<vmem>>, %arg2: memref<384x1536xbf16, #tpu.memory_space<vmem>>, %arg3: memref<1x1536xf32, #tpu.memory_space<vmem>>, %arg4: memref<1536x384xbf16, #tpu.memory_space<vmem>>, %arg5: memref<1x384xf32, #tpu.memory_space<vmem>>, %arg6: memref<16x384xi32, #tpu.memory_space<vmem>>, %arg7: memref<16x384xf32, #tpu.memory_space<vmem>>) attributes {dimension_semantics = [#tpu.dimension_semantics<parallel>], iteration_bounds = array<i64: 1>, scalar_prefetch = 0 : i64, scratch_operands = 0 : i64, tpu.core_type = #tpu.core_type<tc>, window_params = [{transform_indices = @transform_0, window_bounds = array<i64: 16, 384>}, {pipeline_mode = #tpu.pipeline_mode<synchronous>, transform_indices = @transform_1, window_bounds = array<i64: 384, 1536>}, {pipeline_mode = #tpu.pipeline_mode<synchronous>, transform_indices = @transform_2, window_bounds = array<i64: 1, 1536>}, {pipeline_mode = #tpu.pipeline_mode<synchronous>, transform_indices = @transform_3, window_bounds = array<i64: 1536, 384>}, {pipeline_mode = #tpu.pipeline_mode<synchronous>, transform_indices = @transform_4, window_bounds = array<i64: 1, 384>}, {transform_indices = @transform_5, window_bounds = array<i64: 16, 384>}, {transform_indices = @transform_6, window_bounds = array<i64: 16, 384>}]} {
    %c0 = arith.constant 0 : index
    %c0_0 = arith.constant 0 : index
    %0 = vector.load %arg1[%c0, %c0_0] : memref<16x384xbf16, #tpu.memory_space<vmem>>, vector<16x384xbf16>
    %c0_1 = arith.constant 0 : index
    %c0_2 = arith.constant 0 : index
    %1 = vector.load %arg2[%c0_1, %c0_2] : memref<384x1536xbf16, #tpu.memory_space<vmem>>, vector<384x1536xbf16>
    %cst = arith.constant dense<0.000000e+00> : vector<16x1536xf32>
    %2 = tpu.matmul %0, %1, %cst {dimension_numbers = #tpu.dot_dimension_numbers<[1], [0], [0], [1], [0, 0, 1, 1], [], []>} : vector<16x384xbf16>, vector<384x1536xbf16>, vector<16x1536xf32> -> vector<16x1536xf32>
    %c0_3 = arith.constant 0 : index
    %c0_4 = arith.constant 0 : index
    %3 = vector.load %arg3[%c0_3, %c0_4] : memref<1x1536xf32, #tpu.memory_space<vmem>>, vector<1x1536xf32>
    %4 = vector.broadcast %3 : vector<1x1536xf32> to vector<16x1536xf32>
    %5 = arith.addf %2, %4 : vector<16x1536xf32>
    %cst_5 = arith.constant 0.000000e+00 : f32
    %6 = vector.broadcast %cst_5 : f32 to vector<16x1536xf32>
    %7 = arith.maximumf %5, %6 : vector<16x1536xf32>
    %8 = arith.truncf %7 : vector<16x1536xf32> to vector<16x1536xbf16>
    %c0_6 = arith.constant 0 : index
    %c0_7 = arith.constant 0 : index
    %9 = vector.load %arg4[%c0_6, %c0_7] : memref<1536x384xbf16, #tpu.memory_space<vmem>>, vector<1536x384xbf16>
    %cst_8 = arith.constant dense<0.000000e+00> : vector<16x384xf32>
    %10 = tpu.matmul %8, %9, %cst_8 {dimension_numbers = #tpu.dot_dimension_numbers<[1], [0], [0], [1], [0, 0, 1, 1], [], []>} : vector<16x1536xbf16>, vector<1536x384xbf16>, vector<16x384xf32> -> vector<16x384xf32>
    %c0_9 = arith.constant 0 : index
    %c0_10 = arith.constant 0 : index
    %11 = vector.load %arg5[%c0_9, %c0_10] : memref<1x384xf32, #tpu.memory_space<vmem>>, vector<1x384xf32>
    %12 = vector.broadcast %11 : vector<1x384xf32> to vector<16x384xf32>
    %13 = arith.addf %10, %12 : vector<16x384xf32>
    %c0_11 = arith.constant 0 : index
    %c0_12 = arith.constant 0 : index
    %14 = vector.load %arg6[%c0_11, %c0_12] : memref<16x384xi32, #tpu.memory_space<vmem>>, vector<16x384xi32>
    %c858993459_i32 = arith.constant 858993459 : i32
    %15 = vector.broadcast %c858993459_i32 : i32 to vector<16x384xi32>
    %16 = arith.cmpi uge, %14, %15 : vector<16x384xi32>
    %cst_13 = arith.constant 1.250000e+00 : f32
    %17 = vector.broadcast %cst_13 : f32 to vector<16x384xf32>
    %18 = arith.mulf %13, %17 : vector<16x384xf32>
    %cst_14 = arith.constant 0.000000e+00 : f32
    %19 = vector.broadcast %cst_14 : f32 to vector<16x384xf32>
    %20 = arith.select %16, %18, %19 : vector<16x384xi1>, vector<16x384xf32>
    %c0_15 = arith.constant 0 : index
    %c0_16 = arith.constant 0 : index
    %21 = vector.load %arg7[%c0_15, %c0_16] : memref<16x384xf32, #tpu.memory_space<vmem>>, vector<16x384xf32>
    tpu.vector_store %arg7[%c0_15, %c0_16], %20 {strides = array<i32>} : memref<16x384xf32, #tpu.memory_space<vmem>>, vector<16x384xf32>,
    return
  }
  func.func @transform_0(%arg0: i32) -> (i32, i32) {
    %c0_i32 = arith.constant 0 : i32
    %c0_i32_0 = arith.constant 0 : i32
    return %arg0, %c0_i32 : i32, i32
  }
  func.func @transform_1(%arg0: i32) -> (i32, i32) {
    %c0_i32 = arith.constant 0 : i32
    %c0_i32_0 = arith.constant 0 : i32
    %c0_i32_1 = arith.constant 0 : i32
    return %c0_i32, %c0_i32_0 : i32, i32
  }
  func.func @transform_2(%arg0: i32) -> (i32, i32) {
    %c0_i32 = arith.constant 0 : i32
    %c0_i32_0 = arith.constant 0 : i32
    %c0_i32_1 = arith.constant 0 : i32
    return %c0_i32, %c0_i32_0 : i32, i32
  }
  func.func @transform_3(%arg0: i32) -> (i32, i32) {
    %c0_i32 = arith.constant 0 : i32
    %c0_i32_0 = arith.constant 0 : i32
    %c0_i32_1 = arith.constant 0 : i32
    return %c0_i32, %c0_i32_0 : i32, i32
  }
  func.func @transform_4(%arg0: i32) -> (i32, i32) {
    %c0_i32 = arith.constant 0 : i32
    %c0_i32_0 = arith.constant 0 : i32
    %c0_i32_1 = arith.constant 0 : i32
    return %c0_i32, %c0_i32_0 : i32, i32
  }
  func.func @transform_5(%arg0: i32) -> (i32, i32) {
    %c0_i32 = arith.constant 0 : i32
    %c0_i32_0 = arith.constant 0 : i32
    return %arg0, %c0_i32 : i32, i32
  }
  func.func @transform_6(%arg0: i32) -> (i32, i32) {
    %c0_i32 = arith.constant 0 : i32
    %c0_i32_0 = arith.constant 0 : i32
    return %arg0, %c0_i32 : i32, i32
  }
}

</mosaic_0001>

<llo_original>
// kernel: tpu_custom_call.1
$region0: #{tpu_custom_call.1}
  #allocation0 [shape = 'u32[]', space=smem, size = 0x4, offset = 0x4, fixed_abs, tag = 'smem constant byte address 0x4 - core index']
  #allocation1 [shape = 'u32[144,128]{1,0:T(1,128)}', space=vmem, size = 0x12000, scoped, tag = 'internal scratch']
  %s0 = inlined_call_operand.hbm [shape: bf16[16,384], index: 0, kind: input, shape index: {}]
  %s1 = inlined_call_operand.hbm [shape: bf16[384,1536], index: 1, kind: input, shape index: {}]
  %s2 = inlined_call_operand.hbm [shape: f32[1,1536], index: 2, kind: input, shape index: {}]
  %s3 = inlined_call_operand.hbm [shape: bf16[1536,384], index: 3, kind: input, shape index: {}]
  %s4 = inlined_call_operand.hbm [shape: f32[1,384], index: 4, kind: input, shape index: {}]
  %s5 = inlined_call_operand.hbm [shape: u32[16,384], index: 5, kind: input, shape index: {}]
  %s6 = inlined_call_operand.hbm [shape: f32[16,384], index: 6, kind: output, shape index: {}]
  %s7 = sld [smem:[#allocation0]]
  $region58: #{tpu_custom_call.1} parent=0
    _
  %s9 = ssub.s32 1, %s7
  %s10 = scalar_select 0, %s9, %s7
  $region1: #{tpu_custom_call.1} parent=0
    #allocation2 [shape = 'u8[12288]{0}', space=vmem, size = 0x3000, scoped, tag = 'input window, operand 0, single buffered']
    #allocation3 [shape = 's32[1]{0}', space=sflag, size = 0x4, scoped, tag = 'scoped memory for tpu_custom_call.1']
    #allocation4 [shape = 's32[1]{0}', space=sflag, size = 0x4, scoped, tag = 'scoped memory for tpu_custom_call.1']
    #allocation5 [shape = 'u8[1179648]{0}', space=vmem, size = 0x120000, scoped, tag = 'input window, operand 1, single buffered']
    #allocation6 [shape = 's32[1]{0}', space=sflag, size = 0x4, scoped, tag = 'scoped memory for tpu_custom_call.1']
    #allocation7 [shape = 'u8[6144]{0}', space=vmem, size = 0x1800, scoped, tag = 'input window, operand 2, single buffered']
    #allocation8 [shape = 'u8[1179648]{0}', space=vmem, size = 0x120000, scoped, tag = 'input window, operand 3, single buffered']
    #allocation9 [shape = 's32[1]{0}', space=sflag, size = 0x4, scoped, tag = 'scoped memory for tpu_custom_call.1']
    #allocation10 [shape = 'u8[1536]{0}', space=vmem, size = 0x800, scoped, tag = 'input window, operand 4, single buffered']
    #allocation11 [shape = 'u8[24576]{0}', space=vmem, size = 0x6000, scoped, tag = 'input window, operand 5, single buffered']
    #allocation12 [shape = 's32[1]{0}', space=sflag, size = 0x4, scoped, tag = 'scoped memory for tpu_custom_call.1']
    #allocation13 [shape = 'u8[24576]{0}', space=vmem, size = 0x6000, scoped, tag = 'output window, operand 0, single buffered']
    %11 = vsyncpa [#allocation3], 0
    %12 = vsyncpa [#allocation6], 0
    %13 = vsyncpa [#allocation9], 0
    %14 = vsyncpa [#allocation12], 0
    %15 = vsyncpa [#allocation4], 0
    // Predicated region
    $region2: #{tpu_custom_call.1} parent=1 // pred_check
      _
    $region3: #{tpu_custom_call.1} parent=1 // pred_check_branch
      %17 = sbr.rel (0) target = $region5
    $region4: #{tpu_custom_call.1} parent=1 // pred_region
      %s19 = ssub.s32 384, 384
      %20 = vsyncadd [#allocation3], %s19
      %s21 = sshll.u32 [#allocation2], 4
      %s22 = int_to_ptr.vmem [resolvable:$true] %s21
      %27 = dma.hbm_to_vmem [thread:$0]  %s0, 384, %s22, [#allocation3], 192, 192, 12
    $region5: #{tpu_custom_call.1} parent=1 // pred_fallthru
      _
    // Predicated region
    $region6: #{tpu_custom_call.1} parent=1 // pred_check
      _
    $region7: #{tpu_custom_call.1} parent=1 // pred_check_branch
      %29 = sbr.rel (0) target = $region9
    $region8: #{tpu_custom_call.1} parent=1 // pred_region
      %s31 = ssub.s32 36864, 36864
      %32 = vsyncadd [#allocation6], %s31
      %s33 = sshll.u32 [#allocation5], 4
      %s34 = int_to_ptr.vmem [resolvable:$true] %s33
      %39 = dma.hbm_to_vmem [thread:$0]  %s1, 36864, %s34, [#allocation6], 768, 768, 48
    $region9: #{tpu_custom_call.1} parent=1 // pred_fallthru
      _
    // Predicated region
    $region10: #{tpu_custom_call.1} parent=1 // pred_check
      _
    $region11: #{tpu_custom_call.1} parent=1 // pred_check_branch
      %41 = sbr.rel (0) target = $region13
    $region12: #{tpu_custom_call.1} parent=1 // pred_region
      %s43 = ssub.s32 192, 192
      %44 = vsyncadd [#allocation6], %s43
      %s46 = sshll.u32 [#allocation7], 4
      %s47 = int_to_ptr.vmem [resolvable:$true] %s46
      %49 = dma.hbm_to_vmem [thread:$0]  %s2, 192, %s47, [#allocation6]
    $region13: #{tpu_custom_call.1} parent=1 // pred_fallthru
      _
    // Predicated region
    $region14: #{tpu_custom_call.1} parent=1 // pred_check
      _
    $region15: #{tpu_custom_call.1} parent=1 // pred_check_branch
      %51 = sbr.rel (0) target = $region17
    $region16: #{tpu_custom_call.1} parent=1 // pred_region
      %s53 = ssub.s32 36864, 36864
      %54 = vsyncadd [#allocation9], %s53
      %s55 = sshll.u32 [#allocation8], 4
      %s56 = int_to_ptr.vmem [resolvable:$true] %s55
      %61 = dma.hbm_to_vmem [thread:$0]  %s3, 36864, %s56, [#allocation9], 192, 192, 12
    $region17: #{tpu_custom_call.1} parent=1 // pred_fallthru
      _
    // Predicated region
    $region18: #{tpu_custom_call.1} parent=1 // pred_check
      _
    $region19: #{tpu_custom_call.1} parent=1 // pred_check_branch
      %63 = sbr.rel (0) target = $region21
    $region20: #{tpu_custom_call.1} parent=1 // pred_region
      %s65 = ssub.s32 48, 48
      %66 = vsyncadd [#allocation9], %s65
      %s68 = sshll.u32 [#allocation10], 4
      %s69 = int_to_ptr.vmem [resolvable:$true] %s68
      %71 = dma.hbm_to_vmem [thread:$0]  %s4, 48, %s69, [#allocation9]
    $region21: #{tpu_custom_call.1} parent=1 // pred_fallthru
      _
    // Predicated region
    $region22: #{tpu_custom_call.1} parent=1 // pred_check
      _
    $region23: #{tpu_custom_call.1} parent=1 // pred_check_branch
      %73 = sbr.rel (0) target = $region25
    $region24: #{tpu_custom_call.1} parent=1 // pred_region
      %s75 = ssub.s32 768, 768
      %76 = vsyncadd [#allocation12], %s75
      %s77 = sshll.u32 [#allocation11], 4
      %s78 = int_to_ptr.vmem [resolvable:$true] %s77
      %83 = dma.hbm_to_vmem [thread:$0]  %s5, 768, %s78, [#allocation12], 384, 384, 24
    $region25: #{tpu_custom_call.1} parent=1 // pred_fallthru
      _
    // Predicated region
    $region26: #{tpu_custom_call.1} parent=1 // pred_check
      _
    $region27: #{tpu_custom_call.1} parent=1 // pred_check_branch
      %85 = sbr.rel (0) target = $region29
    $region28: #{tpu_custom_call.1} parent=1 // pred_region
      %86 = dma.done [#allocation3], 384
    $region29: #{tpu_custom_call.1} parent=1 // pred_fallthru
      _
    // Predicated region
    $region30: #{tpu_custom_call.1} parent=1 // pred_check
      _
    $region31: #{tpu_custom_call.1} parent=1 // pred_check_branch
      %88 = sbr.rel (0) target = $region33
    $region32: #{tpu_custom_call.1} parent=1 // pred_region
      %89 = dma.done [#allocation6], 36864
    $region33: #{tpu_custom_call.1} parent=1 // pred_fallthru
      _
    // Predicated region
    $region34: #{tpu_custom_call.1} parent=1 // pred_check
      _
    $region35: #{tpu_custom_call.1} parent=1 // pred_check_branch
      %91 = sbr.rel (0) target = $region37
    $region36: #{tpu_custom_call.1} parent=1 // pred_region
      %92 = dma.done [#allocation6], 192
    $region37: #{tpu_custom_call.1} parent=1 // pred_fallthru
      _
    // Predicated region
    $region38: #{tpu_custom_call.1} parent=1 // pred_check
      _
    $region39: #{tpu_custom_call.1} parent=1 // pred_check_branch
      %94 = sbr.rel (0) target = $region41
    $region40: #{tpu_custom_call.1} parent=1 // pred_region
      %95 = dma.done [#allocation9], 36864
    $region41: #{tpu_custom_call.1} parent=1 // pred_fallthru
      _
    // Predicated region
    $region42: #{tpu_custom_call.1} parent=1 // pred_check
      _
    $region43: #{tpu_custom_call.1} parent=1 // pred_check_branch
      %97 = sbr.rel (0) target = $region45
    $region44: #{tpu_custom_call.1} parent=1 // pred_region
      %98 = dma.done [#allocation9], 48
    $region45: #{tpu_custom_call.1} parent=1 // pred_fallthru
      _
    // Predicated region
    $region46: #{tpu_custom_call.1} parent=1 // pred_check
      _
    $region47: #{tpu_custom_call.1} parent=1 // pred_check_branch
      %100 = sbr.rel (0) target = $region49
    $region48: #{tpu_custom_call.1} parent=1 // pred_region
      %101 = dma.done [#allocation12], 768
    $region49: #{tpu_custom_call.1} parent=1 // pred_fallthru
      _
    %v103 = vld [vmem:[#allocation2] sm:$0xff]
    %v104 = vld [vmem:[#allocation2 + $0x8] sm:$0xf]
    %v105 = vld [vmem:[#allocation2 + $0xc] sm:$0xff]
    %v106 = vld [vmem:[#allocation2 + $0x14] sm:$0xf]
    %v107 = vld [vmem:[#allocation5] sm:$0xff]
    %v108 = vld [vmem:[#allocation5 + $0x8] sm:$0xff]
    %v109 = vld [vmem:[#allocation5 + $0x10] sm:$0xff]
    %v110 = vld [vmem:[#allocation5 + $0x18] sm:$0xff]
    %v111 = vld [vmem:[#allocation5 + $0x20] sm:$0xff]
    %v112 = vld [vmem:[#allocation5 + $0x28] sm:$0xff]
    %v113 = vld [vmem:[#allocation5 + $0x30] sm:$0xff]
    %v114 = vld [vmem:[#allocation5 + $0x38] sm:$0xff]
    %v115 = vld [vmem:[#allocation5 + $0x40] sm:$0xff]
    %v116 = vld [vmem:[#allocation5 + $0x48] sm:$0xff]
    %v117 = vld [vmem:[#allocation5 + $0x50] sm:$0xff]
    %v118 = vld [vmem:[#allocation5 + $0x58] sm:$0xff]
    %v119 = vld [vmem:[#allocation5 + $0x60] sm:$0xff]
    %v120 = vld [vmem:[#allocation5 + $0x68] sm:$0xff]
    %v121 = vld [vmem:[#allocation5 + $0x70] sm:$0xff]
    %v122 = vld [vmem:[#allocation5 + $0x78] sm:$0xff]
    %v123 = vld [vmem:[#allocation5 + $0x80] sm:$0xff]
    %v124 = vld [vmem:[#allocation5 + $0x88] sm:$0xff]
    %v125 = vld [vmem:[#allocation5 + $0x90] sm:$0xff]
    %v126 = vld [vmem:[#allocation5 + $0x98] sm:$0xff]
    %v127 = vld [vmem:[#allocation5 + $0xa0] sm:$0xff]
    %v128 = vld [vmem:[#allocation5 + $0xa8] sm:$0xff]
    %v129 = vld [vmem:[#allocation5 + $0xb0] sm:$0xff]
    %v130 = vld [vmem:[#allocation5 + $0xb8] sm:$0xff]
    %v131 = vld [vmem:[#allocation5 + $0xc0] sm:$0xff]
    %v132 = vld [vmem:[#allocation5 + $0xc8] sm:$0xff]
    %v133 = vld [vmem:[#allocation5 + $0xd0] sm:$0xff]
    %v134 = vld [vmem:[#allocation5 + $0xd8] sm:$0xff]
    %v135 = vld [vmem:[#allocation5 + $0xe0] sm:$0xff]
    %v136 = vld [vmem:[#allocation5 + $0xe8] sm:$0xff]
    %v137 = vld [vmem:[#allocation5 + $0xf0] sm:$0xff]
    %v138 = vld [vmem:[#allocation5 + $0xf8] sm:$0xff]
    %v139 = vld [vmem:[#allocation5 + $0x100] sm:$0xff]
    %v140 = vld [vmem:[#allocation5 + $0x108] sm:$0xff]
    %v141 = vld [vmem:[#allocation5 + $0x110] sm:$0xff]
    %v142 = vld [vmem:[#allocation5 + $0x118] sm:$0xff]
    %v143 = vld [vmem:[#allocation5 + $0x120] sm:$0xff]
    %v144 = vld [vmem:[#allocation5 + $0x128] sm:$0xff]
    %v145 = vld [vmem:[#allocation5 + $0x130] sm:$0xff]
    %v146 = vld [vmem:[#allocation5 + $0x138] sm:$0xff]
    %v147 = vld [vmem:[#allocation5 + $0x140] sm:$0xff]
    %v148 = vld [vmem:[#allocation5 + $0x148] sm:$0xff]
    %v149 = vld [vmem:[#allocation5 + $0x150] sm:$0xff]
    %v150 = vld [vmem:[#allocation5 + $0x158] sm:$0xff]
    %v151 = vld [vmem:[#allocation5 + $0x160] sm:$0xff]
    %v152 = vld [vmem:[#allocation5 + $0x168] sm:$0xff]
    %v153 = vld [vmem:[#allocation5 + $0x170] sm:$0xff]
    %v154 = vld [vmem:[#allocation5 + $0x178] sm:$0xff]
    %v155 = vld [vmem:[#allocation5 + $0x180] sm:$0xff]
    %v156 = vld [vmem:[#allocation5 + $0x188] sm:$0xff]
    %v157 = vld [vmem:[#allocation5 + $0x190] sm:$0xff]
    %v158 = vld [vmem:[#allocation5 + $0x198] sm:$0xff]
    %v159 = vld [vmem:[#allocation5 + $0x1a0] sm:$0xff]
    %v160 = vld [vmem:[#allocation5 + $0x1a8] sm:$0xff]
    %v161 = vld [vmem:[#allocation5 + $0x1b0] sm:$0xff]
    %v162 = vld [vmem:[#allocation5 + $0x1b8] sm:$0xff]
    %v163 = vld [vmem:[#allocation5 + $0x1c0] sm:$0xff]
    %v164 = vld [vmem:[#allocation5 + $0x1c8] sm:$0xff]
    %v165 = vld [vmem:[#allocation5 + $0x1d0] sm:$0xff]
    %v166 = vld [vmem:[#allocation5 + $0x1d8] sm:$0xff]
    %v167 = vld [vmem:[#allocation5 + $0x1e0] sm:$0xff]
    %v168 = vld [vmem:[#allocation5 + $0x1e8] sm:$0xff]
    %v169 = vld [vmem:[#allocation5 + $0x1f0] sm:$0xff]
    %v170 = vld [vmem:[#allocation5 + $0x1f8] sm:$0xff]
    %v171 = vld [vmem:[#allocation5 + $0x200] sm:$0xff]
    %v172 = vld [vmem:[#allocation5 + $0x208] sm:$0xff]
    %v173 = vld [vmem:[#allocation5 + $0x210] sm:$0xff]
    %v174 = vld [vmem:[#allocation5 + $0x218] sm:$0xff]
    %v175 = vld [vmem:[#allocation5 + $0x220] sm:$0xff]
    %v176 = vld [vmem:[#allocation5 + $0x228] sm:$0xff]
    %v177 = vld [vmem:[#allocation5 + $0x230] sm:$0xff]
    %v178 = vld [vmem:[#allocation5 + $0x238] sm:$0xff]
    %v179 = vld [vmem:[#allocation5 + $0x240] sm:$0xff]
    %v180 = vld [vmem:[#allocation5 + $0x248] sm:$0xff]
    %v181 = vld [vmem:[#allocation5 + $0x250] sm:$0xff]
    %v182 = vld [vmem:[#allocation5 + $0x258] sm:$0xff]
    %v183 = vld [vmem:[#allocation5 + $0x260] sm:$0xff]
    %v184 = vld [vmem:[#allocation5 + $0x268] sm:$0xff]
    %v185 = vld [vmem:[#allocation5 + $0x270] sm:$0xff]
    %v186 = vld [vmem:[#allocation5 + $0x278] sm:$0xff]
    %v187 = vld [vmem:[#allocation5 + $0x280] sm:$0xff]
    %v188 = vld [vmem:[#allocation5 + $0x288] sm:$0xff]
    %v189 = vld [vmem:[#allocation5 + $0x290] sm:$0xff]
    %v190 = vld [vmem:[#allocation5 + $0x298] sm:$0xff]
    %v191 = vld [vmem:[#allocation5 + $0x2a0] sm:$0xff]
    %v192 = vld [vmem:[#allocation5 + $0x2a8] sm:$0xff]
    %v193 = vld [vmem:[#allocation5 + $0x2b0] sm:$0xff]
    %v194 = vld [vmem:[#allocation5 + $0x2b8] sm:$0xff]
    %v195 = vld [vmem:[#allocation5 + $0x2c0] sm:$0xff]
    %v196 = vld [vmem:[#allocation5 + $0x2c8] sm:$0xff]
    %v197 = vld [vmem:[#allocation5 + $0x2d0] sm:$0xff]
    %v198 = vld [vmem:[#allocation5 + $0x2d8] sm:$0xff]
    %v199 = vld [vmem:[#allocation5 + $0x2e0] sm:$0xff]
    %v200 = vld [vmem:[#allocation5 + $0x2e8] sm:$0xff]
    %v201 = vld [vmem:[#allocation5 + $0x2f0] sm:$0xff]
    %v202 = vld [vmem:[#allocation5 + $0x2f8] sm:$0xff]
    %v203 = vld [vmem:[#allocation5 + $0x300] sm:$0xff]
    %v204 = vld [vmem:[#allocation5 + $0x308] sm:$0xff]
    %v205 = vld [vmem:[#allocation5 + $0x310] sm:$0xff]
    %v206 = vld [vmem:[#allocation5 + $0x318] sm:$0xff]
    %v207 = vld [vmem:[#allocation5 + $0x320] sm:$0xff]
    %v208 = vld [vmem:[#allocation5 + $0x328] sm:$0xff]
    %v209 = vld [vmem:[#allocation5 + $0x330] sm:$0xff]
    %v210 = vld [vmem:[#allocation5 + $0x338] sm:$0xff]
    %v211 = vld [vmem:[#allocation5 + $0x340] sm:$0xff]
    %v212 = vld [vmem:[#allocation5 + $0x348] sm:$0xff]
    %v213 = vld [vmem:[#allocation5 + $0x350] sm:$0xff]
    %v214 = vld [vmem:[#allocation5 + $0x358] sm:$0xff]
    %v215 = vld [vmem:[#allocation5 + $0x360] sm:$0xff]
    %v216 = vld [vmem:[#allocation5 + $0x368] sm:$0xff]
    %v217 = vld [vmem:[#allocation5 + $0x370] sm:$0xff]
    %v218 = vld [vmem:[#allocation5 + $0x378] sm:$0xff]
    %v219 = vld [vmem:[#allocation5 + $0x380] sm:$0xff]
    %v220 = vld [vmem:[#allocation5 + $0x388] sm:$0xff]
    %v221 = vld [vmem:[#allocation5 + $0x390] sm:$0xff]
    %v222 = vld [vmem:[#allocation5 + $0x398] sm:$0xff]
    %v223 = vld [vmem:[#allocation5 + $0x3a0] sm:$0xff]
    %v224 = vld [vmem:[#allocation5 + $0x3a8] sm:$0xff]
    %v225 = vld [vmem:[#allocation5 + $0x3b0] sm:$0xff]
    %v226 = vld [vmem:[#allocation5 + $0x3b8] sm:$0xff]
    %v227 = vld [vmem:[#allocation5 + $0x3c0] sm:$0xff]
    %v228 = vld [vmem:[#allocation5 + $0x3c8] sm:$0xff]
    %v229 = vld [vmem:[#allocation5 + $0x3d0] sm:$0xff]
    %v230 = vld [vmem:[#allocation5 + $0x3d8] sm:$0xff]
    %v231 = vld [vmem:[#allocation5 + $0x3e0] sm:$0xff]
    %v232 = vld [vmem:[#allocation5 + $0x3e8] sm:$0xff]
    %v233 = vld [vmem:[#allocation5 + $0x3f0] sm:$0xff]
    %v234 = vld [vmem:[#allocation5 + $0x3f8] sm:$0xff]
    %v235 = vld [vmem:[#allocation5 + $0x400] sm:$0xff]
    %v236 = vld [vmem:[#allocation5 + $0x408] sm:$0xff]
    %v237 = vld [vmem:[#allocation5 + $0x410] sm:$0xff]
    %v238 = vld [vmem:[#allocation5 + $0x418] sm:$0xff]
    %v239 = vld [vmem:[#allocation5 + $0x420] sm:$0xff]
    %v240 = vld [vmem:[#allocation5 + $0x428] sm:$0xff]
    %v241 = vld [vmem:[#allocation5 + $0x430] sm:$0xff]
    %v242 = vld [vmem:[#allocation5 + $0x438] sm:$0xff]
    %v243 = vld [vmem:[#allocation5 + $0x440] sm:$0xff]
    %v244 = vld [vmem:[#allocation5 + $0x448] sm:$0xff]
    %v245 = vld [vmem:[#allocation5 + $0x450] sm:$0xff]
    %v246 = vld [vmem:[#allocation5 + $0x458] sm:$0xff]
    %v247 = vld [vmem:[#allocation5 + $0x460] sm:$0xff]
    %v248 = vld [vmem:[#allocation5 + $0x468] sm:$0xff]
    %v249 = vld [vmem:[#allocation5 + $0x470] sm:$0xff]
    %v250 = vld [vmem:[#allocation5 + $0x478] sm:$0xff]
    %v251 = vld [vmem:[#allocation5 + $0x480] sm:$0xff]
    %v252 = vld [vmem:[#allocation5 + $0x488] sm:$0xff]
    %v253 = vld [vmem:[#allocation5 + $0x490] sm:$0xff]
    %v254 = vld [vmem:[#allocation5 + $0x498] sm:$0xff]
    %v255 = vld [vmem:[#allocation5 + $0x4a0] sm:$0xff]
    %v256 = vld [vmem:[#allocation5 + $0x4a8] sm:$0xff]
    %v257 = vld [vmem:[#allocation5 + $0x4b0] sm:$0xff]
    %v258 = vld [vmem:[#allocation5 + $0x4b8] sm:$0xff]
    %v259 = vld [vmem:[#allocation5 + $0x4c0] sm:$0xff]
    %v260 = vld [vmem:[#allocation5 + $0x4c8] sm:$0xff]
    %v261 = vld [vmem:[#allocation5 + $0x4d0] sm:$0xff]
    %v262 = vld [vmem:[#allocation5 + $0x4d8] sm:$0xff]
    %v263 = vld [vmem:[#allocation5 + $0x4e0] sm:$0xff]
    %v264 = vld [vmem:[#allocation5 + $0x4e8] sm:$0xff]
    %v265 = vld [vmem:[#allocation5 + $0x4f0] sm:$0xff]
    %v266 = vld [vmem:[#allocation5 + $0x4f8] sm:$0xff]
    %v267 = vld [vmem:[#allocation5 + $0x500] sm:$0xff]
    %v268 = vld [vmem:[#allocation5 + $0x508] sm:$0xff]
    %v269 = vld [vmem:[#allocation5 + $0x510] sm:$0xff]
    %v270 = vld [vmem:[#allocation5 + $0x518] sm:$0xff]
    %v271 = vld [vmem:[#allocation5 + $0x520] sm:$0xff]
    %v272 = vld [vmem:[#allocation5 + $0x528] sm:$0xff]
    %v273 = vld [vmem:[#allocation5 + $0x530] sm:$0xff]
    %v274 = vld [vmem:[#allocation5 + $0x538] sm:$0xff]
    %v275 = vld [vmem:[#allocation5 + $0x540] sm:$0xff]
    %v276 = vld [vmem:[#allocation5 + $0x548] sm:$0xff]
    %v277 = vld [vmem:[#allocation5 + $0x550] sm:$0xff]
    %v278 = vld [vmem:[#allocation5 + $0x558] sm:$0xff]
    %v279 = vld [vmem:[#allocation5 + $0x560] sm:$0xff]
    %v280 = vld [vmem:[#allocation5 + $0x568] sm:$0xff]
    %v281 = vld [vmem:[#allocation5 + $0x570] sm:$0xff]
    %v282 = vld [vmem:[#allocation5 + $0x578] sm:$0xff]
    %v283 = vld [vmem:[#allocation5 + $0x580] sm:$0xff]
    %v284 = vld [vmem:[#allocation5 + $0x588] sm:$0xff]
    %v285 = vld [vmem:[#allocation5 + $0x590] sm:$0xff]
    %v286 = vld [vmem:[#allocation5 + $0x598] sm:$0xff]
    %v287 = vld [vmem:[#allocation5 + $0x5a0] sm:$0xff]
    %v288 = vld [vmem:[#allocation5 + $0x5a8] sm:$0xff]
    %v289 = vld [vmem:[#allocation5 + $0x5b0] sm:$0xff]
    %v290 = vld [vmem:[#allocation5 + $0x5b8] sm:$0xff]
    %v291 = vld [vmem:[#allocation5 + $0x5c0] sm:$0xff]
    %v292 = vld [vmem:[#allocation5 + $0x5c8] sm:$0xff]
    %v293 = vld [vmem:[#allocation5 + $0x5d0] sm:$0xff]
    %v294 = vld [vmem:[#allocation5 + $0x5d8] sm:$0xff]
    %v295 = vld [vmem:[#allocation5 + $0x5e0] sm:$0xff]
    %v296 = vld [vmem:[#allocation5 + $0x5e8] sm:$0xff]
    %v297 = vld [vmem:[#allocation5 + $0x5f0] sm:$0xff]
    %v298 = vld [vmem:[#allocation5 + $0x5f8] sm:$0xff]
    %v299 = vld [vmem:[#allocation5 + $0x600] sm:$0xff]
    %v300 = vld [vmem:[#allocation5 + $0x608] sm:$0xff]
    %v301 = vld [vmem:[#allocation5 + $0x610] sm:$0xff]
    %v302 = vld [vmem:[#allocation5 + $0x618] sm:$0xff]
    %v303 = vld [vmem:[#allocation5 + $0x620] sm:$0xff]
    %v304 = vld [vmem:[#allocation5 + $0x628] sm:$0xff]
    %v305 = vld [vmem:[#allocation5 + $0x630] sm:$0xff]
    %v306 = vld [vmem:[#allocation5 + $0x638] sm:$0xff]
    %v307 = vld [vmem:[#allocation5 + $0x640] sm:$0xff]
    %v308 = vld [vmem:[#allocation5 + $0x648] sm:$0xff]
    %v309 = vld [vmem:[#allocation5 + $0x650] sm:$0xff]
    %v310 = vld [vmem:[#allocation5 + $0x658] sm:$0xff]
    %v311 = vld [vmem:[#allocation5 + $0x660] sm:$0xff]
    %v312 = vld [vmem:[#allocation5 + $0x668] sm:$0xff]
    %v313 = vld [vmem:[#allocation5 + $0x670] sm:$0xff]
    %v314 = vld [vmem:[#allocation5 + $0x678] sm:$0xff]
    %v315 = vld [vmem:[#allocation5 + $0x680] sm:$0xff]
    %v316 = vld [vmem:[#allocation5 + $0x688] sm:$0xff]
    %v317 = vld [vmem:[#allocation5 + $0x690] sm:$0xff]
    %v318 = vld [vmem:[#allocation5 + $0x698] sm:$0xff]
    %v319 = vld [vmem:[#allocation5 + $0x6a0] sm:$0xff]
    %v320 = vld [vmem:[#allocation5 + $0x6a8] sm:$0xff]
    %v321 = vld [vmem:[#allocation5 + $0x6b0] sm:$0xff]
    %v322 = vld [vmem:[#allocation5 + $0x6b8] sm:$0xff]
    %v323 = vld [vmem:[#allocation5 + $0x6c0] sm:$0xff]
    %v324 = vld [vmem:[#allocation5 + $0x6c8] sm:$0xff]
    %v325 = vld [vmem:[#allocation5 + $0x6d0] sm:$0xff]
    %v326 = vld [vmem:[#allocation5 + $0x6d8] sm:$0xff]
    %v327 = vld [vmem:[#allocation5 + $0x6e0] sm:$0xff]
    %v328 = vld [vmem:[#allocation5 + $0x6e8] sm:$0xff]
    %v329 = vld [vmem:[#allocation5 + $0x6f0] sm:$0xff]
    %v330 = vld [vmem:[#allocation5 + $0x6f8] sm:$0xff]
    %v331 = vld [vmem:[#allocation5 + $0x700] sm:$0xff]
    %v332 = vld [vmem:[#allocation5 + $0x708] sm:$0xff]
    %v333 = vld [vmem:[#allocation5 + $0x710] sm:$0xff]
    %v334 = vld [vmem:[#allocation5 + $0x718] sm:$0xff]
    %v335 = vld [vmem:[#allocation5 + $0x720] sm:$0xff]
    %v336 = vld [vmem:[#allocation5 + $0x728] sm:$0xff]
    %v337 = vld [vmem:[#allocation5 + $0x730] sm:$0xff]
    %v338 = vld [vmem:[#allocation5 + $0x738] sm:$0xff]
    %v339 = vld [vmem:[#allocation5 + $0x740] sm:$0xff]
    %v340 = vld [vmem:[#allocation5 + $0x748] sm:$0xff]
    %v341 = vld [vmem:[#allocation5 + $0x750] sm:$0xff]
    %v342 = vld [vmem:[#allocation5 + $0x758] sm:$0xff]
    %v343 = vld [vmem:[#allocation5 + $0x760] sm:$0xff]
    %v344 = vld [vmem:[#allocation5 + $0x768] sm:$0xff]
    %v345 = vld [vmem:[#allocation5 + $0x770] sm:$0xff]
    %v346 = vld [vmem:[#allocation5 + $0x778] sm:$0xff]
    %v347 = vld [vmem:[#allocation5 + $0x780] sm:$0xff]
    %v348 = vld [vmem:[#allocation5 + $0x788] sm:$0xff]
    %v349 = vld [vmem:[#allocation5 + $0x790] sm:$0xff]
    %v350 = vld [vmem:[#allocation5 + $0x798] sm:$0xff]
    %v351 = vld [vmem:[#allocation5 + $0x7a0] sm:$0xff]
    %v352 = vld [vmem:[#allocation5 + $0x7a8] sm:$0xff]
    %v353 = vld [vmem:[#allocation5 + $0x7b0] sm:$0xff]
    %v354 = vld [vmem:[#allocation5 + $0x7b8] sm:$0xff]
    %v355 = vld [vmem:[#allocation5 + $0x7c0] sm:$0xff]
    %v356 = vld [vmem:[#allocation5 + $0x7c8] sm:$0xff]
    %v357 = vld [vmem:[#allocation5 + $0x7d0] sm:$0xff]
    %v358 = vld [vmem:[#allocation5 + $0x7d8] sm:$0xff]
    %v359 = vld [vmem:[#allocation5 + $0x7e0] sm:$0xff]
    %v360 = vld [vmem:[#allocation5 + $0x7e8] sm:$0xff]
    %v361 = vld [vmem:[#allocation5 + $0x7f0] sm:$0xff]
    %v362 = vld [vmem:[#allocation5 + $0x7f8] sm:$0xff]
    %v363 = vld [vmem:[#allocation5 + $0x800] sm:$0xff]
    %v364 = vld [vmem:[#allocation5 + $0x808] sm:$0xff]
    %v365 = vld [vmem:[#allocation5 + $0x810] sm:$0xff]
    %v366 = vld [vmem:[#allocation5 + $0x818] sm:$0xff]
    %v367 = vld [vmem:[#allocation5 + $0x820] sm:$0xff]
    %v368 = vld [vmem:[#allocation5 + $0x828] sm:$0xff]
    %v369 = vld [vmem:[#allocation5 + $0x830] sm:$0xff]
    %v370 = vld [vmem:[#allocation5 + $0x838] sm:$0xff]
    %v371 = vld [vmem:[#allocation5 + $0x840] sm:$0xff]
    %v372 = vld [vmem:[#allocation5 + $0x848] sm:$0xff]
    %v373 = vld [vmem:[#allocation5 + $0x850] sm:$0xff]
    %v374 = vld [vmem:[#allocation5 + $0x858] sm:$0xff]
    %v375 = vld [vmem:[#allocation5 + $0x860] sm:$0xff]
    %v376 = vld [vmem:[#allocation5 + $0x868] sm:$0xff]
    %v377 = vld [vmem:[#allocation5 + $0x870] sm:$0xff]
    %v378 = vld [vmem:[#allocation5 + $0x878] sm:$0xff]
    %v379 = vld [vmem:[#allocation5 + $0x880] sm:$0xff]
    %v380 = vld [vmem:[#allocation5 + $0x888] sm:$0xff]
    %v381 = vld [vmem:[#allocation5 + $0x890] sm:$0xff]
    %v382 = vld [vmem:[#allocation5 + $0x898] sm:$0xff]
    %v383 = vld [vmem:[#allocation5 + $0x8a0] sm:$0xff]
    %v384 = vld [vmem:[#allocation5 + $0x8a8] sm:$0xff]
    %v385 = vld [vmem:[#allocation5 + $0x8b0] sm:$0xff]
    %v386 = vld [vmem:[#allocation5 + $0x8b8] sm:$0xff]
    %v387 = vld [vmem:[#allocation5 + $0x8c0] sm:$0xff]
    %v388 = vld [vmem:[#allocation5 + $0x8c8] sm:$0xff]
    %v389 = vld [vmem:[#allocation5 + $0x8d0] sm:$0xff]
    %v390 = vld [vmem:[#allocation5 + $0x8d8] sm:$0xff]
    %v391 = vld [vmem:[#allocation5 + $0x8e0] sm:$0xff]
    %v392 = vld [vmem:[#allocation5 + $0x8e8] sm:$0xff]
    %v393 = vld [vmem:[#allocation5 + $0x8f0] sm:$0xff]
    %v394 = vld [vmem:[#allocation5 + $0x8f8] sm:$0xff]
    %v395 = vld [vmem:[#allocation7] sm:$0xff]
    %v396 = vld [vmem:[#allocation7 + $0x8] sm:$0xf]
    %v399 = vlaneseq
    %v400 = vshrl.u32 %v399, 7
    %v401 = vsub.s32 0, %v400
    %v402 = vrot.slane %v395, %v401
    %v403 = vlaneseq
    %v404 = vshrl.u32 %v403, 7
    %v405 = vsub.s32 1, %v404
    %v406 = vrot.slane %v395, %v405
    %v407 = vlaneseq
    %v408 = vshrl.u32 %v407, 7
    %v409 = vsub.s32 2, %v408
    %v410 = vrot.slane %v395, %v409
    %v411 = vlaneseq
    %v412 = vshrl.u32 %v411, 7
    %v413 = vsub.s32 3, %v412
    %v414 = vrot.slane %v395, %v413
    %v415 = vlaneseq
    %v416 = vshrl.u32 %v415, 7
    %v417 = vsub.s32 4, %v416
    %v418 = vrot.slane %v395, %v417
    %v419 = vlaneseq
    %v420 = vshrl.u32 %v419, 7
    %v421 = vsub.s32 5, %v420
    %v422 = vrot.slane %v395, %v421
    %v423 = vlaneseq
    %v424 = vshrl.u32 %v423, 7
    %v425 = vsub.s32 6, %v424
    %v426 = vrot.slane %v395, %v425
    %v427 = vlaneseq
    %v428 = vshrl.u32 %v427, 7
    %v429 = vsub.s32 7, %v428
    %v430 = vrot.slane %v395, %v429
    %v431 = vlaneseq
    %v432 = vshrl.u32 %v431, 7
    %v433 = vsub.s32 0, %v432
    %v434 = vrot.slane %v396, %v433
    %v435 = vlaneseq
    %v436 = vshrl.u32 %v435, 7
    %v437 = vsub.s32 1, %v436
    %v438 = vrot.slane %v396, %v437
    %v439 = vlaneseq
    %v440 = vshrl.u32 %v439, 7
    %v441 = vsub.s32 2, %v440
    %v442 = vrot.slane %v396, %v441
    %v443 = vlaneseq
    %v444 = vshrl.u32 %v443, 7
    %v445 = vsub.s32 3, %v444
    %v446 = vrot.slane %v396, %v445
    %v463 = vunpack.c.l.b16 %v103
    %v464 = vunpack.c.h.b16 %v103
    %v465 = vunpack.c.l.b16 %v104
    %v466 = vunpack.c.l.b16 %v105
    %v467 = vunpack.c.h.b16 %v105
    %v468 = vunpack.c.l.b16 %v106
    %v469 = vpack.c.b16 %v466, %v463
    %v470 = vpack.c.b16 %v467, %v464
    %v471 = vpack.c.b16 %v468, %v465
    %v763 = vunpack.c.l.b16 %v107
    %v764 = vunpack.c.h.b16 %v107
    %v765 = vunpack.c.l.b16 %v108
    %v766 = vunpack.c.h.b16 %v108
    %v767 = vunpack.c.l.b16 %v109
    %v768 = vunpack.c.h.b16 %v109
    %v769 = vunpack.c.l.b16 %v110
    %v770 = vunpack.c.h.b16 %v110
    %v771 = vunpack.c.l.b16 %v111
    %v772 = vunpack.c.h.b16 %v111
    %v773 = vunpack.c.l.b16 %v112
    %v774 = vunpack.c.h.b16 %v112
    %v775 = vunpack.c.l.b16 %v113
    %v776 = vunpack.c.h.b16 %v113
    %v777 = vunpack.c.l.b16 %v114
    %v778 = vunpack.c.h.b16 %v114
    %v779 = vunpack.c.l.b16 %v115
    %v780 = vunpack.c.h.b16 %v115
    %v781 = vunpack.c.l.b16 %v116
    %v782 = vunpack.c.h.b16 %v116
    %v783 = vunpack.c.l.b16 %v117
    %v784 = vunpack.c.h.b16 %v117
    %v785 = vunpack.c.l.b16 %v118
    %v786 = vunpack.c.h.b16 %v118
    %v787 = vunpack.c.l.b16 %v119
    %v788 = vunpack.c.h.b16 %v119
    %v789 = vunpack.c.l.b16 %v120
    %v790 = vunpack.c.h.b16 %v120
    %v791 = vunpack.c.l.b16 %v121
    %v792 = vunpack.c.h.b16 %v121
    %v793 = vunpack.c.l.b16 %v122
    %v794 = vunpack.c.h.b16 %v122
    %v795 = vunpack.c.l.b16 %v123
    %v796 = vunpack.c.h.b16 %v123
    %v797 = vunpack.c.l.b16 %v124
    %v798 = vunpack.c.h.b16 %v124
    %v799 = vunpack.c.l.b16 %v125
    %v800 = vunpack.c.h.b16 %v125
    %v801 = vunpack.c.l.b16 %v126
    %v802 = vunpack.c.h.b16 %v126
    %v803 = vunpack.c.l.b16 %v127
    %v804 = vunpack.c.h.b16 %v127
    %v805 = vunpack.c.l.b16 %v128
    %v806 = vunpack.c.h.b16 %v128
    %v807 = vunpack.c.l.b16 %v129
    %v808 = vunpack.c.h.b16 %v129
    %v809 = vunpack.c.l.b16 %v130
    %v810 = vunpack.c.h.b16 %v130
    %v811 = vunpack.c.l.b16 %v131
    %v812 = vunpack.c.h.b16 %v131
    %v813 = vunpack.c.l.b16 %v132
    %v814 = vunpack.c.h.b16 %v132
    %v815 = vunpack.c.l.b16 %v133
    %v816 = vunpack.c.h.b16 %v133
    %v817 = vunpack.c.l.b16 %v134
    %v818 = vunpack.c.h.b16 %v134
    %v819 = vunpack.c.l.b16 %v135
    %v820 = vunpack.c.h.b16 %v135
    %v821 = vunpack.c.l.b16 %v136
    %v822 = vunpack.c.h.b16 %v136
    %v823 = vunpack.c.l.b16 %v137
    %v824 = vunpack.c.h.b16 %v137
    %v825 = vunpack.c.l.b16 %v138
    %v826 = vunpack.c.h.b16 %v138
    %v827 = vunpack.c.l.b16 %v139
    %v828 = vunpack.c.h.b16 %v139
    %v829 = vunpack.c.l.b16 %v140
    %v830 = vunpack.c.h.b16 %v140
    %v831 = vunpack.c.l.b16 %v141
    %v832 = vunpack.c.h.b16 %v141
    %v833 = vunpack.c.l.b16 %v142
    %v834 = vunpack.c.h.b16 %v142
    %v835 = vunpack.c.l.b16 %v143
    %v836 = vunpack.c.h.b16 %v143
    %v837 = vunpack.c.l.b16 %v144
    %v838 = vunpack.c.h.b16 %v144
    %v839 = vunpack.c.l.b16 %v145
    %v840 = vunpack.c.h.b16 %v145
    %v841 = vunpack.c.l.b16 %v146
    %v842 = vunpack.c.h.b16 %v146
    %v843 = vunpack.c.l.b16 %v147
    %v844 = vunpack.c.h.b16 %v147
    %v845 = vunpack.c.l.b16 %v148
    %v846 = vunpack.c.h.b16 %v148
    %v847 = vunpack.c.l.b16 %v149
    %v848 = vunpack.c.h.b16 %v149
    %v849 = vunpack.c.l.b16 %v150
    %v850 = vunpack.c.h.b16 %v150
    %v851 = vunpack.c.l.b16 %v151
    %v852 = vunpack.c.h.b16 %v151
    %v853 = vunpack.c.l.b16 %v152
    %v854 = vunpack.c.h.b16 %v152
    %v855 = vunpack.c.l.b16 %v153
    %v856 = vunpack.c.h.b16 %v153
    %v857 = vunpack.c.l.b16 %v154
    %v858 = vunpack.c.h.b16 %v154
    %v859 = vunpack.c.l.b16 %v155
    %v860 = vunpack.c.h.b16 %v155
    %v861 = vunpack.c.l.b16 %v156
    %v862 = vunpack.c.h.b16 %v156
    %v863 = vunpack.c.l.b16 %v157
    %v864 = vunpack.c.h.b16 %v157
    %v865 = vunpack.c.l.b16 %v158
    %v866 = vunpack.c.h.b16 %v158
    %v867 = vunpack.c.l.b16 %v159
    %v868 = vunpack.c.h.b16 %v159
    %v869 = vunpack.c.l.b16 %v160
    %v870 = vunpack.c.h.b16 %v160
    %v871 = vunpack.c.l.b16 %v161
    %v872 = vunpack.c.h.b16 %v161
    %v873 = vunpack.c.l.b16 %v162
    %v874 = vunpack.c.h.b16 %v162
    %v875 = vunpack.c.l.b16 %v163
    %v876 = vunpack.c.h.b16 %v163
    %v877 = vunpack.c.l.b16 %v164
    %v878 = vunpack.c.h.b16 %v164
    %v879 = vunpack.c.l.b16 %v165
    %v880 = vunpack.c.h.b16 %v165
    %v881 = vunpack.c.l.b16 %v166
    %v882 = vunpack.c.h.b16 %v166
    %v883 = vunpack.c.l.b16 %v167
    %v884 = vunpack.c.h.b16 %v167
    %v885 = vunpack.c.l.b16 %v168
    %v886 = vunpack.c.h.b16 %v168
    %v887 = vunpack.c.l.b16 %v169
    %v888 = vunpack.c.h.b16 %v169
    %v889 = vunpack.c.l.b16 %v170
    %v890 = vunpack.c.h.b16 %v170
    %v891 = vunpack.c.l.b16 %v171
    %v892 = vunpack.c.h.b16 %v171
    %v893 = vunpack.c.l.b16 %v172
    %v894 = vunpack.c.h.b16 %v172
    %v895 = vunpack.c.l.b16 %v173
    %v896 = vunpack.c.h.b16 %v173
    %v897 = vunpack.c.l.b16 %v174
    %v898 = vunpack.c.h.b16 %v174
    %v899 = vunpack.c.l.b16 %v175
    %v900 = vunpack.c.h.b16 %v175
    %v901 = vunpack.c.l.b16 %v176
    %v902 = vunpack.c.h.b16 %v176
    %v903 = vunpack.c.l.b16 %v177
    %v904 = vunpack.c.h.b16 %v177
    %v905 = vunpack.c.l.b16 %v178
    %v906 = vunpack.c.h.b16 %v178
    %v907 = vunpack.c.l.b16 %v179
    %v908 = vunpack.c.h.b16 %v179
    %v909 = vunpack.c.l.b16 %v180
    %v910 = vunpack.c.h.b16 %v180
    %v911 = vunpack.c.l.b16 %v181
    %v912 = vunpack.c.h.b16 %v181
    %v913 = vunpack.c.l.b16 %v182
    %v914 = vunpack.c.h.b16 %v182
    %v915 = vunpack.c.l.b16 %v183
    %v916 = vunpack.c.h.b16 %v183
    %v917 = vunpack.c.l.b16 %v184
    %v918 = vunpack.c.h.b16 %v184
    %v919 = vunpack.c.l.b16 %v185
    %v920 = vunpack.c.h.b16 %v185
    %v921 = vunpack.c.l.b16 %v186
    %v922 = vunpack.c.h.b16 %v186
    %v923 = vunpack.c.l.b16 %v187
    %v924 = vunpack.c.h.b16 %v187
    %v925 = vunpack.c.l.b16 %v188
    %v926 = vunpack.c.h.b16 %v188
    %v927 = vunpack.c.l.b16 %v189
    %v928 = vunpack.c.h.b16 %v189
    %v929 = vunpack.c.l.b16 %v190
    %v930 = vunpack.c.h.b16 %v190
    %v931 = vunpack.c.l.b16 %v191
    %v932 = vunpack.c.h.b16 %v191
    %v933 = vunpack.c.l.b16 %v192
    %v934 = vunpack.c.h.b16 %v192
    %v935 = vunpack.c.l.b16 %v193
    %v936 = vunpack.c.h.b16 %v193
    %v937 = vunpack.c.l.b16 %v194
    %v938 = vunpack.c.h.b16 %v194
    %v939 = vunpack.c.l.b16 %v195
    %v940 = vunpack.c.h.b16 %v195
    %v941 = vunpack.c.l.b16 %v196
    %v942 = vunpack.c.h.b16 %v196
    %v943 = vunpack.c.l.b16 %v197
    %v944 = vunpack.c.h.b16 %v197
    %v945 = vunpack.c.l.b16 %v198
    %v946 = vunpack.c.h.b16 %v198
    %v947 = vunpack.c.l.b16 %v199
    %v948 = vunpack.c.h.b16 %v199
    %v949 = vunpack.c.l.b16 %v200
    %v950 = vunpack.c.h.b16 %v200
    %v951 = vunpack.c.l.b16 %v201
    %v952 = vunpack.c.h.b16 %v201
    %v953 = vunpack.c.l.b16 %v202
    %v954 = vunpack.c.h.b16 %v202
    %v955 = vunpack.c.l.b16 %v203
    %v956 = vunpack.c.h.b16 %v203
    %v957 = vunpack.c.l.b16 %v204
    %v958 = vunpack.c.h.b16 %v204
    %v959 = vunpack.c.l.b16 %v205
    %v960 = vunpack.c.h.b16 %v205
    %v961 = vunpack.c.l.b16 %v206
    %v962 = vunpack.c.h.b16 %v206
    %v963 = vunpack.c.l.b16 %v207
    %v964 = vunpack.c.h.b16 %v207
    %v965 = vunpack.c.l.b16 %v208
    %v966 = vunpack.c.h.b16 %v208
    %v967 = vunpack.c.l.b16 %v209
    %v968 = vunpack.c.h.b16 %v209
    %v969 = vunpack.c.l.b16 %v210
    %v970 = vunpack.c.h.b16 %v210
    %v971 = vunpack.c.l.b16 %v211
    %v972 = vunpack.c.h.b16 %v211
    %v973 = vunpack.c.l.b16 %v212
    %v974 = vunpack.c.h.b16 %v212
    %v975 = vunpack.c.l.b16 %v213
    %v976 = vunpack.c.h.b16 %v213
    %v977 = vunpack.c.l.b16 %v214
    %v978 = vunpack.c.h.b16 %v214
    %v979 = vunpack.c.l.b16 %v215
    %v980 = vunpack.c.h.b16 %v215
    %v981 = vunpack.c.l.b16 %v216
    %v982 = vunpack.c.h.b16 %v216
    %v983 = vunpack.c.l.b16 %v217
    %v984 = vunpack.c.h.b16 %v217
    %v985 = vunpack.c.l.b16 %v218
    %v986 = vunpack.c.h.b16 %v218
    %v987 = vunpack.c.l.b16 %v219
    %v988 = vunpack.c.h.b16 %v219
    %v989 = vunpack.c.l.b16 %v220
    %v990 = vunpack.c.h.b16 %v220
    %v991 = vunpack.c.l.b16 %v221
    %v992 = vunpack.c.h.b16 %v221
    %v993 = vunpack.c.l.b16 %v222
    %v994 = vunpack.c.h.b16 %v222
    %v995 = vunpack.c.l.b16 %v223
    %v996 = vunpack.c.h.b16 %v223
    %v997 = vunpack.c.l.b16 %v224
    %v998 = vunpack.c.h.b16 %v224
    %v999 = vunpack.c.l.b16 %v225
    %v1000 = vunpack.c.h.b16 %v225
    %v1001 = vunpack.c.l.b16 %v226
    %v1002 = vunpack.c.h.b16 %v226
    %v1003 = vunpack.c.l.b16 %v227
    %v1004 = vunpack.c.h.b16 %v227
    %v1005 = vunpack.c.l.b16 %v228
    %v1006 = vunpack.c.h.b16 %v228
    %v1007 = vunpack.c.l.b16 %v229
    %v1008 = vunpack.c.h.b16 %v229
    %v1009 = vunpack.c.l.b16 %v230
    %v1010 = vunpack.c.h.b16 %v230
    %v1011 = vunpack.c.l.b16 %v231
    %v1012 = vunpack.c.h.b16 %v231
    %v1013 = vunpack.c.l.b16 %v232
    %v1014 = vunpack.c.h.b16 %v232
    %v1015 = vunpack.c.l.b16 %v233
    %v1016 = vunpack.c.h.b16 %v233
    %v1017 = vunpack.c.l.b16 %v234
    %v1018 = vunpack.c.h.b16 %v234
    %v1019 = vunpack.c.l.b16 %v235
    %v1020 = vunpack.c.h.b16 %v235
    %v1021 = vunpack.c.l.b16 %v236
    %v1022 = vunpack.c.h.b16 %v236
    %v1023 = vunpack.c.l.b16 %v237
    %v1024 = vunpack.c.h.b16 %v237
    %v1025 = vunpack.c.l.b16 %v238
    %v1026 = vunpack.c.h.b16 %v238
    %v1027 = vunpack.c.l.b16 %v239
    %v1028 = vunpack.c.h.b16 %v239
    %v1029 = vunpack.c.l.b16 %v240
    %v1030 = vunpack.c.h.b16 %v240
    %v1031 = vunpack.c.l.b16 %v241
    %v1032 = vunpack.c.h.b16 %v241
    %v1033 = vunpack.c.l.b16 %v242
    %v1034 = vunpack.c.h.b16 %v242
    %v1035 = vunpack.c.l.b16 %v243
    %v1036 = vunpack.c.h.b16 %v243
    %v1037 = vunpack.c.l.b16 %v244
    %v1038 = vunpack.c.h.b16 %v244
    %v1039 = vunpack.c.l.b16 %v245
    %v1040 = vunpack.c.h.b16 %v245
    %v1041 = vunpack.c.l.b16 %v246
    %v1042 = vunpack.c.h.b16 %v246
    %v1043 = vunpack.c.l.b16 %v247
    %v1044 = vunpack.c.h.b16 %v247
    %v1045 = vunpack.c.l.b16 %v248
    %v1046 = vunpack.c.h.b16 %v248
    %v1047 = vunpack.c.l.b16 %v249
    %v1048 = vunpack.c.h.b16 %v249
    %v1049 = vunpack.c.l.b16 %v250
    %v1050 = vunpack.c.h.b16 %v250
    %v1051 = vunpack.c.l.b16 %v251
    %v1052 = vunpack.c.h.b16 %v251
    %v1053 = vunpack.c.l.b16 %v252
    %v1054 = vunpack.c.h.b16 %v252
    %v1055 = vunpack.c.l.b16 %v253
    %v1056 = vunpack.c.h.b16 %v253
    %v1057 = vunpack.c.l.b16 %v254
    %v1058 = vunpack.c.h.b16 %v254
    %v1059 = vunpack.c.l.b16 %v255
    %v1060 = vunpack.c.h.b16 %v255
    %v1061 = vunpack.c.l.b16 %v256
    %v1062 = vunpack.c.h.b16 %v256
    %v1063 = vunpack.c.l.b16 %v257
    %v1064 = vunpack.c.h.b16 %v257
    %v1065 = vunpack.c.l.b16 %v258
    %v1066 = vunpack.c.h.b16 %v258
    %v1067 = vunpack.c.l.b16 %v259
    %v1068 = vunpack.c.h.b16 %v259
    %v1069 = vunpack.c.l.b16 %v260
    %v1070 = vunpack.c.h.b16 %v260
    %v1071 = vunpack.c.l.b16 %v261
    %v1072 = vunpack.c.h.b16 %v261
    %v1073 = vunpack.c.l.b16 %v262
    %v1074 = vunpack.c.h.b16 %v262
    %v1075 = vunpack.c.l.b16 %v263
    %v1076 = vunpack.c.h.b16 %v263
    %v1077 = vunpack.c.l.b16 %v264
    %v1078 = vunpack.c.h.b16 %v264
    %v1079 = vunpack.c.l.b16 %v265
    %v1080 = vunpack.c.h.b16 %v265
    %v1081 = vunpack.c.l.b16 %v266
    %v1082 = vunpack.c.h.b16 %v266
    %v1083 = vunpack.c.l.b16 %v267
    %v1084 = vunpack.c.h.b16 %v267
    %v1085 = vunpack.c.l.b16 %v268
    %v1086 = vunpack.c.h.b16 %v268
    %v1087 = vunpack.c.l.b16 %v269
    %v1088 = vunpack.c.h.b16 %v269
    %v1089 = vunpack.c.l.b16 %v270
    %v1090 = vunpack.c.h.b16 %v270
    %v1091 = vunpack.c.l.b16 %v271
    %v1092 = vunpack.c.h.b16 %v271
    %v1093 = vunpack.c.l.b16 %v272
    %v1094 = vunpack.c.h.b16 %v272
    %v1095 = vunpack.c.l.b16 %v273
    %v1096 = vunpack.c.h.b16 %v273
    %v1097 = vunpack.c.l.b16 %v274
    %v1098 = vunpack.c.h.b16 %v274
    %v1099 = vunpack.c.l.b16 %v275
    %v1100 = vunpack.c.h.b16 %v275
    %v1101 = vunpack.c.l.b16 %v276
    %v1102 = vunpack.c.h.b16 %v276
    %v1103 = vunpack.c.l.b16 %v277
    %v1104 = vunpack.c.h.b16 %v277
    %v1105 = vunpack.c.l.b16 %v278
    %v1106 = vunpack.c.h.b16 %v278
    %v1107 = vunpack.c.l.b16 %v279
    %v1108 = vunpack.c.h.b16 %v279
    %v1109 = vunpack.c.l.b16 %v280
    %v1110 = vunpack.c.h.b16 %v280
    %v1111 = vunpack.c.l.b16 %v281
    %v1112 = vunpack.c.h.b16 %v281
    %v1113 = vunpack.c.l.b16 %v282
    %v1114 = vunpack.c.h.b16 %v282
    %v1115 = vunpack.c.l.b16 %v283
    %v1116 = vunpack.c.h.b16 %v283
    %v1117 = vunpack.c.l.b16 %v284
    %v1118 = vunpack.c.h.b16 %v284
    %v1119 = vunpack.c.l.b16 %v285
    %v1120 = vunpack.c.h.b16 %v285
    %v1121 = vunpack.c.l.b16 %v286
    %v1122 = vunpack.c.h.b16 %v286
    %v1123 = vunpack.c.l.b16 %v287
    %v1124 = vunpack.c.h.b16 %v287
    %v1125 = vunpack.c.l.b16 %v288
    %v1126 = vunpack.c.h.b16 %v288
    %v1127 = vunpack.c.l.b16 %v289
    %v1128 = vunpack.c.h.b16 %v289
    %v1129 = vunpack.c.l.b16 %v290
    %v1130 = vunpack.c.h.b16 %v290
    %v1131 = vunpack.c.l.b16 %v291
    %v1132 = vunpack.c.h.b16 %v291
    %v1133 = vunpack.c.l.b16 %v292
    %v1134 = vunpack.c.h.b16 %v292
    %v1135 = vunpack.c.l.b16 %v293
    %v1136 = vunpack.c.h.b16 %v293
    %v1137 = vunpack.c.l.b16 %v294
    %v1138 = vunpack.c.h.b16 %v294
    %v1139 = vunpack.c.l.b16 %v295
    %v1140 = vunpack.c.h.b16 %v295
    %v1141 = vunpack.c.l.b16 %v296
    %v1142 = vunpack.c.h.b16 %v296
    %v1143 = vunpack.c.l.b16 %v297
    %v1144 = vunpack.c.h.b16 %v297
    %v1145 = vunpack.c.l.b16 %v298
    %v1146 = vunpack.c.h.b16 %v298
    %v1147 = vunpack.c.l.b16 %v299
    %v1148 = vunpack.c.h.b16 %v299
    %v1149 = vunpack.c.l.b16 %v300
    %v1150 = vunpack.c.h.b16 %v300
    %v1151 = vunpack.c.l.b16 %v301
    %v1152 = vunpack.c.h.b16 %v301
    %v1153 = vunpack.c.l.b16 %v302
    %v1154 = vunpack.c.h.b16 %v302
    %v1155 = vunpack.c.l.b16 %v303
    %v1156 = vunpack.c.h.b16 %v303
    %v1157 = vunpack.c.l.b16 %v304
    %v1158 = vunpack.c.h.b16 %v304
    %v1159 = vunpack.c.l.b16 %v305
    %v1160 = vunpack.c.h.b16 %v305
    %v1161 = vunpack.c.l.b16 %v306
    %v1162 = vunpack.c.h.b16 %v306
    %v1163 = vunpack.c.l.b16 %v307
    %v1164 = vunpack.c.h.b16 %v307
    %v1165 = vunpack.c.l.b16 %v308
    %v1166 = vunpack.c.h.b16 %v308
    %v1167 = vunpack.c.l.b16 %v309
    %v1168 = vunpack.c.h.b16 %v309
    %v1169 = vunpack.c.l.b16 %v310
    %v1170 = vunpack.c.h.b16 %v310
    %v1171 = vunpack.c.l.b16 %v311
    %v1172 = vunpack.c.h.b16 %v311
    %v1173 = vunpack.c.l.b16 %v312
    %v1174 = vunpack.c.h.b16 %v312
    %v1175 = vunpack.c.l.b16 %v313
    %v1176 = vunpack.c.h.b16 %v313
    %v1177 = vunpack.c.l.b16 %v314
    %v1178 = vunpack.c.h.b16 %v314
    %v1179 = vunpack.c.l.b16 %v315
    %v1180 = vunpack.c.h.b16 %v315
    %v1181 = vunpack.c.l.b16 %v316
    %v1182 = vunpack.c.h.b16 %v316
    %v1183 = vunpack.c.l.b16 %v317
    %v1184 = vunpack.c.h.b16 %v317
    %v1185 = vunpack.c.l.b16 %v318
    %v1186 = vunpack.c.h.b16 %v318
    %v1187 = vunpack.c.l.b16 %v319
    %v1188 = vunpack.c.h.b16 %v319
    %v1189 = vunpack.c.l.b16 %v320
    %v1190 = vunpack.c.h.b16 %v320
    %v1191 = vunpack.c.l.b16 %v321
    %v1192 = vunpack.c.h.b16 %v321
    %v1193 = vunpack.c.l.b16 %v322
    %v1194 = vunpack.c.h.b16 %v322
    %v1195 = vunpack.c.l.b16 %v323
    %v1196 = vunpack.c.h.b16 %v323
    %v1197 = vunpack.c.l.b16 %v324
    %v1198 = vunpack.c.h.b16 %v324
    %v1199 = vunpack.c.l.b16 %v325
    %v1200 = vunpack.c.h.b16 %v325
    %v1201 = vunpack.c.l.b16 %v326
    %v1202 = vunpack.c.h.b16 %v326
    %v1203 = vunpack.c.l.b16 %v327
    %v1204 = vunpack.c.h.b16 %v327
    %v1205 = vunpack.c.l.b16 %v328
    %v1206 = vunpack.c.h.b16 %v328
    %v1207 = vunpack.c.l.b16 %v329
    %v1208 = vunpack.c.h.b16 %v329
    %v1209 = vunpack.c.l.b16 %v330
    %v1210 = vunpack.c.h.b16 %v330
    %v1211 = vunpack.c.l.b16 %v331
    %v1212 = vunpack.c.h.b16 %v331
    %v1213 = vunpack.c.l.b16 %v332
    %v1214 = vunpack.c.h.b16 %v332
    %v1215 = vunpack.c.l.b16 %v333
    %v1216 = vunpack.c.h.b16 %v333
    %v1217 = vunpack.c.l.b16 %v334
    %v1218 = vunpack.c.h.b16 %v334
    %v1219 = vunpack.c.l.b16 %v335
    %v1220 = vunpack.c.h.b16 %v335
    %v1221 = vunpack.c.l.b16 %v336
    %v1222 = vunpack.c.h.b16 %v336
    %v1223 = vunpack.c.l.b16 %v337
    %v1224 = vunpack.c.h.b16 %v337
    %v1225 = vunpack.c.l.b16 %v338
    %v1226 = vunpack.c.h.b16 %v338
    %v1227 = vunpack.c.l.b16 %v339
    %v1228 = vunpack.c.h.b16 %v339
    %v1229 = vunpack.c.l.b16 %v340
    %v1230 = vunpack.c.h.b16 %v340
    %v1231 = vunpack.c.l.b16 %v341
    %v1232 = vunpack.c.h.b16 %v341
    %v1233 = vunpack.c.l.b16 %v342
    %v1234 = vunpack.c.h.b16 %v342
    %v1235 = vunpack.c.l.b16 %v343
    %v1236 = vunpack.c.h.b16 %v343
    %v1237 = vunpack.c.l.b16 %v344
    %v1238 = vunpack.c.h.b16 %v344
    %v1239 = vunpack.c.l.b16 %v345
    %v1240 = vunpack.c.h.b16 %v345
    %v1241 = vunpack.c.l.b16 %v346
    %v1242 = vunpack.c.h.b16 %v346
    %v1243 = vunpack.c.l.b16 %v347
    %v1244 = vunpack.c.h.b16 %v347
    %v1245 = vunpack.c.l.b16 %v348
    %v1246 = vunpack.c.h.b16 %v348
    %v1247 = vunpack.c.l.b16 %v349
    %v1248 = vunpack.c.h.b16 %v349
    %v1249 = vunpack.c.l.b16 %v350
    %v1250 = vunpack.c.h.b16 %v350
    %v1251 = vunpack.c.l.b16 %v351
    %v1252 = vunpack.c.h.b16 %v351
    %v1253 = vunpack.c.l.b16 %v352
    %v1254 = vunpack.c.h.b16 %v352
    %v1255 = vunpack.c.l.b16 %v353
    %v1256 = vunpack.c.h.b16 %v353
    %v1257 = vunpack.c.l.b16 %v354
    %v1258 = vunpack.c.h.b16 %v354
    %v1259 = vunpack.c.l.b16 %v355
    %v1260 = vunpack.c.h.b16 %v355
    %v1261 = vunpack.c.l.b16 %v356
    %v1262 = vunpack.c.h.b16 %v356
    %v1263 = vunpack.c.l.b16 %v357
    %v1264 = vunpack.c.h.b16 %v357
    %v1265 = vunpack.c.l.b16 %v358
    %v1266 = vunpack.c.h.b16 %v358
    %v1267 = vunpack.c.l.b16 %v359
    %v1268 = vunpack.c.h.b16 %v359
    %v1269 = vunpack.c.l.b16 %v360
    %v1270 = vunpack.c.h.b16 %v360
    %v1271 = vunpack.c.l.b16 %v361
    %v1272 = vunpack.c.h.b16 %v361
    %v1273 = vunpack.c.l.b16 %v362
    %v1274 = vunpack.c.h.b16 %v362
    %v1275 = vunpack.c.l.b16 %v363
    %v1276 = vunpack.c.h.b16 %v363
    %v1277 = vunpack.c.l.b16 %v364
    %v1278 = vunpack.c.h.b16 %v364
    %v1279 = vunpack.c.l.b16 %v365
    %v1280 = vunpack.c.h.b16 %v365
    %v1281 = vunpack.c.l.b16 %v366
    %v1282 = vunpack.c.h.b16 %v366
    %v1283 = vunpack.c.l.b16 %v367
    %v1284 = vunpack.c.h.b16 %v367
    %v1285 = vunpack.c.l.b16 %v368
    %v1286 = vunpack.c.h.b16 %v368
    %v1287 = vunpack.c.l.b16 %v369
    %v1288 = vunpack.c.h.b16 %v369
    %v1289 = vunpack.c.l.b16 %v370
    %v1290 = vunpack.c.h.b16 %v370
    %v1291 = vunpack.c.l.b16 %v371
    %v1292 = vunpack.c.h.b16 %v371
    %v1293 = vunpack.c.l.b16 %v372
    %v1294 = vunpack.c.h.b16 %v372
    %v1295 = vunpack.c.l.b16 %v373
    %v1296 = vunpack.c.h.b16 %v373
    %v1297 = vunpack.c.l.b16 %v374
    %v1298 = vunpack.c.h.b16 %v374
    %v1299 = vunpack.c.l.b16 %v375
    %v1300 = vunpack.c.h.b16 %v375
    %v1301 = vunpack.c.l.b16 %v376
    %v1302 = vunpack.c.h.b16 %v376
    %v1303 = vunpack.c.l.b16 %v377
    %v1304 = vunpack.c.h.b16 %v377
    %v1305 = vunpack.c.l.b16 %v378
    %v1306 = vunpack.c.h.b16 %v378
    %v1307 = vunpack.c.l.b16 %v379
    %v1308 = vunpack.c.h.b16 %v379
    %v1309 = vunpack.c.l.b16 %v380
    %v1310 = vunpack.c.h.b16 %v380
    %v1311 = vunpack.c.l.b16 %v381
    %v1312 = vunpack.c.h.b16 %v381
    %v1313 = vunpack.c.l.b16 %v382
    %v1314 = vunpack.c.h.b16 %v382
    %v1315 = vunpack.c.l.b16 %v383
    %v1316 = vunpack.c.h.b16 %v383
    %v1317 = vunpack.c.l.b16 %v384
    %v1318 = vunpack.c.h.b16 %v384
    %v1319 = vunpack.c.l.b16 %v385
    %v1320 = vunpack.c.h.b16 %v385
    %v1321 = vunpack.c.l.b16 %v386
    %v1322 = vunpack.c.h.b16 %v386
    %v1323 = vunpack.c.l.b16 %v387
    %v1324 = vunpack.c.h.b16 %v387
    %v1325 = vunpack.c.l.b16 %v388
    %v1326 = vunpack.c.h.b16 %v388
    %v1327 = vunpack.c.l.b16 %v389
    %v1328 = vunpack.c.h.b16 %v389
    %v1329 = vunpack.c.l.b16 %v390
    %v1330 = vunpack.c.h.b16 %v390
    %v1331 = vunpack.c.l.b16 %v391
    %v1332 = vunpack.c.h.b16 %v391
    %v1333 = vunpack.c.l.b16 %v392
    %v1334 = vunpack.c.h.b16 %v392
    %v1335 = vunpack.c.l.b16 %v393
    %v1336 = vunpack.c.h.b16 %v393
    %v1337 = vunpack.c.l.b16 %v394
    %v1338 = vunpack.c.h.b16 %v394
    %v1339 = vpack.c.b16 %v775, %v763
    %v1340 = vpack.c.b16 %v776, %v764
    %v1341 = vpack.c.b16 %v777, %v765
    %v1342 = vpack.c.b16 %v778, %v766
    %v1343 = vpack.c.b16 %v779, %v767
    %v1344 = vpack.c.b16 %v780, %v768
    %v1345 = vpack.c.b16 %v781, %v769
    %v1346 = vpack.c.b16 %v782, %v770
    %v1347 = vpack.c.b16 %v783, %v771
    %v1348 = vpack.c.b16 %v784, %v772
    %v1349 = vpack.c.b16 %v785, %v773
    %v1350 = vpack.c.b16 %v786, %v774
    %v1351 = vpack.c.b16 %v799, %v787
    %v1352 = vpack.c.b16 %v800, %v788
    %v1353 = vpack.c.b16 %v801, %v789
    %v1354 = vpack.c.b16 %v802, %v790
    %v1355 = vpack.c.b16 %v803, %v791
    %v1356 = vpack.c.b16 %v804, %v792
    %v1357 = vpack.c.b16 %v805, %v793
    %v1358 = vpack.c.b16 %v806, %v794
    %v1359 = vpack.c.b16 %v807, %v795
    %v1360 = vpack.c.b16 %v808, %v796
    %v1361 = vpack.c.b16 %v809, %v797
    %v1362 = vpack.c.b16 %v810, %v798
    %v1363 = vpack.c.b16 %v823, %v811
    %v1364 = vpack.c.b16 %v824, %v812
    %v1365 = vpack.c.b16 %v825, %v813
    %v1366 = vpack.c.b16 %v826, %v814
    %v1367 = vpack.c.b16 %v827, %v815
    %v1368 = vpack.c.b16 %v828, %v816
    %v1369 = vpack.c.b16 %v829, %v817
    %v1370 = vpack.c.b16 %v830, %v818
    %v1371 = vpack.c.b16 %v831, %v819
    %v1372 = vpack.c.b16 %v832, %v820
    %v1373 = vpack.c.b16 %v833, %v821
    %v1374 = vpack.c.b16 %v834, %v822
    %v1375 = vpack.c.b16 %v847, %v835
    %v1376 = vpack.c.b16 %v848, %v836
    %v1377 = vpack.c.b16 %v849, %v837
    %v1378 = vpack.c.b16 %v850, %v838
    %v1379 = vpack.c.b16 %v851, %v839
    %v1380 = vpack.c.b16 %v852, %v840
    %v1381 = vpack.c.b16 %v853, %v841
    %v1382 = vpack.c.b16 %v854, %v842
    %v1383 = vpack.c.b16 %v855, %v843
    %v1384 = vpack.c.b16 %v856, %v844
    %v1385 = vpack.c.b16 %v857, %v845
    %v1386 = vpack.c.b16 %v858, %v846
    %v1387 = vpack.c.b16 %v871, %v859
    %v1388 = vpack.c.b16 %v872, %v860
    %v1389 = vpack.c.b16 %v873, %v861
    %v1390 = vpack.c.b16 %v874, %v862
    %v1391 = vpack.c.b16 %v875, %v863
    %v1392 = vpack.c.b16 %v876, %v864
    %v1393 = vpack.c.b16 %v877, %v865
    %v1394 = vpack.c.b16 %v878, %v866
    %v1395 = vpack.c.b16 %v879, %v867
    %v1396 = vpack.c.b16 %v880, %v868
    %v1397 = vpack.c.b16 %v881, %v869
    %v1398 = vpack.c.b16 %v882, %v870
    %v1399 = vpack.c.b16 %v895, %v883
    %v1400 = vpack.c.b16 %v896, %v884
    %v1401 = vpack.c.b16 %v897, %v885
    %v1402 = vpack.c.b16 %v898, %v886
    %v1403 = vpack.c.b16 %v899, %v887
    %v1404 = vpack.c.b16 %v900, %v888
    %v1405 = vpack.c.b16 %v901, %v889
    %v1406 = vpack.c.b16 %v902, %v890
    %v1407 = vpack.c.b16 %v903, %v891
    %v1408 = vpack.c.b16 %v904, %v892
    %v1409 = vpack.c.b16 %v905, %v893
    %v1410 = vpack.c.b16 %v906, %v894
    %v1411 = vpack.c.b16 %v919, %v907
    %v1412 = vpack.c.b16 %v920, %v908
    %v1413 = vpack.c.b16 %v921, %v909
    %v1414 = vpack.c.b16 %v922, %v910
    %v1415 = vpack.c.b16 %v923, %v911
    %v1416 = vpack.c.b16 %v924, %v912
    %v1417 = vpack.c.b16 %v925, %v913
    %v1418 = vpack.c.b16 %v926, %v914
    %v1419 = vpack.c.b16 %v927, %v915
    %v1420 = vpack.c.b16 %v928, %v916
    %v1421 = vpack.c.b16 %v929, %v917
    %v1422 = vpack.c.b16 %v930, %v918
    %v1423 = vpack.c.b16 %v943, %v931
    %v1424 = vpack.c.b16 %v944, %v932
    %v1425 = vpack.c.b16 %v945, %v933
    %v1426 = vpack.c.b16 %v946, %v934
    %v1427 = vpack.c.b16 %v947, %v935
    %v1428 = vpack.c.b16 %v948, %v936
    %v1429 = vpack.c.b16 %v949, %v937
    %v1430 = vpack.c.b16 %v950, %v938
    %v1431 = vpack.c.b16 %v951, %v939
    %v1432 = vpack.c.b16 %v952, %v940
    %v1433 = vpack.c.b16 %v953, %v941
    %v1434 = vpack.c.b16 %v954, %v942
    %v1435 = vpack.c.b16 %v967, %v955
    %v1436 = vpack.c.b16 %v968, %v956
    %v1437 = vpack.c.b16 %v969, %v957
    %v1438 = vpack.c.b16 %v970, %v958
    %v1439 = vpack.c.b16 %v971, %v959
    %v1440 = vpack.c.b16 %v972, %v960
    %v1441 = vpack.c.b16 %v973, %v961
    %v1442 = vpack.c.b16 %v974, %v962
    %v1443 = vpack.c.b16 %v975, %v963
    %v1444 = vpack.c.b16 %v976, %v964
    %v1445 = vpack.c.b16 %v977, %v965
    %v1446 = vpack.c.b16 %v978, %v966
    %v1447 = vpack.c.b16 %v991, %v979
    %v1448 = vpack.c.b16 %v992, %v980
    %v1449 = vpack.c.b16 %v993, %v981
    %v1450 = vpack.c.b16 %v994, %v982
    %v1451 = vpack.c.b16 %v995, %v983
    %v1452 = vpack.c.b16 %v996, %v984
    %v1453 = vpack.c.b16 %v997, %v985
    %v1454 = vpack.c.b16 %v998, %v986
    %v1455 = vpack.c.b16 %v999, %v987
    %v1456 = vpack.c.b16 %v1000, %v988
    %v1457 = vpack.c.b16 %v1001, %v989
    %v1458 = vpack.c.b16 %v1002, %v990
    %v1459 = vpack.c.b16 %v1015, %v1003
    %v1460 = vpack.c.b16 %v1016, %v1004
    %v1461 = vpack.c.b16 %v1017, %v1005
    %v1462 = vpack.c.b16 %v1018, %v1006
    %v1463 = vpack.c.b16 %v1019, %v1007
    %v1464 = vpack.c.b16 %v1020, %v1008
    %v1465 = vpack.c.b16 %v1021, %v1009
    %v1466 = vpack.c.b16 %v1022, %v1010
    %v1467 = vpack.c.b16 %v1023, %v1011
    %v1468 = vpack.c.b16 %v1024, %v1012
    %v1469 = vpack.c.b16 %v1025, %v1013
    %v1470 = vpack.c.b16 %v1026, %v1014
    %v1471 = vpack.c.b16 %v1039, %v1027
    %v1472 = vpack.c.b16 %v1040, %v1028
    %v1473 = vpack.c.b16 %v1041, %v1029
    %v1474 = vpack.c.b16 %v1042, %v1030
    %v1475 = vpack.c.b16 %v1043, %v1031
    %v1476 = vpack.c.b16 %v1044, %v1032
    %v1477 = vpack.c.b16 %v1045, %v1033
    %v1478 = vpack.c.b16 %v1046, %v1034
    %v1479 = vpack.c.b16 %v1047, %v1035
    %v1480 = vpack.c.b16 %v1048, %v1036
    %v1481 = vpack.c.b16 %v1049, %v1037
    %v1482 = vpack.c.b16 %v1050, %v1038
    %v1483 = vpack.c.b16 %v1063, %v1051
    %v1484 = vpack.c.b16 %v1064, %v1052
    %v1485 = vpack.c.b16 %v1065, %v1053
    %v1486 = vpack.c.b16 %v1066, %v1054
    %v1487 = vpack.c.b16 %v1067, %v1055
    %v1488 = vpack.c.b16 %v1068, %v1056
    %v1489 = vpack.c.b16 %v1069, %v1057
    %v1490 = vpack.c.b16 %v1070, %v1058
    %v1491 = vpack.c.b16 %v1071, %v1059
    %v1492 = vpack.c.b16 %v1072, %v1060
    %v1493 = vpack.c.b16 %v1073, %v1061
    %v1494 = vpack.c.b16 %v1074, %v1062
    %v1495 = vpack.c.b16 %v1087, %v1075
    %v1496 = vpack.c.b16 %v1088, %v1076
    %v1497 = vpack.c.b16 %v1089, %v1077
    %v1498 = vpack.c.b16 %v1090, %v1078
    %v1499 = vpack.c.b16 %v1091, %v1079
    %v1500 = vpack.c.b16 %v1092, %v1080
    %v1501 = vpack.c.b16 %v1093, %v1081
    %v1502 = vpack.c.b16 %v1094, %v1082
    %v1503 = vpack.c.b16 %v1095, %v1083
    %v1504 = vpack.c.b16 %v1096, %v1084
    %v1505 = vpack.c.b16 %v1097, %v1085
    %v1506 = vpack.c.b16 %v1098, %v1086
    %v1507 = vpack.c.b16 %v1111, %v1099
    %v1508 = vpack.c.b16 %v1112, %v1100
    %v1509 = vpack.c.b16 %v1113, %v1101
    %v1510 = vpack.c.b16 %v1114, %v1102
    %v1511 = vpack.c.b16 %v1115, %v1103
    %v1512 = vpack.c.b16 %v1116, %v1104
    %v1513 = vpack.c.b16 %v1117, %v1105
    %v1514 = vpack.c.b16 %v1118, %v1106
    %v1515 = vpack.c.b16 %v1119, %v1107
    %v1516 = vpack.c.b16 %v1120, %v1108
    %v1517 = vpack.c.b16 %v1121, %v1109
    %v1518 = vpack.c.b16 %v1122, %v1110
    %v1519 = vpack.c.b16 %v1135, %v1123
    %v1520 = vpack.c.b16 %v1136, %v1124
    %v1521 = vpack.c.b16 %v1137, %v1125
    %v1522 = vpack.c.b16 %v1138, %v1126
    %v1523 = vpack.c.b16 %v1139, %v1127
    %v1524 = vpack.c.b16 %v1140, %v1128
    %v1525 = vpack.c.b16 %v1141, %v1129
    %v1526 = vpack.c.b16 %v1142, %v1130
    %v1527 = vpack.c.b16 %v1143, %v1131
    %v1528 = vpack.c.b16 %v1144, %v1132
    %v1529 = vpack.c.b16 %v1145, %v1133
    %v1530 = vpack.c.b16 %v1146, %v1134
    %v1531 = vpack.c.b16 %v1159, %v1147
    %v1532 = vpack.c.b16 %v1160, %v1148
    %v1533 = vpack.c.b16 %v1161, %v1149
    %v1534 = vpack.c.b16 %v1162, %v1150
    %v1535 = vpack.c.b16 %v1163, %v1151
    %v1536 = vpack.c.b16 %v1164, %v1152
    %v1537 = vpack.c.b16 %v1165, %v1153
    %v1538 = vpack.c.b16 %v1166, %v1154
    %v1539 = vpack.c.b16 %v1167, %v1155
    %v1540 = vpack.c.b16 %v1168, %v1156
    %v1541 = vpack.c.b16 %v1169, %v1157
    %v1542 = vpack.c.b16 %v1170, %v1158
    %v1543 = vpack.c.b16 %v1183, %v1171
    %v1544 = vpack.c.b16 %v1184, %v1172
    %v1545 = vpack.c.b16 %v1185, %v1173
    %v1546 = vpack.c.b16 %v1186, %v1174
    %v1547 = vpack.c.b16 %v1187, %v1175
    %v1548 = vpack.c.b16 %v1188, %v1176
    %v1549 = vpack.c.b16 %v1189, %v1177
    %v1550 = vpack.c.b16 %v1190, %v1178
    %v1551 = vpack.c.b16 %v1191, %v1179
    %v1552 = vpack.c.b16 %v1192, %v1180
    %v1553 = vpack.c.b16 %v1193, %v1181
    %v1554 = vpack.c.b16 %v1194, %v1182
    %v1555 = vpack.c.b16 %v1207, %v1195
    %v1556 = vpack.c.b16 %v1208, %v1196
    %v1557 = vpack.c.b16 %v1209, %v1197
    %v1558 = vpack.c.b16 %v1210, %v1198
    %v1559 = vpack.c.b16 %v1211, %v1199
    %v1560 = vpack.c.b16 %v1212, %v1200
    %v1561 = vpack.c.b16 %v1213, %v1201
    %v1562 = vpack.c.b16 %v1214, %v1202
    %v1563 = vpack.c.b16 %v1215, %v1203
    %v1564 = vpack.c.b16 %v1216, %v1204
    %v1565 = vpack.c.b16 %v1217, %v1205
    %v1566 = vpack.c.b16 %v1218, %v1206
    %v1567 = vpack.c.b16 %v1231, %v1219
    %v1568 = vpack.c.b16 %v1232, %v1220
    %v1569 = vpack.c.b16 %v1233, %v1221
    %v1570 = vpack.c.b16 %v1234, %v1222
    %v1571 = vpack.c.b16 %v1235, %v1223
    %v1572 = vpack.c.b16 %v1236, %v1224
    %v1573 = vpack.c.b16 %v1237, %v1225
    %v1574 = vpack.c.b16 %v1238, %v1226
    %v1575 = vpack.c.b16 %v1239, %v1227
    %v1576 = vpack.c.b16 %v1240, %v1228
    %v1577 = vpack.c.b16 %v1241, %v1229
    %v1578 = vpack.c.b16 %v1242, %v1230
    %v1579 = vpack.c.b16 %v1255, %v1243
    %v1580 = vpack.c.b16 %v1256, %v1244
    %v1581 = vpack.c.b16 %v1257, %v1245
    %v1582 = vpack.c.b16 %v1258, %v1246
    %v1583 = vpack.c.b16 %v1259, %v1247
    %v1584 = vpack.c.b16 %v1260, %v1248
    %v1585 = vpack.c.b16 %v1261, %v1249
    %v1586 = vpack.c.b16 %v1262, %v1250
    %v1587 = vpack.c.b16 %v1263, %v1251
    %v1588 = vpack.c.b16 %v1264, %v1252
    %v1589 = vpack.c.b16 %v1265, %v1253
    %v1590 = vpack.c.b16 %v1266, %v1254
    %v1591 = vpack.c.b16 %v1279, %v1267
    %v1592 = vpack.c.b16 %v1280, %v1268
    %v1593 = vpack.c.b16 %v1281, %v1269
    %v1594 = vpack.c.b16 %v1282, %v1270
    %v1595 = vpack.c.b16 %v1283, %v1271
    %v1596 = vpack.c.b16 %v1284, %v1272
    %v1597 = vpack.c.b16 %v1285, %v1273
    %v1598 = vpack.c.b16 %v1286, %v1274
    %v1599 = vpack.c.b16 %v1287, %v1275
    %v1600 = vpack.c.b16 %v1288, %v1276
    %v1601 = vpack.c.b16 %v1289, %v1277
    %v1602 = vpack.c.b16 %v1290, %v1278
    %v1603 = vpack.c.b16 %v1303, %v1291
    %v1604 = vpack.c.b16 %v1304, %v1292
    %v1605 = vpack.c.b16 %v1305, %v1293
    %v1606 = vpack.c.b16 %v1306, %v1294
    %v1607 = vpack.c.b16 %v1307, %v1295
    %v1608 = vpack.c.b16 %v1308, %v1296
    %v1609 = vpack.c.b16 %v1309, %v1297
    %v1610 = vpack.c.b16 %v1310, %v1298
    %v1611 = vpack.c.b16 %v1311, %v1299
    %v1612 = vpack.c.b16 %v1312, %v1300
    %v1613 = vpack.c.b16 %v1313, %v1301
    %v1614 = vpack.c.b16 %v1314, %v1302
    %v1615 = vpack.c.b16 %v1327, %v1315
    %v1616 = vpack.c.b16 %v1328, %v1316
    %v1617 = vpack.c.b16 %v1329, %v1317
    %v1618 = vpack.c.b16 %v1330, %v1318
    %v1619 = vpack.c.b16 %v1331, %v1319
    %v1620 = vpack.c.b16 %v1332, %v1320
    %v1621 = vpack.c.b16 %v1333, %v1321
    %v1622 = vpack.c.b16 %v1334, %v1322
    %v1623 = vpack.c.b16 %v1335, %v1323
    %v1624 = vpack.c.b16 %v1336, %v1324
    %v1625 = vpack.c.b16 %v1337, %v1325
    %v1626 = vpack.c.b16 %v1338, %v1326
    %1915 = vmatprep.subr.bf16.mxu0 %v1340
    %1916 = vmatpush1.bf16.msra.mxu0 %v1339
    %1917 = vmatprep.subr.bf16.mxu0 %v1352
    %1918 = vmatpush1.bf16.msra.mxu0 %v1351
    %1919 = vmatprep.subr.bf16.mxu0 %v1364
    %1920 = vmatpush1.bf16.msra.mxu0 %v1363
    %1921 = vmatprep.subr.bf16.mxu0 %v1376
    %1922 = vmatpush1.bf16.msra.mxu0 %v1375
    %1923 = vmatprep.subr.bf16.mxu0 %v1388
    %1924 = vmatpush1.bf16.msra.mxu0 %v1387
    %1925 = vmatprep.subr.bf16.mxu0 %v1400
    %1926 = vmatpush1.bf16.msra.mxu0 %v1399
    %1927 = vmatprep.subr.bf16.mxu0 %v1412
    %1928 = vmatpush1.bf16.msra.mxu0 %v1411
    %1929 = vmatprep.subr.bf16.mxu0 %v1424
    %1930 = vmatpush1.bf16.msra.mxu0 %v1423
    %1931 = vmatprep.subr.bf16.mxu0 %v1436
    %1932 = vmatpush1.bf16.msra.mxu0 %v1435
    %1933 = vmatprep.subr.bf16.mxu0 %v1448
    %1934 = vmatpush1.bf16.msra.mxu0 %v1447
    %1935 = vmatprep.subr.bf16.mxu0 %v1460
    %1936 = vmatpush1.bf16.msra.mxu0 %v1459
    %1937 = vmatprep.subr.bf16.mxu0 %v1472
    %1938 = vmatpush1.bf16.msra.mxu0 %v1471
    %1939 = vmatprep.subr.bf16.mxu0 %v1484
    %1940 = vmatpush1.bf16.msra.mxu0 %v1483
    %1941 = vmatprep.subr.bf16.mxu0 %v1496
    %1942 = vmatpush1.bf16.msra.mxu0 %v1495
    %1943 = vmatprep.subr.bf16.mxu0 %v1508
    %1944 = vmatpush1.bf16.msra.mxu0 %v1507
    %1945 = vmatprep.subr.bf16.mxu0 %v1520
    %1946 = vmatpush1.bf16.msra.mxu0 %v1519
    %1947 = vmatprep.mubr.bf16.mxu0 %v470
    %1948 = vmatmul.mubr.bf16.gmra.mrb[0].mxu0 %v469
    %v1949 = vpop.f32.mrb[0].mxu0
    %v1950 = vadd.f32 %v402, %v1949
    %v1951 = vpop.f32.mrb[0].mxu0
    %v1952 = vadd.f32 %v406, %v1951
    %v1953 = vpop.f32.mrb[0].mxu0
    %v1954 = vadd.f32 %v402, %v1953
    %v1955 = vpop.f32.mrb[0].mxu0
    %v1956 = vadd.f32 %v406, %v1955
    %1957 = vdwg.mxu0
    %1958 = vmatprep.subr.bf16.mxu0 %v1532
    %1959 = vmatpush1.bf16.msra.mxu0 %v1531
    %1960 = vmatprep.subr.bf16.mxu0 %v1544
    %1961 = vmatpush1.bf16.msra.mxu0 %v1543
    %1962 = vmatprep.subr.bf16.mxu0 %v1556
    %1963 = vmatpush1.bf16.msra.mxu0 %v1555
    %1964 = vmatprep.subr.bf16.mxu0 %v1568
    %1965 = vmatpush1.bf16.msra.mxu0 %v1567
    %1966 = vmatprep.subr.bf16.mxu0 %v1580
    %1967 = vmatpush1.bf16.msra.mxu0 %v1579
    %1968 = vmatprep.subr.bf16.mxu0 %v1592
    %1969 = vmatpush1.bf16.msra.mxu0 %v1591
    %1970 = vmatprep.subr.bf16.mxu0 %v1604
    %1971 = vmatpush1.bf16.msra.mxu0 %v1603
    %1972 = vmatprep.subr.bf16.mxu0 %v1616
    %1973 = vmatpush1.bf16.msra.mxu0 %v1615
    %1974 = vmatprep.subr.bf16.mxu0 0
    %1975 = vmatpush1.bf16.msra.mxu0 0
    %1976 = vmatprep.subr.bf16.mxu0 0
    %1977 = vmatpush1.bf16.msra.mxu0 0
    %1978 = vmatprep.subr.bf16.mxu0 0
    %1979 = vmatpush1.bf16.msra.mxu0 0
    %1980 = vmatprep.subr.bf16.mxu0 0
    %1981 = vmatpush1.bf16.msra.mxu0 0
    %1982 = vmatprep.subr.bf16.mxu0 0
    %1983 = vmatpush1.bf16.msra.mxu0 0
    %1984 = vmatprep.subr.bf16.mxu0 0
    %1985 = vmatpush1.bf16.msra.mxu0 0
    %1986 = vmatprep.subr.bf16.mxu0 0
    %1987 = vmatpush1.bf16.msra.mxu0 0
    %1988 = vmatprep.subr.bf16.mxu0 0
    %1989 = vmatpush1.bf16.msra.mxu0 0
    %1990 = vmatprep.mubr.bf16.mxu0 0
    %1991 = vmatmul.mubr.bf16.gmra.mrb[0].mxu0 %v471
    %v1992 = vpop.f32.mrb[0].mxu0
    %v1993 = vadd.f32 %v1950, %v1992
    %v1994 = vpop.f32.mrb[0].mxu0
    %v1995 = vadd.f32 %v1952, %v1994
    %v1996 = vpop.f32.mrb[0].mxu0
    %v1997 = vadd.f32 %v1954, %v1996
    %v1998 = vpop.f32.mrb[0].mxu0
    %v1999 = vadd.f32 %v1956, %v1998
    %2000 = vdwg.mxu0
    %2001 = vmatprep.subr.bf16.mxu0 %v1342
    %2002 = vmatpush1.bf16.msra.mxu0 %v1341
    %2003 = vmatprep.subr.bf16.mxu0 %v1354
    %2004 = vmatpush1.bf16.msra.mxu0 %v1353
    %2005 = vmatprep.subr.bf16.mxu0 %v1366
    %2006 = vmatpush1.bf16.msra.mxu0 %v1365
    %2007 = vmatprep.subr.bf16.mxu0 %v1378
    %2008 = vmatpush1.bf16.msra.mxu0 %v1377
    %2009 = vmatprep.subr.bf16.mxu0 %v1390
    %2010 = vmatpush1.bf16.msra.mxu0 %v1389
    %2011 = vmatprep.subr.bf16.mxu0 %v1402
    %2012 = vmatpush1.bf16.msra.mxu0 %v1401
    %2013 = vmatprep.subr.bf16.mxu0 %v1414
    %2014 = vmatpush1.bf16.msra.mxu0 %v1413
    %2015 = vmatprep.subr.bf16.mxu0 %v1426
    %2016 = vmatpush1.bf16.msra.mxu0 %v1425
    %2017 = vmatprep.subr.bf16.mxu0 %v1438
    %2018 = vmatpush1.bf16.msra.mxu0 %v1437
    %2019 = vmatprep.subr.bf16.mxu0 %v1450
    %2020 = vmatpush1.bf16.msra.mxu0 %v1449
    %2021 = vmatprep.subr.bf16.mxu0 %v1462
    %2022 = vmatpush1.bf16.msra.mxu0 %v1461
    %2023 = vmatprep.subr.bf16.mxu0 %v1474
    %2024 = vmatpush1.bf16.msra.mxu0 %v1473
    %2025 = vmatprep.subr.bf16.mxu0 %v1486
    %2026 = vmatpush1.bf16.msra.mxu0 %v1485
    %2027 = vmatprep.subr.bf16.mxu0 %v1498
    %2028 = vmatpush1.bf16.msra.mxu0 %v1497
    %2029 = vmatprep.subr.bf16.mxu0 %v1510
    %2030 = vmatpush1.bf16.msra.mxu0 %v1509
    %2031 = vmatprep.subr.bf16.mxu0 %v1522
    %2032 = vmatpush1.bf16.msra.mxu0 %v1521
    %2033 = vmatprep.mubr.bf16.mxu0 %v470
    %2034 = vmatmul.mubr.bf16.gmra.mrb[0].mxu0 %v469
    %v2035 = vpop.f32.mrb[0].mxu0
    %v2036 = vadd.f32 %v410, %v2035
    %v2037 = vpop.f32.mrb[0].mxu0
    %v2038 = vadd.f32 %v414, %v2037
    %v2039 = vpop.f32.mrb[0].mxu0
    %v2040 = vadd.f32 %v410, %v2039
    %v2041 = vpop.f32.mrb[0].mxu0
    %v2042 = vadd.f32 %v414, %v2041
    %2043 = vdwg.mxu0
    %2044 = vmatprep.subr.bf16.mxu0 %v1534
    %2045 = vmatpush1.bf16.msra.mxu0 %v1533
    %2046 = vmatprep.subr.bf16.mxu0 %v1546
    %2047 = vmatpush1.bf16.msra.mxu0 %v1545
    %2048 = vmatprep.subr.bf16.mxu0 %v1558
    %2049 = vmatpush1.bf16.msra.mxu0 %v1557
    %2050 = vmatprep.subr.bf16.mxu0 %v1570
    %2051 = vmatpush1.bf16.msra.mxu0 %v1569
    %2052 = vmatprep.subr.bf16.mxu0 %v1582
    %2053 = vmatpush1.bf16.msra.mxu0 %v1581
    %2054 = vmatprep.subr.bf16.mxu0 %v1594
    %2055 = vmatpush1.bf16.msra.mxu0 %v1593
    %2056 = vmatprep.subr.bf16.mxu0 %v1606
    %2057 = vmatpush1.bf16.msra.mxu0 %v1605
    %2058 = vmatprep.subr.bf16.mxu0 %v1618
    %2059 = vmatpush1.bf16.msra.mxu0 %v1617
    %2060 = vmatprep.subr.bf16.mxu0 0
    %2061 = vmatpush1.bf16.msra.mxu0 0
    %2062 = vmatprep.subr.bf16.mxu0 0
    %2063 = vmatpush1.bf16.msra.mxu0 0
    %2064 = vmatprep.subr.bf16.mxu0 0
    %2065 = vmatpush1.bf16.msra.mxu0 0
    %2066 = vmatprep.subr.bf16.mxu0 0
    %2067 = vmatpush1.bf16.msra.mxu0 0
    %2068 = vmatprep.subr.bf16.mxu0 0
    %2069 = vmatpush1.bf16.msra.mxu0 0
    %2070 = vmatprep.subr.bf16.mxu0 0
    %2071 = vmatpush1.bf16.msra.mxu0 0
    %2072 = vmatprep.subr.bf16.mxu0 0
    %2073 = vmatpush1.bf16.msra.mxu0 0
    %2074 = vmatprep.subr.bf16.mxu0 0
    %2075 = vmatpush1.bf16.msra.mxu0 0
    %2076 = vmatprep.mubr.bf16.mxu0 0
    %2077 = vmatmul.mubr.bf16.gmra.mrb[0].mxu0 %v471
    %v2078 = vpop.f32.mrb[0].mxu0
    %v2079 = vadd.f32 %v2036, %v2078
    %v2080 = vpop.f32.mrb[0].mxu0
    %v2081 = vadd.f32 %v2038, %v2080
    %v2082 = vpop.f32.mrb[0].mxu0
    %v2083 = vadd.f32 %v2040, %v2082
    %v2084 = vpop.f32.mrb[0].mxu0
    %v2085 = vadd.f32 %v2042, %v2084
    %2086 = vdwg.mxu0
    %2087 = vmatprep.subr.bf16.mxu0 %v1344
    %2088 = vmatpush1.bf16.msra.mxu0 %v1343
    %2089 = vmatprep.subr.bf16.mxu0 %v1356
    %2090 = vmatpush1.bf16.msra.mxu0 %v1355
    %2091 = vmatprep.subr.bf16.mxu0 %v1368
    %2092 = vmatpush1.bf16.msra.mxu0 %v1367
    %2093 = vmatprep.subr.bf16.mxu0 %v1380
    %2094 = vmatpush1.bf16.msra.mxu0 %v1379
    %2095 = vmatprep.subr.bf16.mxu0 %v1392
    %2096 = vmatpush1.bf16.msra.mxu0 %v1391
    %2097 = vmatprep.subr.bf16.mxu0 %v1404
    %2098 = vmatpush1.bf16.msra.mxu0 %v1403
    %2099 = vmatprep.subr.bf16.mxu0 %v1416
    %2100 = vmatpush1.bf16.msra.mxu0 %v1415
    %2101 = vmatprep.subr.bf16.mxu0 %v1428
    %2102 = vmatpush1.bf16.msra.mxu0 %v1427
    %2103 = vmatprep.subr.bf16.mxu0 %v1440
    %2104 = vmatpush1.bf16.msra.mxu0 %v1439
    %2105 = vmatprep.subr.bf16.mxu0 %v1452
    %2106 = vmatpush1.bf16.msra.mxu0 %v1451
    %2107 = vmatprep.subr.bf16.mxu0 %v1464
    %2108 = vmatpush1.bf16.msra.mxu0 %v1463
    %2109 = vmatprep.subr.bf16.mxu0 %v1476
    %2110 = vmatpush1.bf16.msra.mxu0 %v1475
    %2111 = vmatprep.subr.bf16.mxu0 %v1488
    %2112 = vmatpush1.bf16.msra.mxu0 %v1487
    %2113 = vmatprep.subr.bf16.mxu0 %v1500
    %2114 = vmatpush1.bf16.msra.mxu0 %v1499
    %2115 = vmatprep.subr.bf16.mxu0 %v1512
    %2116 = vmatpush1.bf16.msra.mxu0 %v1511
    %2117 = vmatprep.subr.bf16.mxu0 %v1524
    %2118 = vmatpush1.bf16.msra.mxu0 %v1523
    %2119 = vmatprep.mubr.bf16.mxu0 %v470
    %2120 = vmatmul.mubr.bf16.gmra.mrb[0].mxu0 %v469
    %v2121 = vpop.f32.mrb[0].mxu0
    %v2122 = vadd.f32 %v418, %v2121
    %v2123 = vpop.f32.mrb[0].mxu0
    %v2124 = vadd.f32 %v422, %v2123
    %v2125 = vpop.f32.mrb[0].mxu0
    %v2126 = vadd.f32 %v418, %v2125
    %v2127 = vpop.f32.mrb[0].mxu0
    %v2128 = vadd.f32 %v422, %v2127
    %2129 = vdwg.mxu0
    %2130 = vmatprep.subr.bf16.mxu0 %v1536
    %2131 = vmatpush1.bf16.msra.mxu0 %v1535
    %2132 = vmatprep.subr.bf16.mxu0 %v1548
    %2133 = vmatpush1.bf16.msra.mxu0 %v1547
    %2134 = vmatprep.subr.bf16.mxu0 %v1560
    %2135 = vmatpush1.bf16.msra.mxu0 %v1559
    %2136 = vmatprep.subr.bf16.mxu0 %v1572
    %2137 = vmatpush1.bf16.msra.mxu0 %v1571
    %2138 = vmatprep.subr.bf16.mxu0 %v1584
    %2139 = vmatpush1.bf16.msra.mxu0 %v1583
    %2140 = vmatprep.subr.bf16.mxu0 %v1596
    %2141 = vmatpush1.bf16.msra.mxu0 %v1595
    %2142 = vmatprep.subr.bf16.mxu0 %v1608
    %2143 = vmatpush1.bf16.msra.mxu0 %v1607
    %2144 = vmatprep.subr.bf16.mxu0 %v1620
    %2145 = vmatpush1.bf16.msra.mxu0 %v1619
    %2146 = vmatprep.subr.bf16.mxu0 0
    %2147 = vmatpush1.bf16.msra.mxu0 0
    %2148 = vmatprep.subr.bf16.mxu0 0
    %2149 = vmatpush1.bf16.msra.mxu0 0
    %2150 = vmatprep.subr.bf16.mxu0 0
    %2151 = vmatpush1.bf16.msra.mxu0 0
    %2152 = vmatprep.subr.bf16.mxu0 0
    %2153 = vmatpush1.bf16.msra.mxu0 0
    %2154 = vmatprep.subr.bf16.mxu0 0
    %2155 = vmatpush1.bf16.msra.mxu0 0
    %2156 = vmatprep.subr.bf16.mxu0 0
    %2157 = vmatpush1.bf16.msra.mxu0 0
    %2158 = vmatprep.subr.bf16.mxu0 0
    %2159 = vmatpush1.bf16.msra.mxu0 0
    %2160 = vmatprep.subr.bf16.mxu0 0
    %2161 = vmatpush1.bf16.msra.mxu0 0
    %2162 = vmatprep.mubr.bf16.mxu0 0
    %2163 = vmatmul.mubr.bf16.gmra.mrb[0].mxu0 %v471
    %v2164 = vpop.f32.mrb[0].mxu0
    %v2165 = vadd.f32 %v2122, %v2164
    %v2166 = vpop.f32.mrb[0].mxu0
    %v2167 = vadd.f32 %v2124, %v2166
    %v2168 = vpop.f32.mrb[0].mxu0
    %v2169 = vadd.f32 %v2126, %v2168
    %v2170 = vpop.f32.mrb[0].mxu0
    %v2171 = vadd.f32 %v2128, %v2170
    %2172 = vdwg.mxu0
    %2173 = vmatprep.subr.bf16.mxu0 %v1346
    %2174 = vmatpush1.bf16.msra.mxu0 %v1345
    %2175 = vmatprep.subr.bf16.mxu0 %v1358
    %2176 = vmatpush1.bf16.msra.mxu0 %v1357
    %2177 = vmatprep.subr.bf16.mxu0 %v1370
    %2178 = vmatpush1.bf16.msra.mxu0 %v1369
    %2179 = vmatprep.subr.bf16.mxu0 %v1382
    %2180 = vmatpush1.bf16.msra.mxu0 %v1381
    %2181 = vmatprep.subr.bf16.mxu0 %v1394
    %2182 = vmatpush1.bf16.msra.mxu0 %v1393
    %2183 = vmatprep.subr.bf16.mxu0 %v1406
    %2184 = vmatpush1.bf16.msra.mxu0 %v1405
    %2185 = vmatprep.subr.bf16.mxu0 %v1418
    %2186 = vmatpush1.bf16.msra.mxu0 %v1417
    %2187 = vmatprep.subr.bf16.mxu0 %v1430
    %2188 = vmatpush1.bf16.msra.mxu0 %v1429
    %2189 = vmatprep.subr.bf16.mxu0 %v1442
    %2190 = vmatpush1.bf16.msra.mxu0 %v1441
    %2191 = vmatprep.subr.bf16.mxu0 %v1454
    %2192 = vmatpush1.bf16.msra.mxu0 %v1453
    %2193 = vmatprep.subr.bf16.mxu0 %v1466
    %2194 = vmatpush1.bf16.msra.mxu0 %v1465
    %2195 = vmatprep.subr.bf16.mxu0 %v1478
    %2196 = vmatpush1.bf16.msra.mxu0 %v1477
    %2197 = vmatprep.subr.bf16.mxu0 %v1490
    %2198 = vmatpush1.bf16.msra.mxu0 %v1489
    %2199 = vmatprep.subr.bf16.mxu0 %v1502
    %2200 = vmatpush1.bf16.msra.mxu0 %v1501
    %2201 = vmatprep.subr.bf16.mxu0 %v1514
    %2202 = vmatpush1.bf16.msra.mxu0 %v1513
    %2203 = vmatprep.subr.bf16.mxu0 %v1526
    %2204 = vmatpush1.bf16.msra.mxu0 %v1525
    %2205 = vmatprep.mubr.bf16.mxu0 %v470
    %2206 = vmatmul.mubr.bf16.gmra.mrb[0].mxu0 %v469
    %v2207 = vpop.f32.mrb[0].mxu0
    %v2208 = vadd.f32 %v426, %v2207
    %v2209 = vpop.f32.mrb[0].mxu0
    %v2210 = vadd.f32 %v430, %v2209
    %v2211 = vpop.f32.mrb[0].mxu0
    %v2212 = vadd.f32 %v426, %v2211
    %v2213 = vpop.f32.mrb[0].mxu0
    %v2214 = vadd.f32 %v430, %v2213
    %2215 = vdwg.mxu0
    %2216 = vmatprep.subr.bf16.mxu0 %v1538
    %2217 = vmatpush1.bf16.msra.mxu0 %v1537
    %2218 = vmatprep.subr.bf16.mxu0 %v1550
    %2219 = vmatpush1.bf16.msra.mxu0 %v1549
    %2220 = vmatprep.subr.bf16.mxu0 %v1562
    %2221 = vmatpush1.bf16.msra.mxu0 %v1561
    %2222 = vmatprep.subr.bf16.mxu0 %v1574
    %2223 = vmatpush1.bf16.msra.mxu0 %v1573
    %2224 = vmatprep.subr.bf16.mxu0 %v1586
    %2225 = vmatpush1.bf16.msra.mxu0 %v1585
    %2226 = vmatprep.subr.bf16.mxu0 %v1598
    %2227 = vmatpush1.bf16.msra.mxu0 %v1597
    %2228 = vmatprep.subr.bf16.mxu0 %v1610
    %2229 = vmatpush1.bf16.msra.mxu0 %v1609
    %2230 = vmatprep.subr.bf16.mxu0 %v1622
    %2231 = vmatpush1.bf16.msra.mxu0 %v1621
    %2232 = vmatprep.subr.bf16.mxu0 0
    %2233 = vmatpush1.bf16.msra.mxu0 0
    %2234 = vmatprep.subr.bf16.mxu0 0
    %2235 = vmatpush1.bf16.msra.mxu0 0
    %2236 = vmatprep.subr.bf16.mxu0 0
    %2237 = vmatpush1.bf16.msra.mxu0 0
    %2238 = vmatprep.subr.bf16.mxu0 0
    %2239 = vmatpush1.bf16.msra.mxu0 0
    %2240 = vmatprep.subr.bf16.mxu0 0
    %2241 = vmatpush1.bf16.msra.mxu0 0
    %2242 = vmatprep.subr.bf16.mxu0 0
    %2243 = vmatpush1.bf16.msra.mxu0 0
    %2244 = vmatprep.subr.bf16.mxu0 0
    %2245 = vmatpush1.bf16.msra.mxu0 0
    %2246 = vmatprep.subr.bf16.mxu0 0
    %2247 = vmatpush1.bf16.msra.mxu0 0
    %2248 = vmatprep.mubr.bf16.mxu0 0
    %2249 = vmatmul.mubr.bf16.gmra.mrb[0].mxu0 %v471
    %v2250 = vpop.f32.mrb[0].mxu0
    %v2251 = vadd.f32 %v2208, %v2250
    %v2252 = vpop.f32.mrb[0].mxu0
    %v2253 = vadd.f32 %v2210, %v2252
    %v2254 = vpop.f32.mrb[0].mxu0
    %v2255 = vadd.f32 %v2212, %v2254
    %v2256 = vpop.f32.mrb[0].mxu0
    %v2257 = vadd.f32 %v2214, %v2256
    %2258 = vdwg.mxu0
    %2259 = vmatprep.subr.bf16.mxu0 %v1348
    %2260 = vmatpush1.bf16.msra.mxu0 %v1347
    %2261 = vmatprep.subr.bf16.mxu0 %v1360
    %2262 = vmatpush1.bf16.msra.mxu0 %v1359
    %2263 = vmatprep.subr.bf16.mxu0 %v1372
    %2264 = vmatpush1.bf16.msra.mxu0 %v1371
    %2265 = vmatprep.subr.bf16.mxu0 %v1384
    %2266 = vmatpush1.bf16.msra.mxu0 %v1383
    %2267 = vmatprep.subr.bf16.mxu0 %v1396
    %2268 = vmatpush1.bf16.msra.mxu0 %v1395
    %2269 = vmatprep.subr.bf16.mxu0 %v1408
    %2270 = vmatpush1.bf16.msra.mxu0 %v1407
    %2271 = vmatprep.subr.bf16.mxu0 %v1420
    %2272 = vmatpush1.bf16.msra.mxu0 %v1419
    %2273 = vmatprep.subr.bf16.mxu0 %v1432
    %2274 = vmatpush1.bf16.msra.mxu0 %v1431
    %2275 = vmatprep.subr.bf16.mxu0 %v1444
    %2276 = vmatpush1.bf16.msra.mxu0 %v1443
    %2277 = vmatprep.subr.bf16.mxu0 %v1456
    %2278 = vmatpush1.bf16.msra.mxu0 %v1455
    %2279 = vmatprep.subr.bf16.mxu0 %v1468
    %2280 = vmatpush1.bf16.msra.mxu0 %v1467
    %2281 = vmatprep.subr.bf16.mxu0 %v1480
    %2282 = vmatpush1.bf16.msra.mxu0 %v1479
    %2283 = vmatprep.subr.bf16.mxu0 %v1492
    %2284 = vmatpush1.bf16.msra.mxu0 %v1491
    %2285 = vmatprep.subr.bf16.mxu0 %v1504
    %2286 = vmatpush1.bf16.msra.mxu0 %v1503
    %2287 = vmatprep.subr.bf16.mxu0 %v1516
    %2288 = vmatpush1.bf16.msra.mxu0 %v1515
    %2289 = vmatprep.subr.bf16.mxu0 %v1528
    %2290 = vmatpush1.bf16.msra.mxu0 %v1527
    %2291 = vmatprep.mubr.bf16.mxu0 %v470
    %2292 = vmatmul.mubr.bf16.gmra.mrb[0].mxu0 %v469
    %v2293 = vpop.f32.mrb[0].mxu0
    %v2294 = vadd.f32 %v434, %v2293
    %v2295 = vpop.f32.mrb[0].mxu0
    %v2296 = vadd.f32 %v438, %v2295
    %v2297 = vpop.f32.mrb[0].mxu0
    %v2298 = vadd.f32 %v434, %v2297
    %v2299 = vpop.f32.mrb[0].mxu0
    %v2300 = vadd.f32 %v438, %v2299
    %2301 = vdwg.mxu0
    %2302 = vmatprep.subr.bf16.mxu0 %v1540
    %2303 = vmatpush1.bf16.msra.mxu0 %v1539
    %2304 = vmatprep.subr.bf16.mxu0 %v1552
    %2305 = vmatpush1.bf16.msra.mxu0 %v1551
    %2306 = vmatprep.subr.bf16.mxu0 %v1564
    %2307 = vmatpush1.bf16.msra.mxu0 %v1563
    %2308 = vmatprep.subr.bf16.mxu0 %v1576
    %2309 = vmatpush1.bf16.msra.mxu0 %v1575
    %2310 = vmatprep.subr.bf16.mxu0 %v1588
    %2311 = vmatpush1.bf16.msra.mxu0 %v1587
    %2312 = vmatprep.subr.bf16.mxu0 %v1600
    %2313 = vmatpush1.bf16.msra.mxu0 %v1599
    %2314 = vmatprep.subr.bf16.mxu0 %v1612
    %2315 = vmatpush1.bf16.msra.mxu0 %v1611
    %2316 = vmatprep.subr.bf16.mxu0 %v1624
    %2317 = vmatpush1.bf16.msra.mxu0 %v1623
    %2318 = vmatprep.subr.bf16.mxu0 0
    %2319 = vmatpush1.bf16.msra.mxu0 0
    %2320 = vmatprep.subr.bf16.mxu0 0
    %2321 = vmatpush1.bf16.msra.mxu0 0
    %2322 = vmatprep.subr.bf16.mxu0 0
    %2323 = vmatpush1.bf16.msra.mxu0 0
    %2324 = vmatprep.subr.bf16.mxu0 0
    %2325 = vmatpush1.bf16.msra.mxu0 0
    %2326 = vmatprep.subr.bf16.mxu0 0
    %2327 = vmatpush1.bf16.msra.mxu0 0
    %2328 = vmatprep.subr.bf16.mxu0 0
    %2329 = vmatpush1.bf16.msra.mxu0 0
    %2330 = vmatprep.subr.bf16.mxu0 0
    %2331 = vmatpush1.bf16.msra.mxu0 0
    %2332 = vmatprep.subr.bf16.mxu0 0
    %2333 = vmatpush1.bf16.msra.mxu0 0
    %2334 = vmatprep.mubr.bf16.mxu0 0
    %2335 = vmatmul.mubr.bf16.gmra.mrb[0].mxu0 %v471
    %v2336 = vpop.f32.mrb[0].mxu0
    %v2337 = vadd.f32 %v2294, %v2336
    %v2338 = vpop.f32.mrb[0].mxu0
    %v2339 = vadd.f32 %v2296, %v2338
    %v2340 = vpop.f32.mrb[0].mxu0
    %v2341 = vadd.f32 %v2298, %v2340
    %v2342 = vpop.f32.mrb[0].mxu0
    %v2343 = vadd.f32 %v2300, %v2342
    %2344 = vdwg.mxu0
    %2345 = vmatprep.subr.bf16.mxu0 %v1350
    %2346 = vmatpush1.bf16.msra.mxu0 %v1349
    %2347 = vmatprep.subr.bf16.mxu0 %v1362
    %2348 = vmatpush1.bf16.msra.mxu0 %v1361
    %2349 = vmatprep.subr.bf16.mxu0 %v1374
    %2350 = vmatpush1.bf16.msra.mxu0 %v1373
    %2351 = vmatprep.subr.bf16.mxu0 %v1386
    %2352 = vmatpush1.bf16.msra.mxu0 %v1385
    %2353 = vmatprep.subr.bf16.mxu0 %v1398
    %2354 = vmatpush1.bf16.msra.mxu0 %v1397
    %2355 = vmatprep.subr.bf16.mxu0 %v1410
    %2356 = vmatpush1.bf16.msra.mxu0 %v1409
    %2357 = vmatprep.subr.bf16.mxu0 %v1422
    %2358 = vmatpush1.bf16.msra.mxu0 %v1421
    %2359 = vmatprep.subr.bf16.mxu0 %v1434
    %2360 = vmatpush1.bf16.msra.mxu0 %v1433
    %2361 = vmatprep.subr.bf16.mxu0 %v1446
    %2362 = vmatpush1.bf16.msra.mxu0 %v1445
    %2363 = vmatprep.subr.bf16.mxu0 %v1458
    %2364 = vmatpush1.bf16.msra.mxu0 %v1457
    %2365 = vmatprep.subr.bf16.mxu0 %v1470
    %2366 = vmatpush1.bf16.msra.mxu0 %v1469
    %2367 = vmatprep.subr.bf16.mxu0 %v1482
    %2368 = vmatpush1.bf16.msra.mxu0 %v1481
    %2369 = vmatprep.subr.bf16.mxu0 %v1494
    %2370 = vmatpush1.bf16.msra.mxu0 %v1493
    %2371 = vmatprep.subr.bf16.mxu0 %v1506
    %2372 = vmatpush1.bf16.msra.mxu0 %v1505
    %2373 = vmatprep.subr.bf16.mxu0 %v1518
    %2374 = vmatpush1.bf16.msra.mxu0 %v1517
    %2375 = vmatprep.subr.bf16.mxu0 %v1530
    %2376 = vmatpush1.bf16.msra.mxu0 %v1529
    %2377 = vmatprep.mubr.bf16.mxu0 %v470
    %2378 = vmatmul.mubr.bf16.gmra.mrb[0].mxu0 %v469
    %v2379 = vpop.f32.mrb[0].mxu0
    %v2380 = vadd.f32 %v442, %v2379
    %v2381 = vpop.f32.mrb[0].mxu0
    %v2382 = vadd.f32 %v446, %v2381
    %v2383 = vpop.f32.mrb[0].mxu0
    %v2384 = vadd.f32 %v442, %v2383
    %v2385 = vpop.f32.mrb[0].mxu0
    %v2386 = vadd.f32 %v446, %v2385
    %2387 = vdwg.mxu0
    %2388 = vmatprep.subr.bf16.mxu0 %v1542
    %2389 = vmatpush1.bf16.msra.mxu0 %v1541
    %2390 = vmatprep.subr.bf16.mxu0 %v1554
    %2391 = vmatpush1.bf16.msra.mxu0 %v1553
    %2392 = vmatprep.subr.bf16.mxu0 %v1566
    %2393 = vmatpush1.bf16.msra.mxu0 %v1565
    %2394 = vmatprep.subr.bf16.mxu0 %v1578
    %2395 = vmatpush1.bf16.msra.mxu0 %v1577
    %2396 = vmatprep.subr.bf16.mxu0 %v1590
    %2397 = vmatpush1.bf16.msra.mxu0 %v1589
    %2398 = vmatprep.subr.bf16.mxu0 %v1602
    %2399 = vmatpush1.bf16.msra.mxu0 %v1601
    %2400 = vmatprep.subr.bf16.mxu0 %v1614
    %2401 = vmatpush1.bf16.msra.mxu0 %v1613
    %2402 = vmatprep.subr.bf16.mxu0 %v1626
    %2403 = vmatpush1.bf16.msra.mxu0 %v1625
    %2404 = vmatprep.subr.bf16.mxu0 0
    %2405 = vmatpush1.bf16.msra.mxu0 0
    %2406 = vmatprep.subr.bf16.mxu0 0
    %2407 = vmatpush1.bf16.msra.mxu0 0
    %2408 = vmatprep.subr.bf16.mxu0 0
    %2409 = vmatpush1.bf16.msra.mxu0 0
    %2410 = vmatprep.subr.bf16.mxu0 0
    %2411 = vmatpush1.bf16.msra.mxu0 0
    %2412 = vmatprep.subr.bf16.mxu0 0
    %2413 = vmatpush1.bf16.msra.mxu0 0
    %2414 = vmatprep.subr.bf16.mxu0 0
    %2415 = vmatpush1.bf16.msra.mxu0 0
    %2416 = vmatprep.subr.bf16.mxu0 0
    %2417 = vmatpush1.bf16.msra.mxu0 0
    %2418 = vmatprep.subr.bf16.mxu0 0
    %2419 = vmatpush1.bf16.msra.mxu0 0
    %2420 = vmatprep.mubr.bf16.mxu0 0
    %2421 = vmatmul.mubr.bf16.gmra.mrb[0].mxu0 %v471
    %v2422 = vpop.f32.mrb[0].mxu0
    %v2423 = vadd.f32 %v2380, %v2422
    %v2424 = vpop.f32.mrb[0].mxu0
    %v2425 = vadd.f32 %v2382, %v2424
    %v2426 = vpop.f32.mrb[0].mxu0
    %v2427 = vadd.f32 %v2384, %v2426
    %v2428 = vpop.f32.mrb[0].mxu0
    %v2429 = vadd.f32 %v2386, %v2428
    %2430 = vdwg.mxu0
    %v2431 = vmax.f32 %v1993, 0.0
    %v2432 = vmax.f32 %v1995, 0.0
    %v2433 = vmax.f32 %v2079, 0.0
    %v2434 = vmax.f32 %v2081, 0.0
    %v2435 = vmax.f32 %v2165, 0.0
    %v2436 = vmax.f32 %v2167, 0.0
    %v2437 = vmax.f32 %v2251, 0.0
    %v2438 = vmax.f32 %v2253, 0.0
    %v2439 = vmax.f32 %v2337, 0.0
    %v2440 = vmax.f32 %v2339, 0.0
    %v2441 = vmax.f32 %v2423, 0.0
    %v2442 = vmax.f32 %v2425, 0.0
    %v2443 = vmax.f32 %v1997, 0.0
    %v2444 = vmax.f32 %v1999, 0.0
    %v2445 = vmax.f32 %v2083, 0.0
    %v2446 = vmax.f32 %v2085, 0.0
    %v2447 = vmax.f32 %v2169, 0.0
    %v2448 = vmax.f32 %v2171, 0.0
    %v2449 = vmax.f32 %v2255, 0.0
    %v2450 = vmax.f32 %v2257, 0.0
    %v2451 = vmax.f32 %v2341, 0.0
    %v2452 = vmax.f32 %v2343, 0.0
    %v2453 = vmax.f32 %v2427, 0.0
    %v2454 = vmax.f32 %v2429, 0.0
    %v2455 = vpack.c.bf16 %v2443, %v2431
    %v2456 = vpack.c.bf16 %v2444, %v2432
    %v2457 = vpack.c.bf16 %v2445, %v2433
    %v2458 = vpack.c.bf16 %v2446, %v2434
    %v2459 = vpack.c.bf16 %v2447, %v2435
    %v2460 = vpack.c.bf16 %v2448, %v2436
    %v2461 = vpack.c.bf16 %v2449, %v2437
    %v2462 = vpack.c.bf16 %v2450, %v2438
    %v2463 = vpack.c.bf16 %v2451, %v2439
    %v2464 = vpack.c.bf16 %v2452, %v2440
    %v2465 = vpack.c.bf16 %v2453, %v2441
    %v2466 = vpack.c.bf16 %v2454, %v2442
    %v2467 = vld [vmem:[#allocation8] sm:$0xff]
    %v2468 = vld [vmem:[#allocation8 + $0x8] sm:$0xf]
    %v2469 = vld [vmem:[#allocation8 + $0xc] sm:$0xff]
    %v2470 = vld [vmem:[#allocation8 + $0x14] sm:$0xf]
    %v2471 = vld [vmem:[#allocation8 + $0x18] sm:$0xff]
    %v2472 = vld [vmem:[#allocation8 + $0x20] sm:$0xf]
    %v2473 = vld [vmem:[#allocation8 + $0x24] sm:$0xff]
    %v2474 = vld [vmem:[#allocation8 + $0x2c] sm:$0xf]
    %v2475 = vld [vmem:[#allocation8 + $0x30] sm:$0xff]
    %v2476 = vld [vmem:[#allocation8 + $0x38] sm:$0xf]
    %v2477 = vld [vmem:[#allocation8 + $0x3c] sm:$0xff]
    %v2478 = vld [vmem:[#allocation8 + $0x44] sm:$0xf]
    %v2479 = vld [vmem:[#allocation8 + $0x48] sm:$0xff]
    %v2480 = vld [vmem:[#allocation8 + $0x50] sm:$0xf]
    %v2481 = vld [vmem:[#allocation8 + $0x54] sm:$0xff]
    %v2482 = vld [vmem:[#allocation8 + $0x5c] sm:$0xf]
    %v2483 = vld [vmem:[#allocation8 + $0x60] sm:$0xff]
    %v2484 = vld [vmem:[#allocation8 + $0x68] sm:$0xf]
    %v2485 = vld [vmem:[#allocation8 + $0x6c] sm:$0xff]
    %v2486 = vld [vmem:[#allocation8 + $0x74] sm:$0xf]
    %v2487 = vld [vmem:[#allocation8 + $0x78] sm:$0xff]
    %v2488 = vld [vmem:[#allocation8 + $0x80] sm:$0xf]
    %v2489 = vld [vmem:[#allocation8 + $0x84] sm:$0xff]
    %v2490 = vld [vmem:[#allocation8 + $0x8c] sm:$0xf]
    %v2491 = vld [vmem:[#allocation8 + $0x90] sm:$0xff]
    %v2492 = vld [vmem:[#allocation8 + $0x98] sm:$0xf]
    %v2493 = vld [vmem:[#allocation8 + $0x9c] sm:$0xff]
    %v2494 = vld [vmem:[#allocation8 + $0xa4] sm:$0xf]
    %v2495 = vld [vmem:[#allocation8 + $0xa8] sm:$0xff]
    %v2496 = vld [vmem:[#allocation8 + $0xb0] sm:$0xf]
    %v2497 = vld [vmem:[#allocation8 + $0xb4] sm:$0xff]
    %v2498 = vld [vmem:[#allocation8 + $0xbc] sm:$0xf]
    %v2499 = vld [vmem:[#allocation8 + $0xc0] sm:$0xff]
    %v2500 = vld [vmem:[#allocation8 + $0xc8] sm:$0xf]
    %v2501 = vld [vmem:[#allocation8 + $0xcc] sm:$0xff]
    %v2502 = vld [vmem:[#allocation8 + $0xd4] sm:$0xf]
    %v2503 = vld [vmem:[#allocation8 + $0xd8] sm:$0xff]
    %v2504 = vld [vmem:[#allocation8 + $0xe0] sm:$0xf]
    %v2505 = vld [vmem:[#allocation8 + $0xe4] sm:$0xff]
    %v2506 = vld [vmem:[#allocation8 + $0xec] sm:$0xf]
    %v2507 = vld [vmem:[#allocation8 + $0xf0] sm:$0xff]
    %v2508 = vld [vmem:[#allocation8 + $0xf8] sm:$0xf]
    %v2509 = vld [vmem:[#allocation8 + $0xfc] sm:$0xff]
    %v2510 = vld [vmem:[#allocation8 + $0x104] sm:$0xf]
    %v2511 = vld [vmem:[#allocation8 + $0x108] sm:$0xff]
    %v2512 = vld [vmem:[#allocation8 + $0x110] sm:$0xf]
    %v2513 = vld [vmem:[#allocation8 + $0x114] sm:$0xff]
    %v2514 = vld [vmem:[#allocation8 + $0x11c] sm:$0xf]
    %v2515 = vld [vmem:[#allocation8 + $0x120] sm:$0xff]
    %v2516 = vld [vmem:[#allocation8 + $0x128] sm:$0xf]
    %v2517 = vld [vmem:[#allocation8 + $0x12c] sm:$0xff]
    %v2518 = vld [vmem:[#allocation8 + $0x134] sm:$0xf]
    %v2519 = vld [vmem:[#allocation8 + $0x138] sm:$0xff]
    %v2520 = vld [vmem:[#allocation8 + $0x140] sm:$0xf]
    %v2521 = vld [vmem:[#allocation8 + $0x144] sm:$0xff]
    %v2522 = vld [vmem:[#allocation8 + $0x14c] sm:$0xf]
    %v2523 = vld [vmem:[#allocation8 + $0x150] sm:$0xff]
    %v2524 = vld [vmem:[#allocation8 + $0x158] sm:$0xf]
    %v2525 = vld [vmem:[#allocation8 + $0x15c] sm:$0xff]
    %v2526 = vld [vmem:[#allocation8 + $0x164] sm:$0xf]
    %v2527 = vld [vmem:[#allocation8 + $0x168] sm:$0xff]
    %v2528 = vld [vmem:[#allocation8 + $0x170] sm:$0xf]
    %v2529 = vld [vmem:[#allocation8 + $0x174] sm:$0xff]
    %v2530 = vld [vmem:[#allocation8 + $0x17c] sm:$0xf]
    %v2531 = vld [vmem:[#allocation8 + $0x180] sm:$0xff]
    %v2532 = vld [vmem:[#allocation8 + $0x188] sm:$0xf]
    %v2533 = vld [vmem:[#allocation8 + $0x18c] sm:$0xff]
    %v2534 = vld [vmem:[#allocation8 + $0x194] sm:$0xf]
    %v2535 = vld [vmem:[#allocation8 + $0x198] sm:$0xff]
    %v2536 = vld [vmem:[#allocation8 + $0x1a0] sm:$0xf]
    %v2537 = vld [vmem:[#allocation8 + $0x1a4] sm:$0xff]
    %v2538 = vld [vmem:[#allocation8 + $0x1ac] sm:$0xf]
    %v2539 = vld [vmem:[#allocation8 + $0x1b0] sm:$0xff]
    %v2540 = vld [vmem:[#allocation8 + $0x1b8] sm:$0xf]
    %v2541 = vld [vmem:[#allocation8 + $0x1bc] sm:$0xff]
    %v2542 = vld [vmem:[#allocation8 + $0x1c4] sm:$0xf]
    %v2543 = vld [vmem:[#allocation8 + $0x1c8] sm:$0xff]
    %v2544 = vld [vmem:[#allocation8 + $0x1d0] sm:$0xf]
    %v2545 = vld [vmem:[#allocation8 + $0x1d4] sm:$0xff]
    %v2546 = vld [vmem:[#allocation8 + $0x1dc] sm:$0xf]
    %v2547 = vld [vmem:[#allocation8 + $0x1e0] sm:$0xff]
    %v2548 = vld [vmem:[#allocation8 + $0x1e8] sm:$0xf]
    %v2549 = vld [vmem:[#allocation8 + $0x1ec] sm:$0xff]
    %v2550 = vld [vmem:[#allocation8 + $0x1f4] sm:$0xf]
    %v2551 = vld [vmem:[#allocation8 + $0x1f8] sm:$0xff]
    %v2552 = vld [vmem:[#allocation8 + $0x200] sm:$0xf]
    %v2553 = vld [vmem:[#allocation8 + $0x204] sm:$0xff]
    %v2554 = vld [vmem:[#allocation8 + $0x20c] sm:$0xf]
    %v2555 = vld [vmem:[#allocation8 + $0x210] sm:$0xff]
    %v2556 = vld [vmem:[#allocation8 + $0x218] sm:$0xf]
    %v2557 = vld [vmem:[#allocation8 + $0x21c] sm:$0xff]
    %v2558 = vld [vmem:[#allocation8 + $0x224] sm:$0xf]
    %v2559 = vld [vmem:[#allocation8 + $0x228] sm:$0xff]
    %v2560 = vld [vmem:[#allocation8 + $0x230] sm:$0xf]
    %v2561 = vld [vmem:[#allocation8 + $0x234] sm:$0xff]
    %v2562 = vld [vmem:[#allocation8 + $0x23c] sm:$0xf]
    %v2563 = vld [vmem:[#allocation8 + $0x240] sm:$0xff]
    %v2564 = vld [vmem:[#allocation8 + $0x248] sm:$0xf]
    %v2565 = vld [vmem:[#allocation8 + $0x24c] sm:$0xff]
    %v2566 = vld [vmem:[#allocation8 + $0x254] sm:$0xf]
    %v2567 = vld [vmem:[#allocation8 + $0x258] sm:$0xff]
    %v2568 = vld [vmem:[#allocation8 + $0x260] sm:$0xf]
    %v2569 = vld [vmem:[#allocation8 + $0x264] sm:$0xff]
    %v2570 = vld [vmem:[#allocation8 + $0x26c] sm:$0xf]
    %v2571 = vld [vmem:[#allocation8 + $0x270] sm:$0xff]
    %v2572 = vld [vmem:[#allocation8 + $0x278] sm:$0xf]
    %v2573 = vld [vmem:[#allocation8 + $0x27c] sm:$0xff]
    %v2574 = vld [vmem:[#allocation8 + $0x284] sm:$0xf]
    %v2575 = vld [vmem:[#allocation8 + $0x288] sm:$0xff]
    %v2576 = vld [vmem:[#allocation8 + $0x290] sm:$0xf]
    %v2577 = vld [vmem:[#allocation8 + $0x294] sm:$0xff]
    %v2578 = vld [vmem:[#allocation8 + $0x29c] sm:$0xf]
    %v2579 = vld [vmem:[#allocation8 + $0x2a0] sm:$0xff]
    %v2580 = vld [vmem:[#allocation8 + $0x2a8] sm:$0xf]
    %v2581 = vld [vmem:[#allocation8 + $0x2ac] sm:$0xff]
    %v2582 = vld [vmem:[#allocation8 + $0x2b4] sm:$0xf]
    %v2583 = vld [vmem:[#allocation8 + $0x2b8] sm:$0xff]
    %v2584 = vld [vmem:[#allocation8 + $0x2c0] sm:$0xf]
    %v2585 = vld [vmem:[#allocation8 + $0x2c4] sm:$0xff]
    %v2586 = vld [vmem:[#allocation8 + $0x2cc] sm:$0xf]
    %v2587 = vld [vmem:[#allocation8 + $0x2d0] sm:$0xff]
    %v2588 = vld [vmem:[#allocation8 + $0x2d8] sm:$0xf]
    %v2589 = vld [vmem:[#allocation8 + $0x2dc] sm:$0xff]
    %v2590 = vld [vmem:[#allocation8 + $0x2e4] sm:$0xf]
    %v2591 = vld [vmem:[#allocation8 + $0x2e8] sm:$0xff]
    %v2592 = vld [vmem:[#allocation8 + $0x2f0] sm:$0xf]
    %v2593 = vld [vmem:[#allocation8 + $0x2f4] sm:$0xff]
    %v2594 = vld [vmem:[#allocation8 + $0x2fc] sm:$0xf]
    %v2595 = vld [vmem:[#allocation8 + $0x300] sm:$0xff]
    %v2596 = vld [vmem:[#allocation8 + $0x308] sm:$0xf]
    %v2597 = vld [vmem:[#allocation8 + $0x30c] sm:$0xff]
    %v2598 = vld [vmem:[#allocation8 + $0x314] sm:$0xf]
    %v2599 = vld [vmem:[#allocation8 + $0x318] sm:$0xff]
    %v2600 = vld [vmem:[#allocation8 + $0x320] sm:$0xf]
    %v2601 = vld [vmem:[#allocation8 + $0x324] sm:$0xff]
    %v2602 = vld [vmem:[#allocation8 + $0x32c] sm:$0xf]
    %v2603 = vld [vmem:[#allocation8 + $0x330] sm:$0xff]
    %v2604 = vld [vmem:[#allocation8 + $0x338] sm:$0xf]
    %v2605 = vld [vmem:[#allocation8 + $0x33c] sm:$0xff]
    %v2606 = vld [vmem:[#allocation8 + $0x344] sm:$0xf]
    %v2607 = vld [vmem:[#allocation8 + $0x348] sm:$0xff]
    %v2608 = vld [vmem:[#allocation8 + $0x350] sm:$0xf]
    %v2609 = vld [vmem:[#allocation8 + $0x354] sm:$0xff]
    %v2610 = vld [vmem:[#allocation8 + $0x35c] sm:$0xf]
    %v2611 = vld [vmem:[#allocation8 + $0x360] sm:$0xff]
    %v2612 = vld [vmem:[#allocation8 + $0x368] sm:$0xf]
    %v2613 = vld [vmem:[#allocation8 + $0x36c] sm:$0xff]
    %v2614 = vld [vmem:[#allocation8 + $0x374] sm:$0xf]
    %v2615 = vld [vmem:[#allocation8 + $0x378] sm:$0xff]
    %v2616 = vld [vmem:[#allocation8 + $0x380] sm:$0xf]
    %v2617 = vld [vmem:[#allocation8 + $0x384] sm:$0xff]
    %v2618 = vld [vmem:[#allocation8 + $0x38c] sm:$0xf]
    %v2619 = vld [vmem:[#allocation8 + $0x390] sm:$0xff]
    %v2620 = vld [vmem:[#allocation8 + $0x398] sm:$0xf]
    %v2621 = vld [vmem:[#allocation8 + $0x39c] sm:$0xff]
    %v2622 = vld [vmem:[#allocation8 + $0x3a4] sm:$0xf]
    %v2623 = vld [vmem:[#allocation8 + $0x3a8] sm:$0xff]
    %v2624 = vld [vmem:[#allocation8 + $0x3b0] sm:$0xf]
    %v2625 = vld [vmem:[#allocation8 + $0x3b4] sm:$0xff]
    %v2626 = vld [vmem:[#allocation8 + $0x3bc] sm:$0xf]
    %v2627 = vld [vmem:[#allocation8 + $0x3c0] sm:$0xff]
    %v2628 = vld [vmem:[#allocation8 + $0x3c8] sm:$0xf]
    %v2629 = vld [vmem:[#allocation8 + $0x3cc] sm:$0xff]
    %v2630 = vld [vmem:[#allocation8 + $0x3d4] sm:$0xf]
    %v2631 = vld [vmem:[#allocation8 + $0x3d8] sm:$0xff]
    %v2632 = vld [vmem:[#allocation8 + $0x3e0] sm:$0xf]
    %v2633 = vld [vmem:[#allocation8 + $0x3e4] sm:$0xff]
    %v2634 = vld [vmem:[#allocation8 + $0x3ec] sm:$0xf]
    %v2635 = vld [vmem:[#allocation8 + $0x3f0] sm:$0xff]
    %v2636 = vld [vmem:[#allocation8 + $0x3f8] sm:$0xf]
    %v2637 = vld [vmem:[#allocation8 + $0x3fc] sm:$0xff]
    %v2638 = vld [vmem:[#allocation8 + $0x404] sm:$0xf]
    %v2639 = vld [vmem:[#allocation8 + $0x408] sm:$0xff]
    %v2640 = vld [vmem:[#allocation8 + $0x410] sm:$0xf]
    %v2641 = vld [vmem:[#allocation8 + $0x414] sm:$0xff]
    %v2642 = vld [vmem:[#allocation8 + $0x41c] sm:$0xf]
    %v2643 = vld [vmem:[#allocation8 + $0x420] sm:$0xff]
    %v2644 = vld [vmem:[#allocation8 + $0x428] sm:$0xf]
    %v2645 = vld [vmem:[#allocation8 + $0x42c] sm:$0xff]
    %v2646 = vld [vmem:[#allocation8 + $0x434] sm:$0xf]
    %v2647 = vld [vmem:[#allocation8 + $0x438] sm:$0xff]
    %v2648 = vld [vmem:[#allocation8 + $0x440] sm:$0xf]
    %v2649 = vld [vmem:[#allocation8 + $0x444] sm:$0xff]
    %v2650 = vld [vmem:[#allocation8 + $0x44c] sm:$0xf]
    %v2651 = vld [vmem:[#allocation8 + $0x450] sm:$0xff]
    %v2652 = vld [vmem:[#allocation8 + $0x458] sm:$0xf]
    %v2653 = vld [vmem:[#allocation8 + $0x45c] sm:$0xff]
    %v2654 = vld [vmem:[#allocation8 + $0x464] sm:$0xf]
    %v2655 = vld [vmem:[#allocation8 + $0x468] sm:$0xff]
    %v2656 = vld [vmem:[#allocation8 + $0x470] sm:$0xf]
    %v2657 = vld [vmem:[#allocation8 + $0x474] sm:$0xff]
    %v2658 = vld [vmem:[#allocation8 + $0x47c] sm:$0xf]
    %v2659 = vld [vmem:[#allocation8 + $0x480] sm:$0xff]
    %v2660 = vld [vmem:[#allocation8 + $0x488] sm:$0xf]
    %v2661 = vld [vmem:[#allocation8 + $0x48c] sm:$0xff]
    %v2662 = vld [vmem:[#allocation8 + $0x494] sm:$0xf]
    %v2663 = vld [vmem:[#allocation8 + $0x498] sm:$0xff]
    %v2664 = vld [vmem:[#allocation8 + $0x4a0] sm:$0xf]
    %v2665 = vld [vmem:[#allocation8 + $0x4a4] sm:$0xff]
    %v2666 = vld [vmem:[#allocation8 + $0x4ac] sm:$0xf]
    %v2667 = vld [vmem:[#allocation8 + $0x4b0] sm:$0xff]
    %v2668 = vld [vmem:[#allocation8 + $0x4b8] sm:$0xf]
    %v2669 = vld [vmem:[#allocation8 + $0x4bc] sm:$0xff]
    %v2670 = vld [vmem:[#allocation8 + $0x4c4] sm:$0xf]
    %v2671 = vld [vmem:[#allocation8 + $0x4c8] sm:$0xff]
    %v2672 = vld [vmem:[#allocation8 + $0x4d0] sm:$0xf]
    %v2673 = vld [vmem:[#allocation8 + $0x4d4] sm:$0xff]
    %v2674 = vld [vmem:[#allocation8 + $0x4dc] sm:$0xf]
    %v2675 = vld [vmem:[#allocation8 + $0x4e0] sm:$0xff]
    %v2676 = vld [vmem:[#allocation8 + $0x4e8] sm:$0xf]
    %v2677 = vld [vmem:[#allocation8 + $0x4ec] sm:$0xff]
    %v2678 = vld [vmem:[#allocation8 + $0x4f4] sm:$0xf]
    %v2679 = vld [vmem:[#allocation8 + $0x4f8] sm:$0xff]
    %v2680 = vld [vmem:[#allocation8 + $0x500] sm:$0xf]
    %v2681 = vld [vmem:[#allocation8 + $0x504] sm:$0xff]
    %v2682 = vld [vmem:[#allocation8 + $0x50c] sm:$0xf]
    %v2683 = vld [vmem:[#allocation8 + $0x510] sm:$0xff]
    %v2684 = vld [vmem:[#allocation8 + $0x518] sm:$0xf]
    %v2685 = vld [vmem:[#allocation8 + $0x51c] sm:$0xff]
    %v2686 = vld [vmem:[#allocation8 + $0x524] sm:$0xf]
    %v2687 = vld [vmem:[#allocation8 + $0x528] sm:$0xff]
    %v2688 = vld [vmem:[#allocation8 + $0x530] sm:$0xf]
    %v2689 = vld [vmem:[#allocation8 + $0x534] sm:$0xff]
    %v2690 = vld [vmem:[#allocation8 + $0x53c] sm:$0xf]
    %v2691 = vld [vmem:[#allocation8 + $0x540] sm:$0xff]
    %v2692 = vld [vmem:[#allocation8 + $0x548] sm:$0xf]
    %v2693 = vld [vmem:[#allocation8 + $0x54c] sm:$0xff]
    %v2694 = vld [vmem:[#allocation8 + $0x554] sm:$0xf]
    %v2695 = vld [vmem:[#allocation8 + $0x558] sm:$0xff]
    %v2696 = vld [vmem:[#allocation8 + $0x560] sm:$0xf]
    %v2697 = vld [vmem:[#allocation8 + $0x564] sm:$0xff]
    %v2698 = vld [vmem:[#allocation8 + $0x56c] sm:$0xf]
    %v2699 = vld [vmem:[#allocation8 + $0x570] sm:$0xff]
    %v2700 = vld [vmem:[#allocation8 + $0x578] sm:$0xf]
    %v2701 = vld [vmem:[#allocation8 + $0x57c] sm:$0xff]
    %v2702 = vld [vmem:[#allocation8 + $0x584] sm:$0xf]
    %v2703 = vld [vmem:[#allocation8 + $0x588] sm:$0xff]
    %v2704 = vld [vmem:[#allocation8 + $0x590] sm:$0xf]
    %v2705 = vld [vmem:[#allocation8 + $0x594] sm:$0xff]
    %v2706 = vld [vmem:[#allocation8 + $0x59c] sm:$0xf]
    %v2707 = vld [vmem:[#allocation8 + $0x5a0] sm:$0xff]
    %v2708 = vld [vmem:[#allocation8 + $0x5a8] sm:$0xf]
    %v2709 = vld [vmem:[#allocation8 + $0x5ac] sm:$0xff]
    %v2710 = vld [vmem:[#allocation8 + $0x5b4] sm:$0xf]
    %v2711 = vld [vmem:[#allocation8 + $0x5b8] sm:$0xff]
    %v2712 = vld [vmem:[#allocation8 + $0x5c0] sm:$0xf]
    %v2713 = vld [vmem:[#allocation8 + $0x5c4] sm:$0xff]
    %v2714 = vld [vmem:[#allocation8 + $0x5cc] sm:$0xf]
    %v2715 = vld [vmem:[#allocation8 + $0x5d0] sm:$0xff]
    %v2716 = vld [vmem:[#allocation8 + $0x5d8] sm:$0xf]
    %v2717 = vld [vmem:[#allocation8 + $0x5dc] sm:$0xff]
    %v2718 = vld [vmem:[#allocation8 + $0x5e4] sm:$0xf]
    %v2719 = vld [vmem:[#allocation8 + $0x5e8] sm:$0xff]
    %v2720 = vld [vmem:[#allocation8 + $0x5f0] sm:$0xf]
    %v2721 = vld [vmem:[#allocation8 + $0x5f4] sm:$0xff]
    %v2722 = vld [vmem:[#allocation8 + $0x5fc] sm:$0xf]
    %v2723 = vld [vmem:[#allocation8 + $0x600] sm:$0xff]
    %v2724 = vld [vmem:[#allocation8 + $0x608] sm:$0xf]
    %v2725 = vld [vmem:[#allocation8 + $0x60c] sm:$0xff]
    %v2726 = vld [vmem:[#allocation8 + $0x614] sm:$0xf]
    %v2727 = vld [vmem:[#allocation8 + $0x618] sm:$0xff]
    %v2728 = vld [vmem:[#allocation8 + $0x620] sm:$0xf]
    %v2729 = vld [vmem:[#allocation8 + $0x624] sm:$0xff]
    %v2730 = vld [vmem:[#allocation8 + $0x62c] sm:$0xf]
    %v2731 = vld [vmem:[#allocation8 + $0x630] sm:$0xff]
    %v2732 = vld [vmem:[#allocation8 + $0x638] sm:$0xf]
    %v2733 = vld [vmem:[#allocation8 + $0x63c] sm:$0xff]
    %v2734 = vld [vmem:[#allocation8 + $0x644] sm:$0xf]
    %v2735 = vld [vmem:[#allocation8 + $0x648] sm:$0xff]
    %v2736 = vld [vmem:[#allocation8 + $0x650] sm:$0xf]
    %v2737 = vld [vmem:[#allocation8 + $0x654] sm:$0xff]
    %v2738 = vld [vmem:[#allocation8 + $0x65c] sm:$0xf]
    %v2739 = vld [vmem:[#allocation8 + $0x660] sm:$0xff]
    %v2740 = vld [vmem:[#allocation8 + $0x668] sm:$0xf]
    %v2741 = vld [vmem:[#allocation8 + $0x66c] sm:$0xff]
    %v2742 = vld [vmem:[#allocation8 + $0x674] sm:$0xf]
    %v2743 = vld [vmem:[#allocation8 + $0x678] sm:$0xff]
    %v2744 = vld [vmem:[#allocation8 + $0x680] sm:$0xf]
    %v2745 = vld [vmem:[#allocation8 + $0x684] sm:$0xff]
    %v2746 = vld [vmem:[#allocation8 + $0x68c] sm:$0xf]
    %v2747 = vld [vmem:[#allocation8 + $0x690] sm:$0xff]
    %v2748 = vld [vmem:[#allocation8 + $0x698] sm:$0xf]
    %v2749 = vld [vmem:[#allocation8 + $0x69c] sm:$0xff]
    %v2750 = vld [vmem:[#allocation8 + $0x6a4] sm:$0xf]
    %v2751 = vld [vmem:[#allocation8 + $0x6a8] sm:$0xff]
    %v2752 = vld [vmem:[#allocation8 + $0x6b0] sm:$0xf]
    %v2753 = vld [vmem:[#allocation8 + $0x6b4] sm:$0xff]
    %v2754 = vld [vmem:[#allocation8 + $0x6bc] sm:$0xf]
    %v2755 = vld [vmem:[#allocation8 + $0x6c0] sm:$0xff]
    %v2756 = vld [vmem:[#allocation8 + $0x6c8] sm:$0xf]
    %v2757 = vld [vmem:[#allocation8 + $0x6cc] sm:$0xff]
    %v2758 = vld [vmem:[#allocation8 + $0x6d4] sm:$0xf]
    %v2759 = vld [vmem:[#allocation8 + $0x6d8] sm:$0xff]
    %v2760 = vld [vmem:[#allocation8 + $0x6e0] sm:$0xf]
    %v2761 = vld [vmem:[#allocation8 + $0x6e4] sm:$0xff]
    %v2762 = vld [vmem:[#allocation8 + $0x6ec] sm:$0xf]
    %v2763 = vld [vmem:[#allocation8 + $0x6f0] sm:$0xff]
    %v2764 = vld [vmem:[#allocation8 + $0x6f8] sm:$0xf]
    %v2765 = vld [vmem:[#allocation8 + $0x6fc] sm:$0xff]
    %v2766 = vld [vmem:[#allocation8 + $0x704] sm:$0xf]
    %v2767 = vld [vmem:[#allocation8 + $0x708] sm:$0xff]
    %v2768 = vld [vmem:[#allocation8 + $0x710] sm:$0xf]
    %v2769 = vld [vmem:[#allocation8 + $0x714] sm:$0xff]
    %v2770 = vld [vmem:[#allocation8 + $0x71c] sm:$0xf]
    %v2771 = vld [vmem:[#allocation8 + $0x720] sm:$0xff]
    %v2772 = vld [vmem:[#allocation8 + $0x728] sm:$0xf]
    %v2773 = vld [vmem:[#allocation8 + $0x72c] sm:$0xff]
    %v2774 = vld [vmem:[#allocation8 + $0x734] sm:$0xf]
    %v2775 = vld [vmem:[#allocation8 + $0x738] sm:$0xff]
    %v2776 = vld [vmem:[#allocation8 + $0x740] sm:$0xf]
    %v2777 = vld [vmem:[#allocation8 + $0x744] sm:$0xff]
    %v2778 = vld [vmem:[#allocation8 + $0x74c] sm:$0xf]
    %v2779 = vld [vmem:[#allocation8 + $0x750] sm:$0xff]
    %v2780 = vld [vmem:[#allocation8 + $0x758] sm:$0xf]
    %v2781 = vld [vmem:[#allocation8 + $0x75c] sm:$0xff]
    %v2782 = vld [vmem:[#allocation8 + $0x764] sm:$0xf]
    %v2783 = vld [vmem:[#allocation8 + $0x768] sm:$0xff]
    %v2784 = vld [vmem:[#allocation8 + $0x770] sm:$0xf]
    %v2785 = vld [vmem:[#allocation8 + $0x774] sm:$0xff]
    %v2786 = vld [vmem:[#allocation8 + $0x77c] sm:$0xf]
    %v2787 = vld [vmem:[#allocation8 + $0x780] sm:$0xff]
    %v2788 = vld [vmem:[#allocation8 + $0x788] sm:$0xf]
    %v2789 = vld [vmem:[#allocation8 + $0x78c] sm:$0xff]
    %v2790 = vld [vmem:[#allocation8 + $0x794] sm:$0xf]
    %v2791 = vld [vmem:[#allocation8 + $0x798] sm:$0xff]
    %v2792 = vld [vmem:[#allocation8 + $0x7a0] sm:$0xf]
    %v2793 = vld [vmem:[#allocation8 + $0x7a4] sm:$0xff]
    %v2794 = vld [vmem:[#allocation8 + $0x7ac] sm:$0xf]
    %v2795 = vld [vmem:[#allocation8 + $0x7b0] sm:$0xff]
    %v2796 = vld [vmem:[#allocation8 + $0x7b8] sm:$0xf]
    %v2797 = vld [vmem:[#allocation8 + $0x7bc] sm:$0xff]
    %v2798 = vld [vmem:[#allocation8 + $0x7c4] sm:$0xf]
    %v2799 = vld [vmem:[#allocation8 + $0x7c8] sm:$0xff]
    %v2800 = vld [vmem:[#allocation8 + $0x7d0] sm:$0xf]
    %v2801 = vld [vmem:[#allocation8 + $0x7d4] sm:$0xff]
    %v2802 = vld [vmem:[#allocation8 + $0x7dc] sm:$0xf]
    %v2803 = vld [vmem:[#allocation8 + $0x7e0] sm:$0xff]
    %v2804 = vld [vmem:[#allocation8 + $0x7e8] sm:$0xf]
    %v2805 = vld [vmem:[#allocation8 + $0x7ec] sm:$0xff]
    %v2806 = vld [vmem:[#allocation8 + $0x7f4] sm:$0xf]
    %v2807 = vld [vmem:[#allocation8 + $0x7f8] sm:$0xff]
    %v2808 = vld [vmem:[#allocation8 + $0x800] sm:$0xf]
    %v2809 = vld [vmem:[#allocation8 + $0x804] sm:$0xff]
    %v2810 = vld [vmem:[#allocation8 + $0x80c] sm:$0xf]
    %v2811 = vld [vmem:[#allocation8 + $0x810] sm:$0xff]
    %v2812 = vld [vmem:[#allocation8 + $0x818] sm:$0xf]
    %v2813 = vld [vmem:[#allocation8 + $0x81c] sm:$0xff]
    %v2814 = vld [vmem:[#allocation8 + $0x824] sm:$0xf]
    %v2815 = vld [vmem:[#allocation8 + $0x828] sm:$0xff]
    %v2816 = vld [vmem:[#allocation8 + $0x830] sm:$0xf]
    %v2817 = vld [vmem:[#allocation8 + $0x834] sm:$0xff]
    %v2818 = vld [vmem:[#allocation8 + $0x83c] sm:$0xf]
    %v2819 = vld [vmem:[#allocation8 + $0x840] sm:$0xff]
    %v2820 = vld [vmem:[#allocation8 + $0x848] sm:$0xf]
    %v2821 = vld [vmem:[#allocation8 + $0x84c] sm:$0xff]
    %v2822 = vld [vmem:[#allocation8 + $0x854] sm:$0xf]
    %v2823 = vld [vmem:[#allocation8 + $0x858] sm:$0xff]
    %v2824 = vld [vmem:[#allocation8 + $0x860] sm:$0xf]
    %v2825 = vld [vmem:[#allocation8 + $0x864] sm:$0xff]
    %v2826 = vld [vmem:[#allocation8 + $0x86c] sm:$0xf]
    %v2827 = vld [vmem:[#allocation8 + $0x870] sm:$0xff]
    %v2828 = vld [vmem:[#allocation8 + $0x878] sm:$0xf]
    %v2829 = vld [vmem:[#allocation8 + $0x87c] sm:$0xff]
    %v2830 = vld [vmem:[#allocation8 + $0x884] sm:$0xf]
    %v2831 = vld [vmem:[#allocation8 + $0x888] sm:$0xff]
    %v2832 = vld [vmem:[#allocation8 + $0x890] sm:$0xf]
    %v2833 = vld [vmem:[#allocation8 + $0x894] sm:$0xff]
    %v2834 = vld [vmem:[#allocation8 + $0x89c] sm:$0xf]
    %v2835 = vld [vmem:[#allocation8 + $0x8a0] sm:$0xff]
    %v2836 = vld [vmem:[#allocation8 + $0x8a8] sm:$0xf]
    %v2837 = vld [vmem:[#allocation8 + $0x8ac] sm:$0xff]
    %v2838 = vld [vmem:[#allocation8 + $0x8b4] sm:$0xf]
    %v2839 = vld [vmem:[#allocation8 + $0x8b8] sm:$0xff]
    %v2840 = vld [vmem:[#allocation8 + $0x8c0] sm:$0xf]
    %v2841 = vld [vmem:[#allocation8 + $0x8c4] sm:$0xff]
    %v2842 = vld [vmem:[#allocation8 + $0x8cc] sm:$0xf]
    %v2843 = vld [vmem:[#allocation8 + $0x8d0] sm:$0xff]
    %v2844 = vld [vmem:[#allocation8 + $0x8d8] sm:$0xf]
    %v2845 = vld [vmem:[#allocation8 + $0x8dc] sm:$0xff]
    %v2846 = vld [vmem:[#allocation8 + $0x8e4] sm:$0xf]
    %v2847 = vld [vmem:[#allocation8 + $0x8e8] sm:$0xff]
    %v2848 = vld [vmem:[#allocation8 + $0x8f0] sm:$0xf]
    %v2849 = vld [vmem:[#allocation8 + $0x8f4] sm:$0xff]
    %v2850 = vld [vmem:[#allocation8 + $0x8fc] sm:$0xf]
    %v2851 = vld [vmem:[#allocation10] sm:$0x7]
    %v2853 = vlaneseq
    %v2854 = vshrl.u32 %v2853, 7
    %v2855 = vsub.s32 0, %v2854
    %v2856 = vrot.slane %v2851, %v2855
    %v2857 = vlaneseq
    %v2858 = vshrl.u32 %v2857, 7
    %v2859 = vsub.s32 1, %v2858
    %v2860 = vrot.slane %v2851, %v2859
    %v2861 = vlaneseq
    %v2862 = vshrl.u32 %v2861, 7
    %v2863 = vsub.s32 2, %v2862
    %v2864 = vrot.slane %v2851, %v2863
    %v3252 = vunpack.c.l.b16 %v2467
    %v3253 = vunpack.c.h.b16 %v2467
    %v3254 = vunpack.c.l.b16 %v2468
    %v3255 = vunpack.c.l.b16 %v2469
    %v3256 = vunpack.c.h.b16 %v2469
    %v3257 = vunpack.c.l.b16 %v2470
    %v3258 = vunpack.c.l.b16 %v2471
    %v3259 = vunpack.c.h.b16 %v2471
    %v3260 = vunpack.c.l.b16 %v2472
    %v3261 = vunpack.c.l.b16 %v2473
    %v3262 = vunpack.c.h.b16 %v2473
    %v3263 = vunpack.c.l.b16 %v2474
    %v3264 = vunpack.c.l.b16 %v2475
    %v3265 = vunpack.c.h.b16 %v2475
    %v3266 = vunpack.c.l.b16 %v2476
    %v3267 = vunpack.c.l.b16 %v2477
    %v3268 = vunpack.c.h.b16 %v2477
    %v3269 = vunpack.c.l.b16 %v2478
    %v3270 = vunpack.c.l.b16 %v2479
    %v3271 = vunpack.c.h.b16 %v2479
    %v3272 = vunpack.c.l.b16 %v2480
    %v3273 = vunpack.c.l.b16 %v2481
    %v3274 = vunpack.c.h.b16 %v2481
    %v3275 = vunpack.c.l.b16 %v2482
    %v3276 = vunpack.c.l.b16 %v2483
    %v3277 = vunpack.c.h.b16 %v2483
    %v3278 = vunpack.c.l.b16 %v2484
    %v3279 = vunpack.c.l.b16 %v2485
    %v3280 = vunpack.c.h.b16 %v2485
    %v3281 = vunpack.c.l.b16 %v2486
    %v3282 = vunpack.c.l.b16 %v2487
    %v3283 = vunpack.c.h.b16 %v2487
    %v3284 = vunpack.c.l.b16 %v2488
    %v3285 = vunpack.c.l.b16 %v2489
    %v3286 = vunpack.c.h.b16 %v2489
    %v3287 = vunpack.c.l.b16 %v2490
    %v3288 = vunpack.c.l.b16 %v2491
    %v3289 = vunpack.c.h.b16 %v2491
    %v3290 = vunpack.c.l.b16 %v2492
    %v3291 = vunpack.c.l.b16 %v2493
    %v3292 = vunpack.c.h.b16 %v2493
    %v3293 = vunpack.c.l.b16 %v2494
    %v3294 = vunpack.c.l.b16 %v2495
    %v3295 = vunpack.c.h.b16 %v2495
    %v3296 = vunpack.c.l.b16 %v2496
    %v3297 = vunpack.c.l.b16 %v2497
    %v3298 = vunpack.c.h.b16 %v2497
    %v3299 = vunpack.c.l.b16 %v2498
    %v3300 = vunpack.c.l.b16 %v2499
    %v3301 = vunpack.c.h.b16 %v2499
    %v3302 = vunpack.c.l.b16 %v2500
    %v3303 = vunpack.c.l.b16 %v2501
    %v3304 = vunpack.c.h.b16 %v2501
    %v3305 = vunpack.c.l.b16 %v2502
    %v3306 = vunpack.c.l.b16 %v2503
    %v3307 = vunpack.c.h.b16 %v2503
    %v3308 = vunpack.c.l.b16 %v2504
    %v3309 = vunpack.c.l.b16 %v2505
    %v3310 = vunpack.c.h.b16 %v2505
    %v3311 = vunpack.c.l.b16 %v2506
    %v3312 = vunpack.c.l.b16 %v2507
    %v3313 = vunpack.c.h.b16 %v2507
    %v3314 = vunpack.c.l.b16 %v2508
    %v3315 = vunpack.c.l.b16 %v2509
    %v3316 = vunpack.c.h.b16 %v2509
    %v3317 = vunpack.c.l.b16 %v2510
    %v3318 = vunpack.c.l.b16 %v2511
    %v3319 = vunpack.c.h.b16 %v2511
    %v3320 = vunpack.c.l.b16 %v2512
    %v3321 = vunpack.c.l.b16 %v2513
    %v3322 = vunpack.c.h.b16 %v2513
    %v3323 = vunpack.c.l.b16 %v2514
    %v3324 = vunpack.c.l.b16 %v2515
    %v3325 = vunpack.c.h.b16 %v2515
    %v3326 = vunpack.c.l.b16 %v2516
    %v3327 = vunpack.c.l.b16 %v2517
    %v3328 = vunpack.c.h.b16 %v2517
    %v3329 = vunpack.c.l.b16 %v2518
    %v3330 = vunpack.c.l.b16 %v2519
    %v3331 = vunpack.c.h.b16 %v2519
    %v3332 = vunpack.c.l.b16 %v2520
    %v3333 = vunpack.c.l.b16 %v2521
    %v3334 = vunpack.c.h.b16 %v2521
    %v3335 = vunpack.c.l.b16 %v2522
    %v3336 = vunpack.c.l.b16 %v2523
    %v3337 = vunpack.c.h.b16 %v2523
    %v3338 = vunpack.c.l.b16 %v2524
    %v3339 = vunpack.c.l.b16 %v2525
    %v3340 = vunpack.c.h.b16 %v2525
    %v3341 = vunpack.c.l.b16 %v2526
    %v3342 = vunpack.c.l.b16 %v2527
    %v3343 = vunpack.c.h.b16 %v2527
    %v3344 = vunpack.c.l.b16 %v2528
    %v3345 = vunpack.c.l.b16 %v2529
    %v3346 = vunpack.c.h.b16 %v2529
    %v3347 = vunpack.c.l.b16 %v2530
    %v3348 = vunpack.c.l.b16 %v2531
    %v3349 = vunpack.c.h.b16 %v2531
    %v3350 = vunpack.c.l.b16 %v2532
    %v3351 = vunpack.c.l.b16 %v2533
    %v3352 = vunpack.c.h.b16 %v2533
    %v3353 = vunpack.c.l.b16 %v2534
    %v3354 = vunpack.c.l.b16 %v2535
    %v3355 = vunpack.c.h.b16 %v2535
    %v3356 = vunpack.c.l.b16 %v2536
    %v3357 = vunpack.c.l.b16 %v2537
    %v3358 = vunpack.c.h.b16 %v2537
    %v3359 = vunpack.c.l.b16 %v2538
    %v3360 = vunpack.c.l.b16 %v2539
    %v3361 = vunpack.c.h.b16 %v2539
    %v3362 = vunpack.c.l.b16 %v2540
    %v3363 = vunpack.c.l.b16 %v2541
    %v3364 = vunpack.c.h.b16 %v2541
    %v3365 = vunpack.c.l.b16 %v2542
    %v3366 = vunpack.c.l.b16 %v2543
    %v3367 = vunpack.c.h.b16 %v2543
    %v3368 = vunpack.c.l.b16 %v2544
    %v3369 = vunpack.c.l.b16 %v2545
    %v3370 = vunpack.c.h.b16 %v2545
    %v3371 = vunpack.c.l.b16 %v2546
    %v3372 = vunpack.c.l.b16 %v2547
    %v3373 = vunpack.c.h.b16 %v2547
    %v3374 = vunpack.c.l.b16 %v2548
    %v3375 = vunpack.c.l.b16 %v2549
    %v3376 = vunpack.c.h.b16 %v2549
    %v3377 = vunpack.c.l.b16 %v2550
    %v3378 = vunpack.c.l.b16 %v2551
    %v3379 = vunpack.c.h.b16 %v2551
    %v3380 = vunpack.c.l.b16 %v2552
    %v3381 = vunpack.c.l.b16 %v2553
    %v3382 = vunpack.c.h.b16 %v2553
    %v3383 = vunpack.c.l.b16 %v2554
    %v3384 = vunpack.c.l.b16 %v2555
    %v3385 = vunpack.c.h.b16 %v2555
    %v3386 = vunpack.c.l.b16 %v2556
    %v3387 = vunpack.c.l.b16 %v2557
    %v3388 = vunpack.c.h.b16 %v2557
    %v3389 = vunpack.c.l.b16 %v2558
    %v3390 = vunpack.c.l.b16 %v2559
    %v3391 = vunpack.c.h.b16 %v2559
    %v3392 = vunpack.c.l.b16 %v2560
    %v3393 = vunpack.c.l.b16 %v2561
    %v3394 = vunpack.c.h.b16 %v2561
    %v3395 = vunpack.c.l.b16 %v2562
    %v3396 = vunpack.c.l.b16 %v2563
    %v3397 = vunpack.c.h.b16 %v2563
    %v3398 = vunpack.c.l.b16 %v2564
    %v3399 = vunpack.c.l.b16 %v2565
    %v3400 = vunpack.c.h.b16 %v2565
    %v3401 = vunpack.c.l.b16 %v2566
    %v3402 = vunpack.c.l.b16 %v2567
    %v3403 = vunpack.c.h.b16 %v2567
    %v3404 = vunpack.c.l.b16 %v2568
    %v3405 = vunpack.c.l.b16 %v2569
    %v3406 = vunpack.c.h.b16 %v2569
    %v3407 = vunpack.c.l.b16 %v2570
    %v3408 = vunpack.c.l.b16 %v2571
    %v3409 = vunpack.c.h.b16 %v2571
    %v3410 = vunpack.c.l.b16 %v2572
    %v3411 = vunpack.c.l.b16 %v2573
    %v3412 = vunpack.c.h.b16 %v2573
    %v3413 = vunpack.c.l.b16 %v2574
    %v3414 = vunpack.c.l.b16 %v2575
    %v3415 = vunpack.c.h.b16 %v2575
    %v3416 = vunpack.c.l.b16 %v2576
    %v3417 = vunpack.c.l.b16 %v2577
    %v3418 = vunpack.c.h.b16 %v2577
    %v3419 = vunpack.c.l.b16 %v2578
    %v3420 = vunpack.c.l.b16 %v2579
    %v3421 = vunpack.c.h.b16 %v2579
    %v3422 = vunpack.c.l.b16 %v2580
    %v3423 = vunpack.c.l.b16 %v2581
    %v3424 = vunpack.c.h.b16 %v2581
    %v3425 = vunpack.c.l.b16 %v2582
    %v3426 = vunpack.c.l.b16 %v2583
    %v3427 = vunpack.c.h.b16 %v2583
    %v3428 = vunpack.c.l.b16 %v2584
    %v3429 = vunpack.c.l.b16 %v2585
    %v3430 = vunpack.c.h.b16 %v2585
    %v3431 = vunpack.c.l.b16 %v2586
    %v3432 = vunpack.c.l.b16 %v2587
    %v3433 = vunpack.c.h.b16 %v2587
    %v3434 = vunpack.c.l.b16 %v2588
    %v3435 = vunpack.c.l.b16 %v2589
    %v3436 = vunpack.c.h.b16 %v2589
    %v3437 = vunpack.c.l.b16 %v2590
    %v3438 = vunpack.c.l.b16 %v2591
    %v3439 = vunpack.c.h.b16 %v2591
    %v3440 = vunpack.c.l.b16 %v2592
    %v3441 = vunpack.c.l.b16 %v2593
    %v3442 = vunpack.c.h.b16 %v2593
    %v3443 = vunpack.c.l.b16 %v2594
    %v3444 = vunpack.c.l.b16 %v2595
    %v3445 = vunpack.c.h.b16 %v2595
    %v3446 = vunpack.c.l.b16 %v2596
    %v3447 = vunpack.c.l.b16 %v2597
    %v3448 = vunpack.c.h.b16 %v2597
    %v3449 = vunpack.c.l.b16 %v2598
    %v3450 = vunpack.c.l.b16 %v2599
    %v3451 = vunpack.c.h.b16 %v2599
    %v3452 = vunpack.c.l.b16 %v2600
    %v3453 = vunpack.c.l.b16 %v2601
    %v3454 = vunpack.c.h.b16 %v2601
    %v3455 = vunpack.c.l.b16 %v2602
    %v3456 = vunpack.c.l.b16 %v2603
    %v3457 = vunpack.c.h.b16 %v2603
    %v3458 = vunpack.c.l.b16 %v2604
    %v3459 = vunpack.c.l.b16 %v2605
    %v3460 = vunpack.c.h.b16 %v2605
    %v3461 = vunpack.c.l.b16 %v2606
    %v3462 = vunpack.c.l.b16 %v2607
    %v3463 = vunpack.c.h.b16 %v2607
    %v3464 = vunpack.c.l.b16 %v2608
    %v3465 = vunpack.c.l.b16 %v2609
    %v3466 = vunpack.c.h.b16 %v2609
    %v3467 = vunpack.c.l.b16 %v2610
    %v3468 = vunpack.c.l.b16 %v2611
    %v3469 = vunpack.c.h.b16 %v2611
    %v3470 = vunpack.c.l.b16 %v2612
    %v3471 = vunpack.c.l.b16 %v2613
    %v3472 = vunpack.c.h.b16 %v2613
    %v3473 = vunpack.c.l.b16 %v2614
    %v3474 = vunpack.c.l.b16 %v2615
    %v3475 = vunpack.c.h.b16 %v2615
    %v3476 = vunpack.c.l.b16 %v2616
    %v3477 = vunpack.c.l.b16 %v2617
    %v3478 = vunpack.c.h.b16 %v2617
    %v3479 = vunpack.c.l.b16 %v2618
    %v3480 = vunpack.c.l.b16 %v2619
    %v3481 = vunpack.c.h.b16 %v2619
    %v3482 = vunpack.c.l.b16 %v2620
    %v3483 = vunpack.c.l.b16 %v2621
    %v3484 = vunpack.c.h.b16 %v2621
    %v3485 = vunpack.c.l.b16 %v2622
    %v3486 = vunpack.c.l.b16 %v2623
    %v3487 = vunpack.c.h.b16 %v2623
    %v3488 = vunpack.c.l.b16 %v2624
    %v3489 = vunpack.c.l.b16 %v2625
    %v3490 = vunpack.c.h.b16 %v2625
    %v3491 = vunpack.c.l.b16 %v2626
    %v3492 = vunpack.c.l.b16 %v2627
    %v3493 = vunpack.c.h.b16 %v2627
    %v3494 = vunpack.c.l.b16 %v2628
    %v3495 = vunpack.c.l.b16 %v2629
    %v3496 = vunpack.c.h.b16 %v2629
    %v3497 = vunpack.c.l.b16 %v2630
    %v3498 = vunpack.c.l.b16 %v2631
    %v3499 = vunpack.c.h.b16 %v2631
    %v3500 = vunpack.c.l.b16 %v2632
    %v3501 = vunpack.c.l.b16 %v2633
    %v3502 = vunpack.c.h.b16 %v2633
    %v3503 = vunpack.c.l.b16 %v2634
    %v3504 = vunpack.c.l.b16 %v2635
    %v3505 = vunpack.c.h.b16 %v2635
    %v3506 = vunpack.c.l.b16 %v2636
    %v3507 = vunpack.c.l.b16 %v2637
    %v3508 = vunpack.c.h.b16 %v2637
    %v3509 = vunpack.c.l.b16 %v2638
    %v3510 = vunpack.c.l.b16 %v2639
    %v3511 = vunpack.c.h.b16 %v2639
    %v3512 = vunpack.c.l.b16 %v2640
    %v3513 = vunpack.c.l.b16 %v2641
    %v3514 = vunpack.c.h.b16 %v2641
    %v3515 = vunpack.c.l.b16 %v2642
    %v3516 = vunpack.c.l.b16 %v2643
    %v3517 = vunpack.c.h.b16 %v2643
    %v3518 = vunpack.c.l.b16 %v2644
    %v3519 = vunpack.c.l.b16 %v2645
    %v3520 = vunpack.c.h.b16 %v2645
    %v3521 = vunpack.c.l.b16 %v2646
    %v3522 = vunpack.c.l.b16 %v2647
    %v3523 = vunpack.c.h.b16 %v2647
    %v3524 = vunpack.c.l.b16 %v2648
    %v3525 = vunpack.c.l.b16 %v2649
    %v3526 = vunpack.c.h.b16 %v2649
    %v3527 = vunpack.c.l.b16 %v2650
    %v3528 = vunpack.c.l.b16 %v2651
    %v3529 = vunpack.c.h.b16 %v2651
    %v3530 = vunpack.c.l.b16 %v2652
    %v3531 = vunpack.c.l.b16 %v2653
    %v3532 = vunpack.c.h.b16 %v2653
    %v3533 = vunpack.c.l.b16 %v2654
    %v3534 = vunpack.c.l.b16 %v2655
    %v3535 = vunpack.c.h.b16 %v2655
    %v3536 = vunpack.c.l.b16 %v2656
    %v3537 = vunpack.c.l.b16 %v2657
    %v3538 = vunpack.c.h.b16 %v2657
    %v3539 = vunpack.c.l.b16 %v2658
    %v3540 = vunpack.c.l.b16 %v2659
    %v3541 = vunpack.c.h.b16 %v2659
    %v3542 = vunpack.c.l.b16 %v2660
    %v3543 = vunpack.c.l.b16 %v2661
    %v3544 = vunpack.c.h.b16 %v2661
    %v3545 = vunpack.c.l.b16 %v2662
    %v3546 = vunpack.c.l.b16 %v2663
    %v3547 = vunpack.c.h.b16 %v2663
    %v3548 = vunpack.c.l.b16 %v2664
    %v3549 = vunpack.c.l.b16 %v2665
    %v3550 = vunpack.c.h.b16 %v2665
    %v3551 = vunpack.c.l.b16 %v2666
    %v3552 = vunpack.c.l.b16 %v2667
    %v3553 = vunpack.c.h.b16 %v2667
    %v3554 = vunpack.c.l.b16 %v2668
    %v3555 = vunpack.c.l.b16 %v2669
    %v3556 = vunpack.c.h.b16 %v2669
    %v3557 = vunpack.c.l.b16 %v2670
    %v3558 = vunpack.c.l.b16 %v2671
    %v3559 = vunpack.c.h.b16 %v2671
    %v3560 = vunpack.c.l.b16 %v2672
    %v3561 = vunpack.c.l.b16 %v2673
    %v3562 = vunpack.c.h.b16 %v2673
    %v3563 = vunpack.c.l.b16 %v2674
    %v3564 = vunpack.c.l.b16 %v2675
    %v3565 = vunpack.c.h.b16 %v2675
    %v3566 = vunpack.c.l.b16 %v2676
    %v3567 = vunpack.c.l.b16 %v2677
    %v3568 = vunpack.c.h.b16 %v2677
    %v3569 = vunpack.c.l.b16 %v2678
    %v3570 = vunpack.c.l.b16 %v2679
    %v3571 = vunpack.c.h.b16 %v2679
    %v3572 = vunpack.c.l.b16 %v2680
    %v3573 = vunpack.c.l.b16 %v2681
    %v3574 = vunpack.c.h.b16 %v2681
    %v3575 = vunpack.c.l.b16 %v2682
    %v3576 = vunpack.c.l.b16 %v2683
    %v3577 = vunpack.c.h.b16 %v2683
    %v3578 = vunpack.c.l.b16 %v2684
    %v3579 = vunpack.c.l.b16 %v2685
    %v3580 = vunpack.c.h.b16 %v2685
    %v3581 = vunpack.c.l.b16 %v2686
    %v3582 = vunpack.c.l.b16 %v2687
    %v3583 = vunpack.c.h.b16 %v2687
    %v3584 = vunpack.c.l.b16 %v2688
    %v3585 = vunpack.c.l.b16 %v2689
    %v3586 = vunpack.c.h.b16 %v2689
    %v3587 = vunpack.c.l.b16 %v2690
    %v3588 = vunpack.c.l.b16 %v2691
    %v3589 = vunpack.c.h.b16 %v2691
    %v3590 = vunpack.c.l.b16 %v2692
    %v3591 = vunpack.c.l.b16 %v2693
    %v3592 = vunpack.c.h.b16 %v2693
    %v3593 = vunpack.c.l.b16 %v2694
    %v3594 = vunpack.c.l.b16 %v2695
    %v3595 = vunpack.c.h.b16 %v2695
    %v3596 = vunpack.c.l.b16 %v2696
    %v3597 = vunpack.c.l.b16 %v2697
    %v3598 = vunpack.c.h.b16 %v2697
    %v3599 = vunpack.c.l.b16 %v2698
    %v3600 = vunpack.c.l.b16 %v2699
    %v3601 = vunpack.c.h.b16 %v2699
    %v3602 = vunpack.c.l.b16 %v2700
    %v3603 = vunpack.c.l.b16 %v2701
    %v3604 = vunpack.c.h.b16 %v2701
    %v3605 = vunpack.c.l.b16 %v2702
    %v3606 = vunpack.c.l.b16 %v2703
    %v3607 = vunpack.c.h.b16 %v2703
    %v3608 = vunpack.c.l.b16 %v2704
    %v3609 = vunpack.c.l.b16 %v2705
    %v3610 = vunpack.c.h.b16 %v2705
    %v3611 = vunpack.c.l.b16 %v2706
    %v3612 = vunpack.c.l.b16 %v2707
    %v3613 = vunpack.c.h.b16 %v2707
    %v3614 = vunpack.c.l.b16 %v2708
    %v3615 = vunpack.c.l.b16 %v2709
    %v3616 = vunpack.c.h.b16 %v2709
    %v3617 = vunpack.c.l.b16 %v2710
    %v3618 = vunpack.c.l.b16 %v2711
    %v3619 = vunpack.c.h.b16 %v2711
    %v3620 = vunpack.c.l.b16 %v2712
    %v3621 = vunpack.c.l.b16 %v2713
    %v3622 = vunpack.c.h.b16 %v2713
    %v3623 = vunpack.c.l.b16 %v2714
    %v3624 = vunpack.c.l.b16 %v2715
    %v3625 = vunpack.c.h.b16 %v2715
    %v3626 = vunpack.c.l.b16 %v2716
    %v3627 = vunpack.c.l.b16 %v2717
    %v3628 = vunpack.c.h.b16 %v2717
    %v3629 = vunpack.c.l.b16 %v2718
    %v3630 = vunpack.c.l.b16 %v2719
    %v3631 = vunpack.c.h.b16 %v2719
    %v3632 = vunpack.c.l.b16 %v2720
    %v3633 = vunpack.c.l.b16 %v2721
    %v3634 = vunpack.c.h.b16 %v2721
    %v3635 = vunpack.c.l.b16 %v2722
    %v3636 = vunpack.c.l.b16 %v2723
    %v3637 = vunpack.c.h.b16 %v2723
    %v3638 = vunpack.c.l.b16 %v2724
    %v3639 = vunpack.c.l.b16 %v2725
    %v3640 = vunpack.c.h.b16 %v2725
    %v3641 = vunpack.c.l.b16 %v2726
    %v3642 = vunpack.c.l.b16 %v2727
    %v3643 = vunpack.c.h.b16 %v2727
    %v3644 = vunpack.c.l.b16 %v2728
    %v3645 = vunpack.c.l.b16 %v2729
    %v3646 = vunpack.c.h.b16 %v2729
    %v3647 = vunpack.c.l.b16 %v2730
    %v3648 = vunpack.c.l.b16 %v2731
    %v3649 = vunpack.c.h.b16 %v2731
    %v3650 = vunpack.c.l.b16 %v2732
    %v3651 = vunpack.c.l.b16 %v2733
    %v3652 = vunpack.c.h.b16 %v2733
    %v3653 = vunpack.c.l.b16 %v2734
    %v3654 = vunpack.c.l.b16 %v2735
    %v3655 = vunpack.c.h.b16 %v2735
    %v3656 = vunpack.c.l.b16 %v2736
    %v3657 = vunpack.c.l.b16 %v2737
    %v3658 = vunpack.c.h.b16 %v2737
    %v3659 = vunpack.c.l.b16 %v2738
    %v3660 = vunpack.c.l.b16 %v2739
    %v3661 = vunpack.c.h.b16 %v2739
    %v3662 = vunpack.c.l.b16 %v2740
    %v3663 = vunpack.c.l.b16 %v2741
    %v3664 = vunpack.c.h.b16 %v2741
    %v3665 = vunpack.c.l.b16 %v2742
    %v3666 = vunpack.c.l.b16 %v2743
    %v3667 = vunpack.c.h.b16 %v2743
    %v3668 = vunpack.c.l.b16 %v2744
    %v3669 = vunpack.c.l.b16 %v2745
    %v3670 = vunpack.c.h.b16 %v2745
    %v3671 = vunpack.c.l.b16 %v2746
    %v3672 = vunpack.c.l.b16 %v2747
    %v3673 = vunpack.c.h.b16 %v2747
    %v3674 = vunpack.c.l.b16 %v2748
    %v3675 = vunpack.c.l.b16 %v2749
    %v3676 = vunpack.c.h.b16 %v2749
    %v3677 = vunpack.c.l.b16 %v2750
    %v3678 = vunpack.c.l.b16 %v2751
    %v3679 = vunpack.c.h.b16 %v2751
    %v3680 = vunpack.c.l.b16 %v2752
    %v3681 = vunpack.c.l.b16 %v2753
    %v3682 = vunpack.c.h.b16 %v2753
    %v3683 = vunpack.c.l.b16 %v2754
    %v3684 = vunpack.c.l.b16 %v2755
    %v3685 = vunpack.c.h.b16 %v2755
    %v3686 = vunpack.c.l.b16 %v2756
    %v3687 = vunpack.c.l.b16 %v2757
    %v3688 = vunpack.c.h.b16 %v2757
    %v3689 = vunpack.c.l.b16 %v2758
    %v3690 = vunpack.c.l.b16 %v2759
    %v3691 = vunpack.c.h.b16 %v2759
    %v3692 = vunpack.c.l.b16 %v2760
    %v3693 = vunpack.c.l.b16 %v2761
    %v3694 = vunpack.c.h.b16 %v2761
    %v3695 = vunpack.c.l.b16 %v2762
    %v3696 = vunpack.c.l.b16 %v2763
    %v3697 = vunpack.c.h.b16 %v2763
    %v3698 = vunpack.c.l.b16 %v2764
    %v3699 = vunpack.c.l.b16 %v2765
    %v3700 = vunpack.c.h.b16 %v2765
    %v3701 = vunpack.c.l.b16 %v2766
    %v3702 = vunpack.c.l.b16 %v2767
    %v3703 = vunpack.c.h.b16 %v2767
    %v3704 = vunpack.c.l.b16 %v2768
    %v3705 = vunpack.c.l.b16 %v2769
    %v3706 = vunpack.c.h.b16 %v2769
    %v3707 = vunpack.c.l.b16 %v2770
    %v3708 = vunpack.c.l.b16 %v2771
    %v3709 = vunpack.c.h.b16 %v2771
    %v3710 = vunpack.c.l.b16 %v2772
    %v3711 = vunpack.c.l.b16 %v2773
    %v3712 = vunpack.c.h.b16 %v2773
    %v3713 = vunpack.c.l.b16 %v2774
    %v3714 = vunpack.c.l.b16 %v2775
    %v3715 = vunpack.c.h.b16 %v2775
    %v3716 = vunpack.c.l.b16 %v2776
    %v3717 = vunpack.c.l.b16 %v2777
    %v3718 = vunpack.c.h.b16 %v2777
    %v3719 = vunpack.c.l.b16 %v2778
    %v3720 = vunpack.c.l.b16 %v2779
    %v3721 = vunpack.c.h.b16 %v2779
    %v3722 = vunpack.c.l.b16 %v2780
    %v3723 = vunpack.c.l.b16 %v2781
    %v3724 = vunpack.c.h.b16 %v2781
    %v3725 = vunpack.c.l.b16 %v2782
    %v3726 = vunpack.c.l.b16 %v2783
    %v3727 = vunpack.c.h.b16 %v2783
    %v3728 = vunpack.c.l.b16 %v2784
    %v3729 = vunpack.c.l.b16 %v2785
    %v3730 = vunpack.c.h.b16 %v2785
    %v3731 = vunpack.c.l.b16 %v2786
    %v3732 = vunpack.c.l.b16 %v2787
    %v3733 = vunpack.c.h.b16 %v2787
    %v3734 = vunpack.c.l.b16 %v2788
    %v3735 = vunpack.c.l.b16 %v2789
    %v3736 = vunpack.c.h.b16 %v2789
    %v3737 = vunpack.c.l.b16 %v2790
    %v3738 = vunpack.c.l.b16 %v2791
    %v3739 = vunpack.c.h.b16 %v2791
    %v3740 = vunpack.c.l.b16 %v2792
    %v3741 = vunpack.c.l.b16 %v2793
    %v3742 = vunpack.c.h.b16 %v2793
    %v3743 = vunpack.c.l.b16 %v2794
    %v3744 = vunpack.c.l.b16 %v2795
    %v3745 = vunpack.c.h.b16 %v2795
    %v3746 = vunpack.c.l.b16 %v2796
    %v3747 = vunpack.c.l.b16 %v2797
    %v3748 = vunpack.c.h.b16 %v2797
    %v3749 = vunpack.c.l.b16 %v2798
    %v3750 = vunpack.c.l.b16 %v2799
    %v3751 = vunpack.c.h.b16 %v2799
    %v3752 = vunpack.c.l.b16 %v2800
    %v3753 = vunpack.c.l.b16 %v2801
    %v3754 = vunpack.c.h.b16 %v2801
    %v3755 = vunpack.c.l.b16 %v2802
    %v3756 = vunpack.c.l.b16 %v2803
    %v3757 = vunpack.c.h.b16 %v2803
    %v3758 = vunpack.c.l.b16 %v2804
    %v3759 = vunpack.c.l.b16 %v2805
    %v3760 = vunpack.c.h.b16 %v2805
    %v3761 = vunpack.c.l.b16 %v2806
    %v3762 = vunpack.c.l.b16 %v2807
    %v3763 = vunpack.c.h.b16 %v2807
    %v3764 = vunpack.c.l.b16 %v2808
    %v3765 = vunpack.c.l.b16 %v2809
    %v3766 = vunpack.c.h.b16 %v2809
    %v3767 = vunpack.c.l.b16 %v2810
    %v3768 = vunpack.c.l.b16 %v2811
    %v3769 = vunpack.c.h.b16 %v2811
    %v3770 = vunpack.c.l.b16 %v2812
    %v3771 = vunpack.c.l.b16 %v2813
    %v3772 = vunpack.c.h.b16 %v2813
    %v3773 = vunpack.c.l.b16 %v2814
    %v3774 = vunpack.c.l.b16 %v2815
    %v3775 = vunpack.c.h.b16 %v2815
    %v3776 = vunpack.c.l.b16 %v2816
    %v3777 = vunpack.c.l.b16 %v2817
    %v3778 = vunpack.c.h.b16 %v2817
    %v3779 = vunpack.c.l.b16 %v2818
    %v3780 = vunpack.c.l.b16 %v2819
    %v3781 = vunpack.c.h.b16 %v2819
    %v3782 = vunpack.c.l.b16 %v2820
    %v3783 = vunpack.c.l.b16 %v2821
    %v3784 = vunpack.c.h.b16 %v2821
    %v3785 = vunpack.c.l.b16 %v2822
    %v3786 = vunpack.c.l.b16 %v2823
    %v3787 = vunpack.c.h.b16 %v2823
    %v3788 = vunpack.c.l.b16 %v2824
    %v3789 = vunpack.c.l.b16 %v2825
    %v3790 = vunpack.c.h.b16 %v2825
    %v3791 = vunpack.c.l.b16 %v2826
    %v3792 = vunpack.c.l.b16 %v2827
    %v3793 = vunpack.c.h.b16 %v2827
    %v3794 = vunpack.c.l.b16 %v2828
    %v3795 = vunpack.c.l.b16 %v2829
    %v3796 = vunpack.c.h.b16 %v2829
    %v3797 = vunpack.c.l.b16 %v2830
    %v3798 = vunpack.c.l.b16 %v2831
    %v3799 = vunpack.c.h.b16 %v2831
    %v3800 = vunpack.c.l.b16 %v2832
    %v3801 = vunpack.c.l.b16 %v2833
    %v3802 = vunpack.c.h.b16 %v2833
    %v3803 = vunpack.c.l.b16 %v2834
    %v3804 = vunpack.c.l.b16 %v2835
    %v3805 = vunpack.c.h.b16 %v2835
    %v3806 = vunpack.c.l.b16 %v2836
    %v3807 = vunpack.c.l.b16 %v2837
    %v3808 = vunpack.c.h.b16 %v2837
    %v3809 = vunpack.c.l.b16 %v2838
    %v3810 = vunpack.c.l.b16 %v2839
    %v3811 = vunpack.c.h.b16 %v2839
    %v3812 = vunpack.c.l.b16 %v2840
    %v3813 = vunpack.c.l.b16 %v2841
    %v3814 = vunpack.c.h.b16 %v2841
    %v3815 = vunpack.c.l.b16 %v2842
    %v3816 = vunpack.c.l.b16 %v2843
    %v3817 = vunpack.c.h.b16 %v2843
    %v3818 = vunpack.c.l.b16 %v2844
    %v3819 = vunpack.c.l.b16 %v2845
    %v3820 = vunpack.c.h.b16 %v2845
    %v3821 = vunpack.c.l.b16 %v2846
    %v3822 = vunpack.c.l.b16 %v2847
    %v3823 = vunpack.c.h.b16 %v2847
    %v3824 = vunpack.c.l.b16 %v2848
    %v3825 = vunpack.c.l.b16 %v2849
    %v3826 = vunpack.c.h.b16 %v2849
    %v3827 = vunpack.c.l.b16 %v2850
    %v3828 = vpack.c.b16 %v3255, %v3252
    %v3829 = vpack.c.b16 %v3256, %v3253
    %v3830 = vpack.c.b16 %v3257, %v3254
    %v3831 = vpack.c.b16 %v3261, %v3258
    %v3832 = vpack.c.b16 %v3262, %v3259
    %v3833 = vpack.c.b16 %v3263, %v3260
    %v3834 = vpack.c.b16 %v3267, %v3264
    %v3835 = vpack.c.b16 %v3268, %v3265
    %v3836 = vpack.c.b16 %v3269, %v3266
    %v3837 = vpack.c.b16 %v3273, %v3270
    %v3838 = vpack.c.b16 %v3274, %v3271
    %v3839 = vpack.c.b16 %v3275, %v3272
    %v3840 = vpack.c.b16 %v3279, %v3276
    %v3841 = vpack.c.b16 %v3280, %v3277
    %v3842 = vpack.c.b16 %v3281, %v3278
    %v3843 = vpack.c.b16 %v3285, %v3282
    %v3844 = vpack.c.b16 %v3286, %v3283
    %v3845 = vpack.c.b16 %v3287, %v3284
    %v3846 = vpack.c.b16 %v3291, %v3288
    %v3847 = vpack.c.b16 %v3292, %v3289
    %v3848 = vpack.c.b16 %v3293, %v3290
    %v3849 = vpack.c.b16 %v3297, %v3294
    %v3850 = vpack.c.b16 %v3298, %v3295
    %v3851 = vpack.c.b16 %v3299, %v3296
    %v3852 = vpack.c.b16 %v3303, %v3300
    %v3853 = vpack.c.b16 %v3304, %v3301
    %v3854 = vpack.c.b16 %v3305, %v3302
    %v3855 = vpack.c.b16 %v3309, %v3306
    %v3856 = vpack.c.b16 %v3310, %v3307
    %v3857 = vpack.c.b16 %v3311, %v3308
    %v3858 = vpack.c.b16 %v3315, %v3312
    %v3859 = vpack.c.b16 %v3316, %v3313
    %v3860 = vpack.c.b16 %v3317, %v3314
    %v3861 = vpack.c.b16 %v3321, %v3318
    %v3862 = vpack.c.b16 %v3322, %v3319
    %v3863 = vpack.c.b16 %v3323, %v3320
    %v3864 = vpack.c.b16 %v3327, %v3324
    %v3865 = vpack.c.b16 %v3328, %v3325
    %v3866 = vpack.c.b16 %v3329, %v3326
    %v3867 = vpack.c.b16 %v3333, %v3330
    %v3868 = vpack.c.b16 %v3334, %v3331
    %v3869 = vpack.c.b16 %v3335, %v3332
    %v3870 = vpack.c.b16 %v3339, %v3336
    %v3871 = vpack.c.b16 %v3340, %v3337
    %v3872 = vpack.c.b16 %v3341, %v3338
    %v3873 = vpack.c.b16 %v3345, %v3342
    %v3874 = vpack.c.b16 %v3346, %v3343
    %v3875 = vpack.c.b16 %v3347, %v3344
    %v3876 = vpack.c.b16 %v3351, %v3348
    %v3877 = vpack.c.b16 %v3352, %v3349
    %v3878 = vpack.c.b16 %v3353, %v3350
    %v3879 = vpack.c.b16 %v3357, %v3354
    %v3880 = vpack.c.b16 %v3358, %v3355
    %v3881 = vpack.c.b16 %v3359, %v3356
    %v3882 = vpack.c.b16 %v3363, %v3360
    %v3883 = vpack.c.b16 %v3364, %v3361
    %v3884 = vpack.c.b16 %v3365, %v3362
    %v3885 = vpack.c.b16 %v3369, %v3366
    %v3886 = vpack.c.b16 %v3370, %v3367
    %v3887 = vpack.c.b16 %v3371, %v3368
    %v3888 = vpack.c.b16 %v3375, %v3372
    %v3889 = vpack.c.b16 %v3376, %v3373
    %v3890 = vpack.c.b16 %v3377, %v3374
    %v3891 = vpack.c.b16 %v3381, %v3378
    %v3892 = vpack.c.b16 %v3382, %v3379
    %v3893 = vpack.c.b16 %v3383, %v3380
    %v3894 = vpack.c.b16 %v3387, %v3384
    %v3895 = vpack.c.b16 %v3388, %v3385
    %v3896 = vpack.c.b16 %v3389, %v3386
    %v3897 = vpack.c.b16 %v3393, %v3390
    %v3898 = vpack.c.b16 %v3394, %v3391
    %v3899 = vpack.c.b16 %v3395, %v3392
    %v3900 = vpack.c.b16 %v3399, %v3396
    %v3901 = vpack.c.b16 %v3400, %v3397
    %v3902 = vpack.c.b16 %v3401, %v3398
    %v3903 = vpack.c.b16 %v3405, %v3402
    %v3904 = vpack.c.b16 %v3406, %v3403
    %v3905 = vpack.c.b16 %v3407, %v3404
    %v3906 = vpack.c.b16 %v3411, %v3408
    %v3907 = vpack.c.b16 %v3412, %v3409
    %v3908 = vpack.c.b16 %v3413, %v3410
    %v3909 = vpack.c.b16 %v3417, %v3414
    %v3910 = vpack.c.b16 %v3418, %v3415
    %v3911 = vpack.c.b16 %v3419, %v3416
    %v3912 = vpack.c.b16 %v3423, %v3420
    %v3913 = vpack.c.b16 %v3424, %v3421
    %v3914 = vpack.c.b16 %v3425, %v3422
    %v3915 = vpack.c.b16 %v3429, %v3426
    %v3916 = vpack.c.b16 %v3430, %v3427
    %v3917 = vpack.c.b16 %v3431, %v3428
    %v3918 = vpack.c.b16 %v3435, %v3432
    %v3919 = vpack.c.b16 %v3436, %v3433
    %v3920 = vpack.c.b16 %v3437, %v3434
    %v3921 = vpack.c.b16 %v3441, %v3438
    %v3922 = vpack.c.b16 %v3442, %v3439
    %v3923 = vpack.c.b16 %v3443, %v3440
    %v3924 = vpack.c.b16 %v3447, %v3444
    %v3925 = vpack.c.b16 %v3448, %v3445
    %v3926 = vpack.c.b16 %v3449, %v3446
    %v3927 = vpack.c.b16 %v3453, %v3450
    %v3928 = vpack.c.b16 %v3454, %v3451
    %v3929 = vpack.c.b16 %v3455, %v3452
    %v3930 = vpack.c.b16 %v3459, %v3456
    %v3931 = vpack.c.b16 %v3460, %v3457
    %v3932 = vpack.c.b16 %v3461, %v3458
    %v3933 = vpack.c.b16 %v3465, %v3462
    %v3934 = vpack.c.b16 %v3466, %v3463
    %v3935 = vpack.c.b16 %v3467, %v3464
    %v3936 = vpack.c.b16 %v3471, %v3468
    %v3937 = vpack.c.b16 %v3472, %v3469
    %v3938 = vpack.c.b16 %v3473, %v3470
    %v3939 = vpack.c.b16 %v3477, %v3474
    %v3940 = vpack.c.b16 %v3478, %v3475
    %v3941 = vpack.c.b16 %v3479, %v3476
    %v3942 = vpack.c.b16 %v3483, %v3480
    %v3943 = vpack.c.b16 %v3484, %v3481
    %v3944 = vpack.c.b16 %v3485, %v3482
    %v3945 = vpack.c.b16 %v3489, %v3486
    %v3946 = vpack.c.b16 %v3490, %v3487
    %v3947 = vpack.c.b16 %v3491, %v3488
    %v3948 = vpack.c.b16 %v3495, %v3492
    %v3949 = vpack.c.b16 %v3496, %v3493
    %v3950 = vpack.c.b16 %v3497, %v3494
    %v3951 = vpack.c.b16 %v3501, %v3498
    %v3952 = vpack.c.b16 %v3502, %v3499
    %v3953 = vpack.c.b16 %v3503, %v3500
    %v3954 = vpack.c.b16 %v3507, %v3504
    %v3955 = vpack.c.b16 %v3508, %v3505
    %v3956 = vpack.c.b16 %v3509, %v3506
    %v3957 = vpack.c.b16 %v3513, %v3510
    %v3958 = vpack.c.b16 %v3514, %v3511
    %v3959 = vpack.c.b16 %v3515, %v3512
    %v3960 = vpack.c.b16 %v3519, %v3516
    %v3961 = vpack.c.b16 %v3520, %v3517
    %v3962 = vpack.c.b16 %v3521, %v3518
    %v3963 = vpack.c.b16 %v3525, %v3522
    %v3964 = vpack.c.b16 %v3526, %v3523
    %v3965 = vpack.c.b16 %v3527, %v3524
    %v3966 = vpack.c.b16 %v3531, %v3528
    %v3967 = vpack.c.b16 %v3532, %v3529
    %v3968 = vpack.c.b16 %v3533, %v3530
    %v3969 = vpack.c.b16 %v3537, %v3534
    %v3970 = vpack.c.b16 %v3538, %v3535
    %v3971 = vpack.c.b16 %v3539, %v3536
    %v3972 = vpack.c.b16 %v3543, %v3540
    %v3973 = vpack.c.b16 %v3544, %v3541
    %v3974 = vpack.c.b16 %v3545, %v3542
    %v3975 = vpack.c.b16 %v3549, %v3546
    %v3976 = vpack.c.b16 %v3550, %v3547
    %v3977 = vpack.c.b16 %v3551, %v3548
    %v3978 = vpack.c.b16 %v3555, %v3552
    %v3979 = vpack.c.b16 %v3556, %v3553
    %v3980 = vpack.c.b16 %v3557, %v3554
    %v3981 = vpack.c.b16 %v3561, %v3558
    %v3982 = vpack.c.b16 %v3562, %v3559
    %v3983 = vpack.c.b16 %v3563, %v3560
    %v3984 = vpack.c.b16 %v3567, %v3564
    %v3985 = vpack.c.b16 %v3568, %v3565
    %v3986 = vpack.c.b16 %v3569, %v3566
    %v3987 = vpack.c.b16 %v3573, %v3570
    %v3988 = vpack.c.b16 %v3574, %v3571
    %v3989 = vpack.c.b16 %v3575, %v3572
    %v3990 = vpack.c.b16 %v3579, %v3576
    %v3991 = vpack.c.b16 %v3580, %v3577
    %v3992 = vpack.c.b16 %v3581, %v3578
    %v3993 = vpack.c.b16 %v3585, %v3582
    %v3994 = vpack.c.b16 %v3586, %v3583
    %v3995 = vpack.c.b16 %v3587, %v3584
    %v3996 = vpack.c.b16 %v3591, %v3588
    %v3997 = vpack.c.b16 %v3592, %v3589
    %v3998 = vpack.c.b16 %v3593, %v3590
    %v3999 = vpack.c.b16 %v3597, %v3594
    %v4000 = vpack.c.b16 %v3598, %v3595
    %v4001 = vpack.c.b16 %v3599, %v3596
    %v4002 = vpack.c.b16 %v3603, %v3600
    %v4003 = vpack.c.b16 %v3604, %v3601
    %v4004 = vpack.c.b16 %v3605, %v3602
    %v4005 = vpack.c.b16 %v3609, %v3606
    %v4006 = vpack.c.b16 %v3610, %v3607
    %v4007 = vpack.c.b16 %v3611, %v3608
    %v4008 = vpack.c.b16 %v3615, %v3612
    %v4009 = vpack.c.b16 %v3616, %v3613
    %v4010 = vpack.c.b16 %v3617, %v3614
    %v4011 = vpack.c.b16 %v3621, %v3618
    %v4012 = vpack.c.b16 %v3622, %v3619
    %v4013 = vpack.c.b16 %v3623, %v3620
    %v4014 = vpack.c.b16 %v3627, %v3624
    %v4015 = vpack.c.b16 %v3628, %v3625
    %v4016 = vpack.c.b16 %v3629, %v3626
    %v4017 = vpack.c.b16 %v3633, %v3630
    %v4018 = vpack.c.b16 %v3634, %v3631
    %v4019 = vpack.c.b16 %v3635, %v3632
    %v4020 = vpack.c.b16 %v3639, %v3636
    %v4021 = vpack.c.b16 %v3640, %v3637
    %v4022 = vpack.c.b16 %v3641, %v3638
    %v4023 = vpack.c.b16 %v3645, %v3642
    %v4024 = vpack.c.b16 %v3646, %v3643
    %v4025 = vpack.c.b16 %v3647, %v3644
    %v4026 = vpack.c.b16 %v3651, %v3648
    %v4027 = vpack.c.b16 %v3652, %v3649
    %v4028 = vpack.c.b16 %v3653, %v3650
    %v4029 = vpack.c.b16 %v3657, %v3654
    %v4030 = vpack.c.b16 %v3658, %v3655
    %v4031 = vpack.c.b16 %v3659, %v3656
    %v4032 = vpack.c.b16 %v3663, %v3660
    %v4033 = vpack.c.b16 %v3664, %v3661
    %v4034 = vpack.c.b16 %v3665, %v3662
    %v4035 = vpack.c.b16 %v3669, %v3666
    %v4036 = vpack.c.b16 %v3670, %v3667
    %v4037 = vpack.c.b16 %v3671, %v3668
    %v4038 = vpack.c.b16 %v3675, %v3672
    %v4039 = vpack.c.b16 %v3676, %v3673
    %v4040 = vpack.c.b16 %v3677, %v3674
    %v4041 = vpack.c.b16 %v3681, %v3678
    %v4042 = vpack.c.b16 %v3682, %v3679
    %v4043 = vpack.c.b16 %v3683, %v3680
    %v4044 = vpack.c.b16 %v3687, %v3684
    %v4045 = vpack.c.b16 %v3688, %v3685
    %v4046 = vpack.c.b16 %v3689, %v3686
    %v4047 = vpack.c.b16 %v3693, %v3690
    %v4048 = vpack.c.b16 %v3694, %v3691
    %v4049 = vpack.c.b16 %v3695, %v3692
    %v4050 = vpack.c.b16 %v3699, %v3696
    %v4051 = vpack.c.b16 %v3700, %v3697
    %v4052 = vpack.c.b16 %v3701, %v3698
    %v4053 = vpack.c.b16 %v3705, %v3702
    %v4054 = vpack.c.b16 %v3706, %v3703
    %v4055 = vpack.c.b16 %v3707, %v3704
    %v4056 = vpack.c.b16 %v3711, %v3708
    %v4057 = vpack.c.b16 %v3712, %v3709
    %v4058 = vpack.c.b16 %v3713, %v3710
    %v4059 = vpack.c.b16 %v3717, %v3714
    %v4060 = vpack.c.b16 %v3718, %v3715
    %v4061 = vpack.c.b16 %v3719, %v3716
    %v4062 = vpack.c.b16 %v3723, %v3720
    %v4063 = vpack.c.b16 %v3724, %v3721
    %v4064 = vpack.c.b16 %v3725, %v3722
    %v4065 = vpack.c.b16 %v3729, %v3726
    %v4066 = vpack.c.b16 %v3730, %v3727
    %v4067 = vpack.c.b16 %v3731, %v3728
    %v4068 = vpack.c.b16 %v3735, %v3732
    %v4069 = vpack.c.b16 %v3736, %v3733
    %v4070 = vpack.c.b16 %v3737, %v3734
    %v4071 = vpack.c.b16 %v3741, %v3738
    %v4072 = vpack.c.b16 %v3742, %v3739
    %v4073 = vpack.c.b16 %v3743, %v3740
    %v4074 = vpack.c.b16 %v3747, %v3744
    %v4075 = vpack.c.b16 %v3748, %v3745
    %v4076 = vpack.c.b16 %v3749, %v3746
    %v4077 = vpack.c.b16 %v3753, %v3750
    %v4078 = vpack.c.b16 %v3754, %v3751
    %v4079 = vpack.c.b16 %v3755, %v3752
    %v4080 = vpack.c.b16 %v3759, %v3756
    %v4081 = vpack.c.b16 %v3760, %v3757
    %v4082 = vpack.c.b16 %v3761, %v3758
    %v4083 = vpack.c.b16 %v3765, %v3762
    %v4084 = vpack.c.b16 %v3766, %v3763
    %v4085 = vpack.c.b16 %v3767, %v3764
    %v4086 = vpack.c.b16 %v3771, %v3768
    %v4087 = vpack.c.b16 %v3772, %v3769
    %v4088 = vpack.c.b16 %v3773, %v3770
    %v4089 = vpack.c.b16 %v3777, %v3774
    %v4090 = vpack.c.b16 %v3778, %v3775
    %v4091 = vpack.c.b16 %v3779, %v3776
    %v4092 = vpack.c.b16 %v3783, %v3780
    %v4093 = vpack.c.b16 %v3784, %v3781
    %v4094 = vpack.c.b16 %v3785, %v3782
    %v4095 = vpack.c.b16 %v3789, %v3786
    %v4096 = vpack.c.b16 %v3790, %v3787
    %v4097 = vpack.c.b16 %v3791, %v3788
    %v4098 = vpack.c.b16 %v3795, %v3792
    %v4099 = vpack.c.b16 %v3796, %v3793
    %v4100 = vpack.c.b16 %v3797, %v3794
    %v4101 = vpack.c.b16 %v3801, %v3798
    %v4102 = vpack.c.b16 %v3802, %v3799
    %v4103 = vpack.c.b16 %v3803, %v3800
    %v4104 = vpack.c.b16 %v3807, %v3804
    %v4105 = vpack.c.b16 %v3808, %v3805
    %v4106 = vpack.c.b16 %v3809, %v3806
    %v4107 = vpack.c.b16 %v3813, %v3810
    %v4108 = vpack.c.b16 %v3814, %v3811
    %v4109 = vpack.c.b16 %v3815, %v3812
    %v4110 = vpack.c.b16 %v3819, %v3816
    %v4111 = vpack.c.b16 %v3820, %v3817
    %v4112 = vpack.c.b16 %v3821, %v3818
    %v4113 = vpack.c.b16 %v3825, %v3822
    %v4114 = vpack.c.b16 %v3826, %v3823
    %v4115 = vpack.c.b16 %v3827, %v3824
    %4404 = vmatprep.subr.bf16.mxu0 %v3829
    %4405 = vmatpush1.bf16.msra.mxu0 %v3828
    %4406 = vmatprep.subr.bf16.mxu0 %v3832
    %4407 = vmatpush1.bf16.msra.mxu0 %v3831
    %4408 = vmatprep.subr.bf16.mxu0 %v3835
    %4409 = vmatpush1.bf16.msra.mxu0 %v3834
    %4410 = vmatprep.subr.bf16.mxu0 %v3838
    %4411 = vmatpush1.bf16.msra.mxu0 %v3837
    %4412 = vmatprep.subr.bf16.mxu0 %v3841
    %4413 = vmatpush1.bf16.msra.mxu0 %v3840
    %4414 = vmatprep.subr.bf16.mxu0 %v3844
    %4415 = vmatpush1.bf16.msra.mxu0 %v3843
    %4416 = vmatprep.subr.bf16.mxu0 %v3847
    %4417 = vmatpush1.bf16.msra.mxu0 %v3846
    %4418 = vmatprep.subr.bf16.mxu0 %v3850
    %4419 = vmatpush1.bf16.msra.mxu0 %v3849
    %4420 = vmatprep.subr.bf16.mxu0 %v3853
    %4421 = vmatpush1.bf16.msra.mxu0 %v3852
    %4422 = vmatprep.subr.bf16.mxu0 %v3856
    %4423 = vmatpush1.bf16.msra.mxu0 %v3855
    %4424 = vmatprep.subr.bf16.mxu0 %v3859
    %4425 = vmatpush1.bf16.msra.mxu0 %v3858
    %4426 = vmatprep.subr.bf16.mxu0 %v3862
    %4427 = vmatpush1.bf16.msra.mxu0 %v3861
    %4428 = vmatprep.subr.bf16.mxu0 %v3865
    %4429 = vmatpush1.bf16.msra.mxu0 %v3864
    %4430 = vmatprep.subr.bf16.mxu0 %v3868
    %4431 = vmatpush1.bf16.msra.mxu0 %v3867
    %4432 = vmatprep.subr.bf16.mxu0 %v3871
    %4433 = vmatpush1.bf16.msra.mxu0 %v3870
    %4434 = vmatprep.subr.bf16.mxu0 %v3874
    %4435 = vmatpush1.bf16.msra.mxu0 %v3873
    %4436 = vmatprep.mubr.bf16.mxu0 %v2456
    %4437 = vmatmul.mubr.bf16.gmra.mrb[0].mxu0 %v2455
    %v4438 = vpop.f32.mrb[0].mxu0
    %v4439 = vadd.f32 %v2856, %v4438
    %v4440 = vpop.f32.mrb[0].mxu0
    %v4441 = vadd.f32 %v2860, %v4440
    %v4442 = vpop.f32.mrb[0].mxu0
    %v4443 = vadd.f32 %v2856, %v4442
    %v4444 = vpop.f32.mrb[0].mxu0
    %v4445 = vadd.f32 %v2860, %v4444
    %4446 = vdwg.mxu0
    %4447 = vmatprep.subr.bf16.mxu0 %v3877
    %4448 = vmatpush1.bf16.msra.mxu0 %v3876
    %4449 = vmatprep.subr.bf16.mxu0 %v3880
    %4450 = vmatpush1.bf16.msra.mxu0 %v3879
    %4451 = vmatprep.subr.bf16.mxu0 %v3883
    %4452 = vmatpush1.bf16.msra.mxu0 %v3882
    %4453 = vmatprep.subr.bf16.mxu0 %v3886
    %4454 = vmatpush1.bf16.msra.mxu0 %v3885
    %4455 = vmatprep.subr.bf16.mxu0 %v3889
    %4456 = vmatpush1.bf16.msra.mxu0 %v3888
    %4457 = vmatprep.subr.bf16.mxu0 %v3892
    %4458 = vmatpush1.bf16.msra.mxu0 %v3891
    %4459 = vmatprep.subr.bf16.mxu0 %v3895
    %4460 = vmatpush1.bf16.msra.mxu0 %v3894
    %4461 = vmatprep.subr.bf16.mxu0 %v3898
    %4462 = vmatpush1.bf16.msra.mxu0 %v3897
    %4463 = vmatprep.subr.bf16.mxu0 %v3901
    %4464 = vmatpush1.bf16.msra.mxu0 %v3900
    %4465 = vmatprep.subr.bf16.mxu0 %v3904
    %4466 = vmatpush1.bf16.msra.mxu0 %v3903
    %4467 = vmatprep.subr.bf16.mxu0 %v3907
    %4468 = vmatpush1.bf16.msra.mxu0 %v3906
    %4469 = vmatprep.subr.bf16.mxu0 %v3910
    %4470 = vmatpush1.bf16.msra.mxu0 %v3909
    %4471 = vmatprep.subr.bf16.mxu0 %v3913
    %4472 = vmatpush1.bf16.msra.mxu0 %v3912
    %4473 = vmatprep.subr.bf16.mxu0 %v3916
    %4474 = vmatpush1.bf16.msra.mxu0 %v3915
    %4475 = vmatprep.subr.bf16.mxu0 %v3919
    %4476 = vmatpush1.bf16.msra.mxu0 %v3918
    %4477 = vmatprep.subr.bf16.mxu0 %v3922
    %4478 = vmatpush1.bf16.msra.mxu0 %v3921
    %4479 = vmatprep.mubr.bf16.mxu0 %v2458
    %4480 = vmatmul.mubr.bf16.gmra.mrb[0].mxu0 %v2457
    %v4481 = vpop.f32.mrb[0].mxu0
    %v4482 = vadd.f32 %v4439, %v4481
    %v4483 = vpop.f32.mrb[0].mxu0
    %v4484 = vadd.f32 %v4441, %v4483
    %v4485 = vpop.f32.mrb[0].mxu0
    %v4486 = vadd.f32 %v4443, %v4485
    %v4487 = vpop.f32.mrb[0].mxu0
    %v4488 = vadd.f32 %v4445, %v4487
    %4489 = vdwg.mxu0
    %4490 = vmatprep.subr.bf16.mxu0 %v3925
    %4491 = vmatpush1.bf16.msra.mxu0 %v3924
    %4492 = vmatprep.subr.bf16.mxu0 %v3928
    %4493 = vmatpush1.bf16.msra.mxu0 %v3927
    %4494 = vmatprep.subr.bf16.mxu0 %v3931
    %4495 = vmatpush1.bf16.msra.mxu0 %v3930
    %4496 = vmatprep.subr.bf16.mxu0 %v3934
    %4497 = vmatpush1.bf16.msra.mxu0 %v3933
    %4498 = vmatprep.subr.bf16.mxu0 %v3937
    %4499 = vmatpush1.bf16.msra.mxu0 %v3936
    %4500 = vmatprep.subr.bf16.mxu0 %v3940
    %4501 = vmatpush1.bf16.msra.mxu0 %v3939
    %4502 = vmatprep.subr.bf16.mxu0 %v3943
    %4503 = vmatpush1.bf16.msra.mxu0 %v3942
    %4504 = vmatprep.subr.bf16.mxu0 %v3946
    %4505 = vmatpush1.bf16.msra.mxu0 %v3945
    %4506 = vmatprep.subr.bf16.mxu0 %v3949
    %4507 = vmatpush1.bf16.msra.mxu0 %v3948
    %4508 = vmatprep.subr.bf16.mxu0 %v3952
    %4509 = vmatpush1.bf16.msra.mxu0 %v3951
    %4510 = vmatprep.subr.bf16.mxu0 %v3955
    %4511 = vmatpush1.bf16.msra.mxu0 %v3954
    %4512 = vmatprep.subr.bf16.mxu0 %v3958
    %4513 = vmatpush1.bf16.msra.mxu0 %v3957
    %4514 = vmatprep.subr.bf16.mxu0 %v3961
    %4515 = vmatpush1.bf16.msra.mxu0 %v3960
    %4516 = vmatprep.subr.bf16.mxu0 %v3964
    %4517 = vmatpush1.bf16.msra.mxu0 %v3963
    %4518 = vmatprep.subr.bf16.mxu0 %v3967
    %4519 = vmatpush1.bf16.msra.mxu0 %v3966
    %4520 = vmatprep.subr.bf16.mxu0 %v3970
    %4521 = vmatpush1.bf16.msra.mxu0 %v3969
    %4522 = vmatprep.mubr.bf16.mxu0 %v2460
    %4523 = vmatmul.mubr.bf16.gmra.mrb[0].mxu0 %v2459
    %v4524 = vpop.f32.mrb[0].mxu0
    %v4525 = vadd.f32 %v4482, %v4524
    %v4526 = vpop.f32.mrb[0].mxu0
    %v4527 = vadd.f32 %v4484, %v4526
    %v4528 = vpop.f32.mrb[0].mxu0
    %v4529 = vadd.f32 %v4486, %v4528
    %v4530 = vpop.f32.mrb[0].mxu0
    %v4531 = vadd.f32 %v4488, %v4530
    %4532 = vdwg.mxu0
    %4533 = vmatprep.subr.bf16.mxu0 %v3973
    %4534 = vmatpush1.bf16.msra.mxu0 %v3972
    %4535 = vmatprep.subr.bf16.mxu0 %v3976
    %4536 = vmatpush1.bf16.msra.mxu0 %v3975
    %4537 = vmatprep.subr.bf16.mxu0 %v3979
    %4538 = vmatpush1.bf16.msra.mxu0 %v3978
    %4539 = vmatprep.subr.bf16.mxu0 %v3982
    %4540 = vmatpush1.bf16.msra.mxu0 %v3981
    %4541 = vmatprep.subr.bf16.mxu0 %v3985
    %4542 = vmatpush1.bf16.msra.mxu0 %v3984
    %4543 = vmatprep.subr.bf16.mxu0 %v3988
    %4544 = vmatpush1.bf16.msra.mxu0 %v3987
    %4545 = vmatprep.subr.bf16.mxu0 %v3991
    %4546 = vmatpush1.bf16.msra.mxu0 %v3990
    %4547 = vmatprep.subr.bf16.mxu0 %v3994
    %4548 = vmatpush1.bf16.msra.mxu0 %v3993
    %4549 = vmatprep.subr.bf16.mxu0 %v3997
    %4550 = vmatpush1.bf16.msra.mxu0 %v3996
    %4551 = vmatprep.subr.bf16.mxu0 %v4000
    %4552 = vmatpush1.bf16.msra.mxu0 %v3999
    %4553 = vmatprep.subr.bf16.mxu0 %v4003
    %4554 = vmatpush1.bf16.msra.mxu0 %v4002
    %4555 = vmatprep.subr.bf16.mxu0 %v4006
    %4556 = vmatpush1.bf16.msra.mxu0 %v4005
    %4557 = vmatprep.subr.bf16.mxu0 %v4009
    %4558 = vmatpush1.bf16.msra.mxu0 %v4008
    %4559 = vmatprep.subr.bf16.mxu0 %v4012
    %4560 = vmatpush1.bf16.msra.mxu0 %v4011
    %4561 = vmatprep.subr.bf16.mxu0 %v4015
    %4562 = vmatpush1.bf16.msra.mxu0 %v4014
    %4563 = vmatprep.subr.bf16.mxu0 %v4018
    %4564 = vmatpush1.bf16.msra.mxu0 %v4017
    %4565 = vmatprep.mubr.bf16.mxu0 %v2462
    %4566 = vmatmul.mubr.bf16.gmra.mrb[0].mxu0 %v2461
    %v4567 = vpop.f32.mrb[0].mxu0
    %v4568 = vadd.f32 %v4525, %v4567
    %v4569 = vpop.f32.mrb[0].mxu0
    %v4570 = vadd.f32 %v4527, %v4569
    %v4571 = vpop.f32.mrb[0].mxu0
    %v4572 = vadd.f32 %v4529, %v4571
    %v4573 = vpop.f32.mrb[0].mxu0
    %v4574 = vadd.f32 %v4531, %v4573
    %4575 = vdwg.mxu0
    %4576 = vmatprep.subr.bf16.mxu0 %v4021
    %4577 = vmatpush1.bf16.msra.mxu0 %v4020
    %4578 = vmatprep.subr.bf16.mxu0 %v4024
    %4579 = vmatpush1.bf16.msra.mxu0 %v4023
    %4580 = vmatprep.subr.bf16.mxu0 %v4027
    %4581 = vmatpush1.bf16.msra.mxu0 %v4026
    %4582 = vmatprep.subr.bf16.mxu0 %v4030
    %4583 = vmatpush1.bf16.msra.mxu0 %v4029
    %4584 = vmatprep.subr.bf16.mxu0 %v4033
    %4585 = vmatpush1.bf16.msra.mxu0 %v4032
    %4586 = vmatprep.subr.bf16.mxu0 %v4036
    %4587 = vmatpush1.bf16.msra.mxu0 %v4035
    %4588 = vmatprep.subr.bf16.mxu0 %v4039
    %4589 = vmatpush1.bf16.msra.mxu0 %v4038
    %4590 = vmatprep.subr.bf16.mxu0 %v4042
    %4591 = vmatpush1.bf16.msra.mxu0 %v4041
    %4592 = vmatprep.subr.bf16.mxu0 %v4045
    %4593 = vmatpush1.bf16.msra.mxu0 %v4044
    %4594 = vmatprep.subr.bf16.mxu0 %v4048
    %4595 = vmatpush1.bf16.msra.mxu0 %v4047
    %4596 = vmatprep.subr.bf16.mxu0 %v4051
    %4597 = vmatpush1.bf16.msra.mxu0 %v4050
    %4598 = vmatprep.subr.bf16.mxu0 %v4054
    %4599 = vmatpush1.bf16.msra.mxu0 %v4053
    %4600 = vmatprep.subr.bf16.mxu0 %v4057
    %4601 = vmatpush1.bf16.msra.mxu0 %v4056
    %4602 = vmatprep.subr.bf16.mxu0 %v4060
    %4603 = vmatpush1.bf16.msra.mxu0 %v4059
    %4604 = vmatprep.subr.bf16.mxu0 %v4063
    %4605 = vmatpush1.bf16.msra.mxu0 %v4062
    %4606 = vmatprep.subr.bf16.mxu0 %v4066
    %4607 = vmatpush1.bf16.msra.mxu0 %v4065
    %4608 = vmatprep.mubr.bf16.mxu0 %v2464
    %4609 = vmatmul.mubr.bf16.gmra.mrb[0].mxu0 %v2463
    %v4610 = vpop.f32.mrb[0].mxu0
    %v4611 = vadd.f32 %v4568, %v4610
    %v4612 = vpop.f32.mrb[0].mxu0
    %v4613 = vadd.f32 %v4570, %v4612
    %v4614 = vpop.f32.mrb[0].mxu0
    %v4615 = vadd.f32 %v4572, %v4614
    %v4616 = vpop.f32.mrb[0].mxu0
    %v4617 = vadd.f32 %v4574, %v4616
    %4618 = vdwg.mxu0
    %4619 = vmatprep.subr.bf16.mxu0 %v4069
    %4620 = vmatpush1.bf16.msra.mxu0 %v4068
    %4621 = vmatprep.subr.bf16.mxu0 %v4072
    %4622 = vmatpush1.bf16.msra.mxu0 %v4071
    %4623 = vmatprep.subr.bf16.mxu0 %v4075
    %4624 = vmatpush1.bf16.msra.mxu0 %v4074
    %4625 = vmatprep.subr.bf16.mxu0 %v4078
    %4626 = vmatpush1.bf16.msra.mxu0 %v4077
    %4627 = vmatprep.subr.bf16.mxu0 %v4081
    %4628 = vmatpush1.bf16.msra.mxu0 %v4080
    %4629 = vmatprep.subr.bf16.mxu0 %v4084
    %4630 = vmatpush1.bf16.msra.mxu0 %v4083
    %4631 = vmatprep.subr.bf16.mxu0 %v4087
    %4632 = vmatpush1.bf16.msra.mxu0 %v4086
    %4633 = vmatprep.subr.bf16.mxu0 %v4090
    %4634 = vmatpush1.bf16.msra.mxu0 %v4089
    %4635 = vmatprep.subr.bf16.mxu0 %v4093
    %4636 = vmatpush1.bf16.msra.mxu0 %v4092
    %4637 = vmatprep.subr.bf16.mxu0 %v4096
    %4638 = vmatpush1.bf16.msra.mxu0 %v4095
    %4639 = vmatprep.subr.bf16.mxu0 %v4099
    %4640 = vmatpush1.bf16.msra.mxu0 %v4098
    %4641 = vmatprep.subr.bf16.mxu0 %v4102
    %4642 = vmatpush1.bf16.msra.mxu0 %v4101
    %4643 = vmatprep.subr.bf16.mxu0 %v4105
    %4644 = vmatpush1.bf16.msra.mxu0 %v4104
    %4645 = vmatprep.subr.bf16.mxu0 %v4108
    %4646 = vmatpush1.bf16.msra.mxu0 %v4107
    %4647 = vmatprep.subr.bf16.mxu0 %v4111
    %4648 = vmatpush1.bf16.msra.mxu0 %v4110
    %4649 = vmatprep.subr.bf16.mxu0 %v4114
    %4650 = vmatpush1.bf16.msra.mxu0 %v4113
    %4651 = vmatprep.mubr.bf16.mxu0 %v2466
    %4652 = vmatmul.mubr.bf16.gmra.mrb[0].mxu0 %v2465
    %v4653 = vpop.f32.mrb[0].mxu0
    %v4654 = vadd.f32 %v4611, %v4653
    %v4655 = vpop.f32.mrb[0].mxu0
    %v4656 = vadd.f32 %v4613, %v4655
    %v4657 = vpop.f32.mrb[0].mxu0
    %v4658 = vadd.f32 %v4615, %v4657
    %v4659 = vpop.f32.mrb[0].mxu0
    %v4660 = vadd.f32 %v4617, %v4659
    %4661 = vdwg.mxu0
    %4662 = vmatprep.subr.bf16.mxu0 0
    %4663 = vmatpush1.bf16.msra.mxu0 %v3830
    %4664 = vmatprep.subr.bf16.mxu0 0
    %4665 = vmatpush1.bf16.msra.mxu0 %v3833
    %4666 = vmatprep.subr.bf16.mxu0 0
    %4667 = vmatpush1.bf16.msra.mxu0 %v3836
    %4668 = vmatprep.subr.bf16.mxu0 0
    %4669 = vmatpush1.bf16.msra.mxu0 %v3839
    %4670 = vmatprep.subr.bf16.mxu0 0
    %4671 = vmatpush1.bf16.msra.mxu0 %v3842
    %4672 = vmatprep.subr.bf16.mxu0 0
    %4673 = vmatpush1.bf16.msra.mxu0 %v3845
    %4674 = vmatprep.subr.bf16.mxu0 0
    %4675 = vmatpush1.bf16.msra.mxu0 %v3848
    %4676 = vmatprep.subr.bf16.mxu0 0
    %4677 = vmatpush1.bf16.msra.mxu0 %v3851
    %4678 = vmatprep.subr.bf16.mxu0 0
    %4679 = vmatpush1.bf16.msra.mxu0 %v3854
    %4680 = vmatprep.subr.bf16.mxu0 0
    %4681 = vmatpush1.bf16.msra.mxu0 %v3857
    %4682 = vmatprep.subr.bf16.mxu0 0
    %4683 = vmatpush1.bf16.msra.mxu0 %v3860
    %4684 = vmatprep.subr.bf16.mxu0 0
    %4685 = vmatpush1.bf16.msra.mxu0 %v3863
    %4686 = vmatprep.subr.bf16.mxu0 0
    %4687 = vmatpush1.bf16.msra.mxu0 %v3866
    %4688 = vmatprep.subr.bf16.mxu0 0
    %4689 = vmatpush1.bf16.msra.mxu0 %v3869
    %4690 = vmatprep.subr.bf16.mxu0 0
    %4691 = vmatpush1.bf16.msra.mxu0 %v3872
    %4692 = vmatprep.subr.bf16.mxu0 0
    %4693 = vmatpush1.bf16.msra.mxu0 %v3875
    %4694 = vmatprep.mubr.bf16.mxu0 %v2456
    %4695 = vmatmul.mubr.bf16.gmra.mrb[0].mxu0 %v2455
    %v4696 = vpop.f32.mrb[0].mxu0
    %v4697 = vadd.f32 %v2864, %v4696
    %v4698 = vpop.f32.mrb[0].mxu0
    %v4699 = vpop.f32.mrb[0].mxu0
    %v4700 = vadd.f32 %v2864, %v4699
    %v4701 = vpop.f32.mrb[0].mxu0
    %4702 = vdwg.mxu0
    %4703 = vmatprep.subr.bf16.mxu0 0
    %4704 = vmatpush1.bf16.msra.mxu0 %v3878
    %4705 = vmatprep.subr.bf16.mxu0 0
    %4706 = vmatpush1.bf16.msra.mxu0 %v3881
    %4707 = vmatprep.subr.bf16.mxu0 0
    %4708 = vmatpush1.bf16.msra.mxu0 %v3884
    %4709 = vmatprep.subr.bf16.mxu0 0
    %4710 = vmatpush1.bf16.msra.mxu0 %v3887
    %4711 = vmatprep.subr.bf16.mxu0 0
    %4712 = vmatpush1.bf16.msra.mxu0 %v3890
    %4713 = vmatprep.subr.bf16.mxu0 0
    %4714 = vmatpush1.bf16.msra.mxu0 %v3893
    %4715 = vmatprep.subr.bf16.mxu0 0
    %4716 = vmatpush1.bf16.msra.mxu0 %v3896
    %4717 = vmatprep.subr.bf16.mxu0 0
    %4718 = vmatpush1.bf16.msra.mxu0 %v3899
    %4719 = vmatprep.subr.bf16.mxu0 0
    %4720 = vmatpush1.bf16.msra.mxu0 %v3902
    %4721 = vmatprep.subr.bf16.mxu0 0
    %4722 = vmatpush1.bf16.msra.mxu0 %v3905
    %4723 = vmatprep.subr.bf16.mxu0 0
    %4724 = vmatpush1.bf16.msra.mxu0 %v3908
    %4725 = vmatprep.subr.bf16.mxu0 0
    %4726 = vmatpush1.bf16.msra.mxu0 %v3911
    %4727 = vmatprep.subr.bf16.mxu0 0
    %4728 = vmatpush1.bf16.msra.mxu0 %v3914
    %4729 = vmatprep.subr.bf16.mxu0 0
    %4730 = vmatpush1.bf16.msra.mxu0 %v3917
    %4731 = vmatprep.subr.bf16.mxu0 0
    %4732 = vmatpush1.bf16.msra.mxu0 %v3920
    %4733 = vmatprep.subr.bf16.mxu0 0
    %4734 = vmatpush1.bf16.msra.mxu0 %v3923
    %4735 = vmatprep.mubr.bf16.mxu0 %v2458
    %4736 = vmatmul.mubr.bf16.gmra.mrb[0].mxu0 %v2457
    %v4737 = vpop.f32.mrb[0].mxu0
    %v4738 = vadd.f32 %v4697, %v4737
    %v4739 = vpop.f32.mrb[0].mxu0
    %v4740 = vpop.f32.mrb[0].mxu0
    %v4741 = vadd.f32 %v4700, %v4740
    %v4742 = vpop.f32.mrb[0].mxu0
    %4743 = vdwg.mxu0
    %4744 = vmatprep.subr.bf16.mxu0 0
    %4745 = vmatpush1.bf16.msra.mxu0 %v3926
    %4746 = vmatprep.subr.bf16.mxu0 0
    %4747 = vmatpush1.bf16.msra.mxu0 %v3929
    %4748 = vmatprep.subr.bf16.mxu0 0
    %4749 = vmatpush1.bf16.msra.mxu0 %v3932
    %4750 = vmatprep.subr.bf16.mxu0 0
    %4751 = vmatpush1.bf16.msra.mxu0 %v3935
    %4752 = vmatprep.subr.bf16.mxu0 0
    %4753 = vmatpush1.bf16.msra.mxu0 %v3938
    %4754 = vmatprep.subr.bf16.mxu0 0
    %4755 = vmatpush1.bf16.msra.mxu0 %v3941
    %4756 = vmatprep.subr.bf16.mxu0 0
    %4757 = vmatpush1.bf16.msra.mxu0 %v3944
    %4758 = vmatprep.subr.bf16.mxu0 0
    %4759 = vmatpush1.bf16.msra.mxu0 %v3947
    %4760 = vmatprep.subr.bf16.mxu0 0
    %4761 = vmatpush1.bf16.msra.mxu0 %v3950
    %4762 = vmatprep.subr.bf16.mxu0 0
    %4763 = vmatpush1.bf16.msra.mxu0 %v3953
    %4764 = vmatprep.subr.bf16.mxu0 0
    %4765 = vmatpush1.bf16.msra.mxu0 %v3956
    %4766 = vmatprep.subr.bf16.mxu0 0
    %4767 = vmatpush1.bf16.msra.mxu0 %v3959
    %4768 = vmatprep.subr.bf16.mxu0 0
    %4769 = vmatpush1.bf16.msra.mxu0 %v3962
    %4770 = vmatprep.subr.bf16.mxu0 0
    %4771 = vmatpush1.bf16.msra.mxu0 %v3965
    %4772 = vmatprep.subr.bf16.mxu0 0
    %4773 = vmatpush1.bf16.msra.mxu0 %v3968
    %4774 = vmatprep.subr.bf16.mxu0 0
    %4775 = vmatpush1.bf16.msra.mxu0 %v3971
    %4776 = vmatprep.mubr.bf16.mxu0 %v2460
    %4777 = vmatmul.mubr.bf16.gmra.mrb[0].mxu0 %v2459
    %v4778 = vpop.f32.mrb[0].mxu0
    %v4779 = vadd.f32 %v4738, %v4778
    %v4780 = vpop.f32.mrb[0].mxu0
    %v4781 = vpop.f32.mrb[0].mxu0
    %v4782 = vadd.f32 %v4741, %v4781
    %v4783 = vpop.f32.mrb[0].mxu0
    %4784 = vdwg.mxu0
    %4785 = vmatprep.subr.bf16.mxu0 0
    %4786 = vmatpush1.bf16.msra.mxu0 %v3974
    %4787 = vmatprep.subr.bf16.mxu0 0
    %4788 = vmatpush1.bf16.msra.mxu0 %v3977
    %4789 = vmatprep.subr.bf16.mxu0 0
    %4790 = vmatpush1.bf16.msra.mxu0 %v3980
    %4791 = vmatprep.subr.bf16.mxu0 0
    %4792 = vmatpush1.bf16.msra.mxu0 %v3983
    %4793 = vmatprep.subr.bf16.mxu0 0
    %4794 = vmatpush1.bf16.msra.mxu0 %v3986
    %4795 = vmatprep.subr.bf16.mxu0 0
    %4796 = vmatpush1.bf16.msra.mxu0 %v3989
    %4797 = vmatprep.subr.bf16.mxu0 0
    %4798 = vmatpush1.bf16.msra.mxu0 %v3992
    %4799 = vmatprep.subr.bf16.mxu0 0
    %4800 = vmatpush1.bf16.msra.mxu0 %v3995
    %4801 = vmatprep.subr.bf16.mxu0 0
    %4802 = vmatpush1.bf16.msra.mxu0 %v3998
    %4803 = vmatprep.subr.bf16.mxu0 0
    %4804 = vmatpush1.bf16.msra.mxu0 %v4001
    %4805 = vmatprep.subr.bf16.mxu0 0
    %4806 = vmatpush1.bf16.msra.mxu0 %v4004
    %4807 = vmatprep.subr.bf16.mxu0 0
    %4808 = vmatpush1.bf16.msra.mxu0 %v4007
    %4809 = vmatprep.subr.bf16.mxu0 0
    %4810 = vmatpush1.bf16.msra.mxu0 %v4010
    %4811 = vmatprep.subr.bf16.mxu0 0
    %4812 = vmatpush1.bf16.msra.mxu0 %v4013
    %4813 = vmatprep.subr.bf16.mxu0 0
    %4814 = vmatpush1.bf16.msra.mxu0 %v4016
    %4815 = vmatprep.subr.bf16.mxu0 0
    %4816 = vmatpush1.bf16.msra.mxu0 %v4019
    %4817 = vmatprep.mubr.bf16.mxu0 %v2462
    %4818 = vmatmul.mubr.bf16.gmra.mrb[0].mxu0 %v2461
    %v4819 = vpop.f32.mrb[0].mxu0
    %v4820 = vadd.f32 %v4779, %v4819
    %v4821 = vpop.f32.mrb[0].mxu0
    %v4822 = vpop.f32.mrb[0].mxu0
    %v4823 = vadd.f32 %v4782, %v4822
    %v4824 = vpop.f32.mrb[0].mxu0
    %4825 = vdwg.mxu0
    %4826 = vmatprep.subr.bf16.mxu0 0
    %4827 = vmatpush1.bf16.msra.mxu0 %v4022
    %4828 = vmatprep.subr.bf16.mxu0 0
    %4829 = vmatpush1.bf16.msra.mxu0 %v4025
    %4830 = vmatprep.subr.bf16.mxu0 0
    %4831 = vmatpush1.bf16.msra.mxu0 %v4028
    %4832 = vmatprep.subr.bf16.mxu0 0
    %4833 = vmatpush1.bf16.msra.mxu0 %v4031
    %4834 = vmatprep.subr.bf16.mxu0 0
    %4835 = vmatpush1.bf16.msra.mxu0 %v4034
    %4836 = vmatprep.subr.bf16.mxu0 0
    %4837 = vmatpush1.bf16.msra.mxu0 %v4037
    %4838 = vmatprep.subr.bf16.mxu0 0
    %4839 = vmatpush1.bf16.msra.mxu0 %v4040
    %4840 = vmatprep.subr.bf16.mxu0 0
    %4841 = vmatpush1.bf16.msra.mxu0 %v4043
    %4842 = vmatprep.subr.bf16.mxu0 0
    %4843 = vmatpush1.bf16.msra.mxu0 %v4046
    %4844 = vmatprep.subr.bf16.mxu0 0
    %4845 = vmatpush1.bf16.msra.mxu0 %v4049
    %4846 = vmatprep.subr.bf16.mxu0 0
    %4847 = vmatpush1.bf16.msra.mxu0 %v4052
    %4848 = vmatprep.subr.bf16.mxu0 0
    %4849 = vmatpush1.bf16.msra.mxu0 %v4055
    %4850 = vmatprep.subr.bf16.mxu0 0
    %4851 = vmatpush1.bf16.msra.mxu0 %v4058
    %4852 = vmatprep.subr.bf16.mxu0 0
    %4853 = vmatpush1.bf16.msra.mxu0 %v4061
    %4854 = vmatprep.subr.bf16.mxu0 0
    %4855 = vmatpush1.bf16.msra.mxu0 %v4064
    %4856 = vmatprep.subr.bf16.mxu0 0
    %4857 = vmatpush1.bf16.msra.mxu0 %v4067
    %4858 = vmatprep.mubr.bf16.mxu0 %v2464
    %4859 = vmatmul.mubr.bf16.gmra.mrb[0].mxu0 %v2463
    %v4860 = vpop.f32.mrb[0].mxu0
    %v4861 = vadd.f32 %v4820, %v4860
    %v4862 = vpop.f32.mrb[0].mxu0
    %v4863 = vpop.f32.mrb[0].mxu0
    %v4864 = vadd.f32 %v4823, %v4863
    %v4865 = vpop.f32.mrb[0].mxu0
    %4866 = vdwg.mxu0
    %4867 = vmatprep.subr.bf16.mxu0 0
    %4868 = vmatpush1.bf16.msra.mxu0 %v4070
    %4869 = vmatprep.subr.bf16.mxu0 0
    %4870 = vmatpush1.bf16.msra.mxu0 %v4073
    %4871 = vmatprep.subr.bf16.mxu0 0
    %4872 = vmatpush1.bf16.msra.mxu0 %v4076
    %4873 = vmatprep.subr.bf16.mxu0 0
    %4874 = vmatpush1.bf16.msra.mxu0 %v4079
    %4875 = vmatprep.subr.bf16.mxu0 0
    %4876 = vmatpush1.bf16.msra.mxu0 %v4082
    %4877 = vmatprep.subr.bf16.mxu0 0
    %4878 = vmatpush1.bf16.msra.mxu0 %v4085
    %4879 = vmatprep.subr.bf16.mxu0 0
    %4880 = vmatpush1.bf16.msra.mxu0 %v4088
    %4881 = vmatprep.subr.bf16.mxu0 0
    %4882 = vmatpush1.bf16.msra.mxu0 %v4091
    %4883 = vmatprep.subr.bf16.mxu0 0
    %4884 = vmatpush1.bf16.msra.mxu0 %v4094
    %4885 = vmatprep.subr.bf16.mxu0 0
    %4886 = vmatpush1.bf16.msra.mxu0 %v4097
    %4887 = vmatprep.subr.bf16.mxu0 0
    %4888 = vmatpush1.bf16.msra.mxu0 %v4100
    %4889 = vmatprep.subr.bf16.mxu0 0
    %4890 = vmatpush1.bf16.msra.mxu0 %v4103
    %4891 = vmatprep.subr.bf16.mxu0 0
    %4892 = vmatpush1.bf16.msra.mxu0 %v4106
    %4893 = vmatprep.subr.bf16.mxu0 0
    %4894 = vmatpush1.bf16.msra.mxu0 %v4109
    %4895 = vmatprep.subr.bf16.mxu0 0
    %4896 = vmatpush1.bf16.msra.mxu0 %v4112
    %4897 = vmatprep.subr.bf16.mxu0 0
    %4898 = vmatpush1.bf16.msra.mxu0 %v4115
    %4899 = vmatprep.mubr.bf16.mxu0 %v2466
    %4900 = vmatmul.mubr.bf16.gmra.mrb[0].mxu0 %v2465
    %v4901 = vpop.f32.mrb[0].mxu0
    %v4902 = vadd.f32 %v4861, %v4901
    %v4903 = vpop.f32.mrb[0].mxu0
    %v4904 = vpop.f32.mrb[0].mxu0
    %v4905 = vadd.f32 %v4864, %v4904
    %v4906 = vpop.f32.mrb[0].mxu0
    %4907 = vdwg.mxu0
    %v4908 = vld [vmem:[#allocation11] sm:$0xff]
    %v4909 = vld [vmem:[#allocation11 + $0x8] sm:$0xff]
    %v4910 = vld [vmem:[#allocation11 + $0x10] sm:$0xff]
    %v4911 = vld [vmem:[#allocation11 + $0x18] sm:$0xff]
    %v4912 = vld [vmem:[#allocation11 + $0x20] sm:$0xff]
    %v4913 = vld [vmem:[#allocation11 + $0x28] sm:$0xff]
    %vm4914 = vcmp.ge.u32.totalorder %v4908, 858993459
    %vm4915 = vcmp.ge.u32.totalorder %v4909, 858993459
    %vm4916 = vcmp.ge.u32.totalorder %v4910, 858993459
    %vm4917 = vcmp.ge.u32.totalorder %v4911, 858993459
    %vm4918 = vcmp.ge.u32.totalorder %v4912, 858993459
    %vm4919 = vcmp.ge.u32.totalorder %v4913, 858993459
    %v4920 = vmul.f32 %v4654, 1.25
    %v4921 = vmul.f32 %v4656, 1.25
    %v4922 = vmul.f32 %v4902, 1.25
    %v4923 = vmul.f32 %v4658, 1.25
    %v4924 = vmul.f32 %v4660, 1.25
    %v4925 = vmul.f32 %v4905, 1.25
    %v4926 = vsel %vm4914, %v4920, 0.0
    %v4927 = vsel %vm4915, %v4921, 0.0
    %v4928 = vsel %vm4916, %v4922, 0.0
    %v4929 = vsel %vm4917, %v4923, 0.0
    %v4930 = vsel %vm4918, %v4924, 0.0
    %v4931 = vsel %vm4919, %v4925, 0.0
    %4932 = vst [vmem:[#allocation13] sm:$0xff] %v4926
    %4933 = vst [vmem:[#allocation13 + $0x8] sm:$0xff] %v4927
    %4934 = vst [vmem:[#allocation13 + $0x10] sm:$0xff] %v4928
    %4935 = vst [vmem:[#allocation13 + $0x18] sm:$0xff] %v4929
    %4936 = vst [vmem:[#allocation13 + $0x20] sm:$0xff] %v4930
    %4937 = vst [vmem:[#allocation13 + $0x28] sm:$0xff] %v4931
    // Predicated region
    $region50: #{tpu_custom_call.1} parent=1 // pred_check
      _
    $region51: #{tpu_custom_call.1} parent=1 // pred_check_branch
      %4939 = sbr.rel (0) target = $region53
    $region52: #{tpu_custom_call.1} parent=1 // pred_region
      %s4941 = ssub.s32 768, 768
      %4942 = vsyncadd [#allocation4], %s4941
      %s4943 = sshll.u32 [#allocation13], 4
      %s4944 = int_to_ptr.vmem [resolvable:$true] %s4943
      %4949 = dma.vmem_to_hbm [thread:$0]  %s4944, 768, %s6, [#allocation4], 384, 384, 24
    $region53: #{tpu_custom_call.1} parent=1 // pred_fallthru
      _
    // Predicated region
    $region54: #{tpu_custom_call.1} parent=1 // pred_check
      _
    $region55: #{tpu_custom_call.1} parent=1 // pred_check_branch
      %4951 = sbr.rel (0) target = $region57
    $region56: #{tpu_custom_call.1} parent=1 // pred_region
      %4952 = dma.done [#allocation4], 768
    $region57: #{tpu_custom_call.1} parent=1 // pred_fallthru
      _
    %4953 = vsyncpa [#allocation3], 1
    %4954 = vsyncpa [#allocation6], 1
    %4955 = vsyncpa [#allocation9], 1
    %4956 = vsyncpa [#allocation12], 1
    %4957 = vsyncpa [#allocation4], 1

</llo_original>
